<compile_context>
chip_gen: v5e
topology: v5e:2x2
jax: 0.10.0
libtpu: 0.0.40
codegen_flags: <defaults>
</compile_context>

<pallas_src>
import functools

import jax
import jax.numpy as jnp
from jax.experimental import pallas as pl
from jax.experimental.pallas import tpu as pltpu  # noqa: F401  (TPU backend)


def _round_up(x, m):
    return ((x + m - 1) // m) * m


# ----------------------------------------------------------------------------
# Pallas kernels
# ----------------------------------------------------------------------------
def _mm_bias_act_kernel(a_ref, b_ref, bias_ref, o_ref, *, act):
    """o = act(a @ b + bias); a:(Mp,Kp) bf16, b:(Kp,Np) bf16, bias:(1,Np) f32."""
    y = jnp.dot(a_ref[...], b_ref[...], preferred_element_type=jnp.float32)
    y = y + bias_ref[...]
    o_ref[...] = act(y).astype(o_ref.dtype)


def _mlp2_kernel(x_ref, w1_ref, b1_ref, w2_ref, b2_ref, o_ref):
    """Fused bottleneck: o = (x @ w1 + b1) @ w2 + b2 (no activation between)."""
    z = jnp.dot(x_ref[...], w1_ref[...], preferred_element_type=jnp.float32)
    z = z + b1_ref[...]
    y = jnp.dot(z.astype(w2_ref.dtype), w2_ref[...],
                preferred_element_type=jnp.float32)
    o_ref[...] = (y + b2_ref[...]).astype(o_ref.dtype)


# ----------------------------------------------------------------------------
# Pallas call wrappers (lane-dense padding + bf16 MXU operands)
# ----------------------------------------------------------------------------
def pallas_matmul_bias(a, b, bias, act=lambda y: y):
    """act(a @ b + bias) with M->16, K->128, N->128 zero padding (exact)."""
    M, K = a.shape
    K2, N = b.shape
    assert K == K2
    Mp = _round_up(max(M, 16), 16)
    Kp = _round_up(max(K, 128), 128)
    Np = _round_up(max(N, 128), 128)

    a_p = jnp.pad(a.astype(jnp.bfloat16), ((0, Mp - M), (0, Kp - K)))
    b_p = jnp.pad(b.astype(jnp.bfloat16), ((0, Kp - K), (0, Np - N)))
    bias_p = jnp.pad(bias.astype(jnp.float32), (0, Np - N)).reshape(1, Np)

    kernel = functools.partial(_mm_bias_act_kernel, act=act)
    cost = pl.CostEstimate(
        flops=2 * Mp * Kp * Np,
        transcendentals=0,
        bytes_accessed=2 * Mp * Kp + 2 * Kp * Np + 4 * Np + 4 * Mp * Np,
    )
    out = pl.pallas_call(
        kernel,
        out_shape=jax.ShapeDtypeStruct((Mp, Np), jnp.float32),
        cost_estimate=cost,
    )(a_p, b_p, bias_p)
    return out[:M, :N]


def bottleneck_linears(h_flat, w_enc, b_enc, w_dec, b_dec):
    """PyTorch encode_lin followed by decode_lin_reshape, fused in one kernel.

    h_flat: (B, 40) NCHW-flattened. w_enc: (2, 40). w_dec: (40, 2).
    Returns (B, 40) NCHW-flattened decode output.
    """
    B, F = h_flat.shape
    L = w_enc.shape[0]
    Fo = w_dec.shape[0]
    Bp = _round_up(max(B, 16), 16)
    Fp = _round_up(F, 128)
    Lp = _round_up(L, 128)
    Fop = _round_up(Fo, 128)

    x_p = jnp.pad(h_flat.astype(jnp.bfloat16), ((0, Bp - B), (0, Fp - F)))
    w1 = jnp.pad(w_enc.T.astype(jnp.bfloat16), ((0, Fp - F), (0, Lp - L)))
    b1 = jnp.pad(b_enc.astype(jnp.float32), (0, Lp - L)).reshape(1, Lp)
    w2 = jnp.pad(w_dec.T.astype(jnp.bfloat16), ((0, Lp - L), (0, Fop - Fo)))
    b2 = jnp.pad(b_dec.astype(jnp.float32), (0, Fop - Fo)).reshape(1, Fop)

    cost = pl.CostEstimate(
        flops=2 * Bp * Fp * Lp + 2 * Bp * Lp * Fop,
        transcendentals=0,
        bytes_accessed=2 * (Bp * Fp + Fp * Lp + Lp * Fop) + 4 * (Lp + Fop + Bp * Fop),
    )
    out = pl.pallas_call(
        _mlp2_kernel,
        out_shape=jax.ShapeDtypeStruct((Bp, Fop), jnp.float32),
        cost_estimate=cost,
    )(x_p, w1, b1, w2, b2)
    return out[:B, :Fo]


# ----------------------------------------------------------------------------
# XLA glue: NHWC im2col / dilation / pooling (layout plumbing only)
# ----------------------------------------------------------------------------
def _im2col_nhwc(x, K, stride, padding):
    """x:(B,H,W,C) -> patches:(B*OH*OW, K*K*C), plus OH, OW."""
    B, H, W, C = x.shape
    xp = jnp.pad(x, ((0, 0), (padding, padding), (padding, padding), (0, 0)))
    Hp, Wp = H + 2 * padding, W + 2 * padding
    OH = (Hp - K) // stride + 1
    OW = (Wp - K) // stride + 1
    taps = []
    for kh in range(K):
        for kw in range(K):
            taps.append(
                xp[:, kh:kh + stride * (OH - 1) + 1:stride,
                   kw:kw + stride * (OW - 1) + 1:stride, :]
            )  # (B, OH, OW, C)
    patches = jnp.stack(taps, axis=3)                  # (B, OH, OW, K*K, C)
    patches = patches.reshape(B * OH * OW, K * K * C)
    return patches, OH, OW


def conv2d_nhwc(x, w, b, stride, padding, act):
    """PyTorch-semantics Conv2d on NHWC activations; w:(C_out,C_in,K,K)."""
    B = x.shape[0]
    C_out, C_in, K, _ = w.shape
    patches, OH, OW = _im2col_nhwc(x, K, stride, padding)
    wmat = w.transpose(2, 3, 1, 0).reshape(K * K * C_in, C_out)  # (kh,kw,ci)->co
    y = pallas_matmul_bias(patches, wmat, b, act)                # (B*OH*OW, C_out)
    return y.reshape(B, OH, OW, C_out)


def conv_transpose2d_nhwc(x, w, b, stride, padding, act):
    """PyTorch-semantics ConvTranspose2d on NHWC; w:(C_in,C_out,K,K)."""
    B, H, W, C_in = x.shape
    K = w.shape[2]
    # zero-insertion dilation of the input
    Hd, Wd = (H - 1) * stride + 1, (W - 1) * stride + 1
    xd = jnp.zeros((B, Hd, Wd, C_in), x.dtype).at[:, ::stride, ::stride, :].set(x)
    # flip kernel spatially and swap in/out channels -> ordinary stride-1 conv
    wf = jnp.flip(w, axis=(2, 3)).transpose(1, 0, 2, 3)          # (C_out,C_in,K,K)
    pad = K - 1 - padding
    return conv2d_nhwc(xd, wf, b, stride=1, padding=pad, act=act)


def maxpool2d_nhwc(x, k, stride):
    B, H, W, C = x.shape
    OH = (H - k) // stride + 1
    OW = (W - k) // stride + 1
    out = None
    for kh in range(k):
        for kw in range(k):
            v = x[:, kh:kh + stride * (OH - 1) + 1:stride,
                  kw:kw + stride * (OW - 1) + 1:stride, :]
            out = v if out is None else jnp.maximum(out, v)
    return out


# ----------------------------------------------------------------------------
# Autoencoder forward (mirrors the PyTorch module exactly)
# ----------------------------------------------------------------------------
def init_params(key):
    def u(key, shape, fan_in):
        bound = 1.0 / jnp.sqrt(jnp.float32(fan_in))
        return jax.random.uniform(key, shape, jnp.float32, -bound, bound)

    ks = jax.random.split(key, 14)
    p = {
        # encoder convs
        "c1w": u(ks[0], (32, 1, 3, 3), 1 * 9),   "c1b": u(ks[1], (32,), 1 * 9),
        "c2w": u(ks[2], (10, 32, 3, 3), 32 * 9), "c2b": u(ks[3], (10,), 32 * 9),
        # linear bottleneck
        "elw": u(ks[4], (2, 40), 40),            "elb": u(ks[5], (2,), 40),
        "dlw": u(ks[6], (40, 2), 2),             "dlb": u(ks[7], (40,), 2),
        # decoder transposed convs (PyTorch layout: (C_in, C_out, K, K))
        "d1w": u(ks[8], (10, 16, 3, 3), 10 * 9), "d1b": u(ks[9], (16,), 10 * 9),
        "d2w": u(ks[10], (16, 32, 5, 5), 16 * 25), "d2b": u(ks[11], (32,), 16 * 25),
        "d3w": u(ks[12], (32, 1, 2, 2), 32 * 4), "d3b": u(ks[13], (1,), 32 * 4),
    }
    return p


def autoencoder_forward(x, p):
    relu = lambda y: jnp.maximum(y, 0.0)
    B = x.shape[0]
    h = x.transpose(0, 2, 3, 1)                                        # NCHW -> NHWC
    # ---- encode ----
    h = conv2d_nhwc(h, p["c1w"], p["c1b"], 3, 1, relu)                 # (B,10,10,32)
    h = maxpool2d_nhwc(h, 2, 2)                                        # (B,5,5,32)
    h = conv2d_nhwc(h, p["c2w"], p["c2b"], 2, 1, relu)                 # (B,3,3,10)
    h = maxpool2d_nhwc(h, 2, 1)                                        # (B,2,2,10)
    h_flat = h.transpose(0, 3, 1, 2).reshape(B, -1)                    # PyTorch NCHW flatten
    # ---- bottleneck (encode_lin + decode_lin_reshape fused) ----
    h = bottleneck_linears(h_flat, p["elw"], p["elb"], p["dlw"], p["dlb"])  # (B,40)
    h = h.reshape(B, 10, 2, 2).transpose(0, 2, 3, 1)                   # -> NHWC (B,2,2,10)
    # ---- decode ----
    h = conv_transpose2d_nhwc(h, p["d1w"], p["d1b"], 2, 0, relu)       # (B,5,5,16)
    h = conv_transpose2d_nhwc(h, p["d2w"], p["d2b"], 3, 1, relu)       # (B,15,15,32)
    h = conv_transpose2d_nhwc(h, p["d3w"], p["d3b"], 2, 1, jnp.tanh)   # (B,28,28,1)
    return h.transpose(0, 3, 1, 2)                                     # NHWC -> NCHW


# ----------------------------------------------------------------------------
if __name__ == "__main__":
    key = jax.random.PRNGKey(0)
    pkey, xkey = jax.random.split(key)
    params = init_params(pkey)

    # MNIST-shaped input, small batch
    x = jax.random.uniform(xkey, (2, 1, 28, 28), jnp.float32)

    out = jax.jit(autoencoder_forward)(x, params)
    out = jax.block_until_ready(out)

    assert out.shape == (2, 1, 28, 28), out.shape
    assert out.dtype == jnp.float32
    assert bool(jnp.all(jnp.isfinite(out)))
    assert bool(jnp.all(jnp.abs(out) <= 1.0))  # tanh output range

    print("KERNEL_OK")
</pallas_src>

<mosaic_0001>
module attributes {stable_mosaic.version = 11 : i64} {
  func.func @_mm_bias_act_kernel(%arg0: memref<208x128xbf16, #tpu.memory_space<vmem>>, %arg1: memref<128x128xbf16, #tpu.memory_space<vmem>>, %arg2: memref<1x128xf32, #tpu.memory_space<vmem>>, %arg3: memref<208x128xf32, #tpu.memory_space<vmem>>) attributes {dimension_semantics = [], scalar_prefetch = 0 : i64, scratch_operands = 0 : i64, tpu.core_type = #tpu.core_type<tc>} {
    %c0 = arith.constant 0 : index
    %c0_0 = arith.constant 0 : index
    %0 = vector.load %arg0[%c0, %c0_0] : memref<208x128xbf16, #tpu.memory_space<vmem>>, vector<208x128xbf16>
    %c0_1 = arith.constant 0 : index
    %c0_2 = arith.constant 0 : index
    %1 = vector.load %arg1[%c0_1, %c0_2] : memref<128x128xbf16, #tpu.memory_space<vmem>>, vector<128x128xbf16>
    %cst = arith.constant dense<0.000000e+00> : vector<208x128xf32>
    %2 = tpu.matmul %0, %1, %cst {dimension_numbers = #tpu.dot_dimension_numbers<[1], [0], [0], [1], [0, 0, 1, 1], [], []>} : vector<208x128xbf16>, vector<128x128xbf16>, vector<208x128xf32> -> vector<208x128xf32>
    %c0_3 = arith.constant 0 : index
    %c0_4 = arith.constant 0 : index
    %3 = vector.load %arg2[%c0_3, %c0_4] : memref<1x128xf32, #tpu.memory_space<vmem>>, vector<1x128xf32>
    %4 = vector.broadcast %3 : vector<1x128xf32> to vector<208x128xf32>
    %5 = arith.addf %2, %4 : vector<208x128xf32>
    %cst_5 = arith.constant 0.000000e+00 : f32
    %6 = vector.broadcast %cst_5 : f32 to vector<208x128xf32>
    %7 = arith.maximumf %5, %6 : vector<208x128xf32>
    %c0_6 = arith.constant 0 : index
    %c0_7 = arith.constant 0 : index
    %8 = vector.load %arg3[%c0_6, %c0_7] : memref<208x128xf32, #tpu.memory_space<vmem>>, vector<208x128xf32>
    tpu.vector_store %arg3[%c0_6, %c0_7], %7 {strides = array<i32>} : memref<208x128xf32, #tpu.memory_space<vmem>>, vector<208x128xf32>,
    return
  }
}

module attributes {stable_mosaic.version = 11 : i64} {
  func.func @_mm_bias_act_kernel(%arg0: memref<32x384xbf16, #tpu.memory_space<vmem>>, %arg1: memref<384x128xbf16, #tpu.memory_space<vmem>>, %arg2: memref<1x128xf32, #tpu.memory_space<vmem>>, %arg3: memref<32x128xf32, #tpu.memory_space<vmem>>) attributes {dimension_semantics = [], scalar_prefetch = 0 : i64, scratch_operands = 0 : i64, tpu.core_type = #tpu.core_type<tc>} {
    %c0 = arith.constant 0 : index
    %c0_0 = arith.constant 0 : index
    %0 = vector.load %arg0[%c0, %c0_0] : memref<32x384xbf16, #tpu.memory_space<vmem>>, vector<32x384xbf16>
    %c0_1 = arith.constant 0 : index
    %c0_2 = arith.constant 0 : index
    %1 = vector.load %arg1[%c0_1, %c0_2] : memref<384x128xbf16, #tpu.memory_space<vmem>>, vector<384x128xbf16>
    %cst = arith.constant dense<0.000000e+00> : vector<32x128xf32>
    %2 = tpu.matmul %0, %1, %cst {dimension_numbers = #tpu.dot_dimension_numbers<[1], [0], [0], [1], [0, 0, 1, 1], [], []>} : vector<32x384xbf16>, vector<384x128xbf16>, vector<32x128xf32> -> vector<32x128xf32>
    %c0_3 = arith.constant 0 : index
    %c0_4 = arith.constant 0 : index
    %3 = vector.load %arg2[%c0_3, %c0_4] : memref<1x128xf32, #tpu.memory_space<vmem>>, vector<1x128xf32>
    %4 = vector.broadcast %3 : vector<1x128xf32> to vector<32x128xf32>
    %5 = arith.addf %2, %4 : vector<32x128xf32>
    %cst_5 = arith.constant 0.000000e+00 : f32
    %6 = vector.broadcast %cst_5 : f32 to vector<32x128xf32>
    %7 = arith.maximumf %5, %6 : vector<32x128xf32>
    %c0_6 = arith.constant 0 : index
    %c0_7 = arith.constant 0 : index
    %8 = vector.load %arg3[%c0_6, %c0_7] : memref<32x128xf32, #tpu.memory_space<vmem>>, vector<32x128xf32>
    tpu.vector_store %arg3[%c0_6, %c0_7], %7 {strides = array<i32>} : memref<32x128xf32, #tpu.memory_space<vmem>>, vector<32x128xf32>,
    return
  }
}

module attributes {stable_mosaic.version = 11 : i64} {
  func.func @_mlp2_kernel(%arg0: memref<16x128xbf16, #tpu.memory_space<vmem>>, %arg1: memref<128x128xbf16, #tpu.memory_space<vmem>>, %arg2: memref<1x128xf32, #tpu.memory_space<vmem>>, %arg3: memref<128x128xbf16, #tpu.memory_space<vmem>>, %arg4: memref<1x128xf32, #tpu.memory_space<vmem>>, %arg5: memref<16x128xf32, #tpu.memory_space<vmem>>) attributes {dimension_semantics = [], scalar_prefetch = 0 : i64, scratch_operands = 0 : i64, tpu.core_type = #tpu.core_type<tc>} {
    %c0 = arith.constant 0 : index
    %c0_0 = arith.constant 0 : index
    %0 = vector.load %arg0[%c0, %c0_0] : memref<16x128xbf16, #tpu.memory_space<vmem>>, vector<16x128xbf16>
    %c0_1 = arith.constant 0 : index
    %c0_2 = arith.constant 0 : index
    %1 = vector.load %arg1[%c0_1, %c0_2] : memref<128x128xbf16, #tpu.memory_space<vmem>>, vector<128x128xbf16>
    %cst = arith.constant dense<0.000000e+00> : vector<16x128xf32>
    %2 = tpu.matmul %0, %1, %cst {dimension_numbers = #tpu.dot_dimension_numbers<[1], [0], [0], [1], [0, 0, 1, 1], [], []>} : vector<16x128xbf16>, vector<128x128xbf16>, vector<16x128xf32> -> vector<16x128xf32>
    %c0_3 = arith.constant 0 : index
    %c0_4 = arith.constant 0 : index
    %3 = vector.load %arg2[%c0_3, %c0_4] : memref<1x128xf32, #tpu.memory_space<vmem>>, vector<1x128xf32>
    %4 = vector.broadcast %3 : vector<1x128xf32> to vector<16x128xf32>
    %5 = arith.addf %2, %4 : vector<16x128xf32>
    %6 = arith.truncf %5 : vector<16x128xf32> to vector<16x128xbf16>
    %c0_5 = arith.constant 0 : index
    %c0_6 = arith.constant 0 : index
    %7 = vector.load %arg3[%c0_5, %c0_6] : memref<128x128xbf16, #tpu.memory_space<vmem>>, vector<128x128xbf16>
    %cst_7 = arith.constant dense<0.000000e+00> : vector<16x128xf32>
    %8 = tpu.matmul %6, %7, %cst_7 {dimension_numbers = #tpu.dot_dimension_numbers<[1], [0], [0], [1], [0, 0, 1, 1], [], []>} : vector<16x128xbf16>, vector<128x128xbf16>, vector<16x128xf32> -> vector<16x128xf32>
    %c0_8 = arith.constant 0 : index
    %c0_9 = arith.constant 0 : index
    %9 = vector.load %arg4[%c0_8, %c0_9] : memref<1x128xf32, #tpu.memory_space<vmem>>, vector<1x128xf32>
    %10 = vector.broadcast %9 : vector<1x128xf32> to vector<16x128xf32>
    %11 = arith.addf %8, %10 : vector<16x128xf32>
    %c0_10 = arith.constant 0 : index
    %c0_11 = arith.constant 0 : index
    %12 = vector.load %arg5[%c0_10, %c0_11] : memref<16x128xf32, #tpu.memory_space<vmem>>, vector<16x128xf32>
    tpu.vector_store %arg5[%c0_10, %c0_11], %11 {strides = array<i32>} : memref<16x128xf32, #tpu.memory_space<vmem>>, vector<16x128xf32>,
    return
  }
}

module attributes {stable_mosaic.version = 11 : i64} {
  func.func @_mm_bias_act_kernel(%arg0: memref<64x128xbf16, #tpu.memory_space<vmem>>, %arg1: memref<128x128xbf16, #tpu.memory_space<vmem>>, %arg2: memref<1x128xf32, #tpu.memory_space<vmem>>, %arg3: memref<64x128xf32, #tpu.memory_space<vmem>>) attributes {dimension_semantics = [], scalar_prefetch = 0 : i64, scratch_operands = 0 : i64, tpu.core_type = #tpu.core_type<tc>} {
    %c0 = arith.constant 0 : index
    %c0_0 = arith.constant 0 : index
    %0 = vector.load %arg0[%c0, %c0_0] : memref<64x128xbf16, #tpu.memory_space<vmem>>, vector<64x128xbf16>
    %c0_1 = arith.constant 0 : index
    %c0_2 = arith.constant 0 : index
    %1 = vector.load %arg1[%c0_1, %c0_2] : memref<128x128xbf16, #tpu.memory_space<vmem>>, vector<128x128xbf16>
    %cst = arith.constant dense<0.000000e+00> : vector<64x128xf32>
    %2 = tpu.matmul %0, %1, %cst {dimension_numbers = #tpu.dot_dimension_numbers<[1], [0], [0], [1], [0, 0, 1, 1], [], []>} : vector<64x128xbf16>, vector<128x128xbf16>, vector<64x128xf32> -> vector<64x128xf32>
    %c0_3 = arith.constant 0 : index
    %c0_4 = arith.constant 0 : index
    %3 = vector.load %arg2[%c0_3, %c0_4] : memref<1x128xf32, #tpu.memory_space<vmem>>, vector<1x128xf32>
    %4 = vector.broadcast %3 : vector<1x128xf32> to vector<64x128xf32>
    %5 = arith.addf %2, %4 : vector<64x128xf32>
    %cst_5 = arith.constant 0.000000e+00 : f32
    %6 = vector.broadcast %cst_5 : f32 to vector<64x128xf32>
    %7 = arith.maximumf %5, %6 : vector<64x128xf32>
    %c0_6 = arith.constant 0 : index
    %c0_7 = arith.constant 0 : index
    %8 = vector.load %arg3[%c0_6, %c0_7] : memref<64x128xf32, #tpu.memory_space<vmem>>, vector<64x128xf32>
    tpu.vector_store %arg3[%c0_6, %c0_7], %7 {strides = array<i32>} : memref<64x128xf32, #tpu.memory_space<vmem>>, vector<64x128xf32>,
    return
  }
}

module attributes {stable_mosaic.version = 11 : i64} {
  func.func @_mm_bias_act_kernel(%arg0: memref<464x512xbf16, #tpu.memory_space<vmem>>, %arg1: memref<512x128xbf16, #tpu.memory_space<vmem>>, %arg2: memref<1x128xf32, #tpu.memory_space<vmem>>, %arg3: memref<464x128xf32, #tpu.memory_space<vmem>>) attributes {dimension_semantics = [], scalar_prefetch = 0 : i64, scratch_operands = 0 : i64, tpu.core_type = #tpu.core_type<tc>} {
    %c0 = arith.constant 0 : index
    %c0_0 = arith.constant 0 : index
    %0 = vector.load %arg0[%c0, %c0_0] : memref<464x512xbf16, #tpu.memory_space<vmem>>, vector<464x512xbf16>
    %c0_1 = arith.constant 0 : index
    %c0_2 = arith.constant 0 : index
    %1 = vector.load %arg1[%c0_1, %c0_2] : memref<512x128xbf16, #tpu.memory_space<vmem>>, vector<512x128xbf16>
    %cst = arith.constant dense<0.000000e+00> : vector<464x128xf32>
    %2 = tpu.matmul %0, %1, %cst {dimension_numbers = #tpu.dot_dimension_numbers<[1], [0], [0], [1], [0, 0, 1, 1], [], []>} : vector<464x512xbf16>, vector<512x128xbf16>, vector<464x128xf32> -> vector<464x128xf32>
    %c0_3 = arith.constant 0 : index
    %c0_4 = arith.constant 0 : index
    %3 = vector.load %arg2[%c0_3, %c0_4] : memref<1x128xf32, #tpu.memory_space<vmem>>, vector<1x128xf32>
    %4 = vector.broadcast %3 : vector<1x128xf32> to vector<464x128xf32>
    %5 = arith.addf %2, %4 : vector<464x128xf32>
    %cst_5 = arith.constant 0.000000e+00 : f32
    %6 = vector.broadcast %cst_5 : f32 to vector<464x128xf32>
    %7 = arith.maximumf %5, %6 : vector<464x128xf32>
    %c0_6 = arith.constant 0 : index
    %c0_7 = arith.constant 0 : index
    %8 = vector.load %arg3[%c0_6, %c0_7] : memref<464x128xf32, #tpu.memory_space<vmem>>, vector<464x128xf32>
    tpu.vector_store %arg3[%c0_6, %c0_7], %7 {strides = array<i32>} : memref<464x128xf32, #tpu.memory_space<vmem>>, vector<464x128xf32>,
    return
  }
}

module attributes {stable_mosaic.version = 11 : i64} {
  func.func @_mm_bias_act_kernel(%arg0: memref<1568x128xbf16, #tpu.memory_space<vmem>>, %arg1: memref<128x128xbf16, #tpu.memory_space<vmem>>, %arg2: memref<1x128xf32, #tpu.memory_space<vmem>>, %arg3: memref<1568x128xf32, #tpu.memory_space<vmem>>) attributes {dimension_semantics = [], scalar_prefetch = 0 : i64, scratch_operands = 0 : i64, tpu.core_type = #tpu.core_type<tc>} {
    %c0 = arith.constant 0 : index
    %c0_0 = arith.constant 0 : index
    %0 = vector.load %arg0[%c0, %c0_0] : memref<1568x128xbf16, #tpu.memory_space<vmem>>, vector<1568x128xbf16>
    %c0_1 = arith.constant 0 : index
    %c0_2 = arith.constant 0 : index
    %1 = vector.load %arg1[%c0_1, %c0_2] : memref<128x128xbf16, #tpu.memory_space<vmem>>, vector<128x128xbf16>
    %cst = arith.constant dense<0.000000e+00> : vector<1568x128xf32>
    %2 = tpu.matmul %0, %1, %cst {dimension_numbers = #tpu.dot_dimension_numbers<[1], [0], [0], [1], [0, 0, 1, 1], [], []>} : vector<1568x128xbf16>, vector<128x128xbf16>, vector<1568x128xf32> -> vector<1568x128xf32>
    %c0_3 = arith.constant 0 : index
    %c0_4 = arith.constant 0 : index
    %3 = vector.load %arg2[%c0_3, %c0_4] : memref<1x128xf32, #tpu.memory_space<vmem>>, vector<1x128xf32>
    %4 = vector.broadcast %3 : vector<1x128xf32> to vector<1568x128xf32>
    %5 = arith.addf %2, %4 : vector<1568x128xf32>
    %6 = math.tanh %5 : vector<1568x128xf32>
    %c0_5 = arith.constant 0 : index
    %c0_6 = arith.constant 0 : index
    %7 = vector.load %arg3[%c0_5, %c0_6] : memref<1568x128xf32, #tpu.memory_space<vmem>>, vector<1568x128xf32>
    tpu.vector_store %arg3[%c0_5, %c0_6], %6 {strides = array<i32>} : memref<1568x128xf32, #tpu.memory_space<vmem>>, vector<1568x128xf32>,
    return
  }
}

</mosaic_0001>

<llo_original>
// kernel: autoencoder_forward.6
$region0: #{autoencoder_forward.6}
  #allocation0 [shape = 'u32[]', space=smem, size = 0x4, offset = 0x4, fixed_abs, tag = 'smem constant byte address 0x4 - core index']
  #allocation1 [shape = 'u32[72,128]{1,0:T(1,128)}', space=vmem, size = 0x9000, scoped, tag = 'internal scratch']
  %s0 = inlined_call_operand.vmem [shape: bf16[208,128], index: 0, kind: input, shape index: {}]
  %s1 = inlined_call_operand.vmem [shape: bf16[128,128], index: 1, kind: input, shape index: {}]
  %s2 = inlined_call_operand.vmem [shape: f32[1,128], index: 2, kind: input, shape index: {}]
  %s3 = inlined_call_operand.vmem [shape: f32[208,128], index: 3, kind: output, shape index: {}]
  %s4 = sld [smem:[#allocation0]]
  $region22: #{autoencoder_forward.6} parent=0
    _
  %s6 = ssub.s32 1, %s4
  %s7 = scalar_select 0, %s6, %s4
  // Predicated region
  $region2: #{autoencoder_forward.6} parent=0 // pred_check
    _
  $region3: #{autoencoder_forward.6} parent=0 // pred_check_branch
    %9 = sbr.rel (0) target = $region5
  $region4: #{autoencoder_forward.6} parent=0 // pred_region
    _
  $region5: #{autoencoder_forward.6} parent=0 // pred_fallthru
    _
  // Predicated region
  $region6: #{autoencoder_forward.6} parent=0 // pred_check
    _
  $region7: #{autoencoder_forward.6} parent=0 // pred_check_branch
    %11 = sbr.rel (0) target = $region9
  $region8: #{autoencoder_forward.6} parent=0 // pred_region
    _
  $region9: #{autoencoder_forward.6} parent=0 // pred_fallthru
    _
  // Predicated region
  $region10: #{autoencoder_forward.6} parent=0 // pred_check
    _
  $region11: #{autoencoder_forward.6} parent=0 // pred_check_branch
    %13 = sbr.rel (0) target = $region13
  $region12: #{autoencoder_forward.6} parent=0 // pred_region
    _
  $region13: #{autoencoder_forward.6} parent=0 // pred_fallthru
    _
  %v14 = vld [vmem:[%s0] sm:$0xf]
  %v15 = vld [vmem:[%s0 + $0x4] sm:$0xf]
  %v16 = vld [vmem:[%s0 + $0x8] sm:$0xf]
  %v17 = vld [vmem:[%s0 + $0xc] sm:$0xf]
  %v18 = vld [vmem:[%s0 + $0x10] sm:$0xf]
  %v19 = vld [vmem:[%s0 + $0x14] sm:$0xf]
  %v20 = vld [vmem:[%s0 + $0x18] sm:$0xf]
  %v21 = vld [vmem:[%s0 + $0x1c] sm:$0xf]
  %v22 = vld [vmem:[%s0 + $0x20] sm:$0xf]
  %v23 = vld [vmem:[%s0 + $0x24] sm:$0xf]
  %v24 = vld [vmem:[%s0 + $0x28] sm:$0xf]
  %v25 = vld [vmem:[%s0 + $0x2c] sm:$0xf]
  %v26 = vld [vmem:[%s0 + $0x30] sm:$0xf]
  %v27 = vld [vmem:[%s0 + $0x34] sm:$0xf]
  %v28 = vld [vmem:[%s0 + $0x38] sm:$0xf]
  %v29 = vld [vmem:[%s0 + $0x3c] sm:$0xf]
  %v30 = vld [vmem:[%s0 + $0x40] sm:$0xf]
  %v31 = vld [vmem:[%s0 + $0x44] sm:$0xf]
  %v32 = vld [vmem:[%s0 + $0x48] sm:$0xf]
  %v33 = vld [vmem:[%s0 + $0x4c] sm:$0xf]
  %v34 = vld [vmem:[%s0 + $0x50] sm:$0xf]
  %v35 = vld [vmem:[%s0 + $0x54] sm:$0xf]
  %v36 = vld [vmem:[%s0 + $0x58] sm:$0xf]
  %v37 = vld [vmem:[%s0 + $0x5c] sm:$0xf]
  %v38 = vld [vmem:[%s0 + $0x60] sm:$0xf]
  %v39 = vld [vmem:[%s0 + $0x64] sm:$0xf]
  %v40 = vld [vmem:[%s1] sm:$0xf]
  %v41 = vld [vmem:[%s1 + $0x4] sm:$0xf]
  %v42 = vld [vmem:[%s1 + $0x8] sm:$0xf]
  %v43 = vld [vmem:[%s1 + $0xc] sm:$0xf]
  %v44 = vld [vmem:[%s1 + $0x10] sm:$0xf]
  %v45 = vld [vmem:[%s1 + $0x14] sm:$0xf]
  %v46 = vld [vmem:[%s1 + $0x18] sm:$0xf]
  %v47 = vld [vmem:[%s1 + $0x1c] sm:$0xf]
  %v48 = vld [vmem:[%s1 + $0x20] sm:$0xf]
  %v49 = vld [vmem:[%s1 + $0x24] sm:$0xf]
  %v50 = vld [vmem:[%s1 + $0x28] sm:$0xf]
  %v51 = vld [vmem:[%s1 + $0x2c] sm:$0xf]
  %v52 = vld [vmem:[%s1 + $0x30] sm:$0xf]
  %v53 = vld [vmem:[%s1 + $0x34] sm:$0xf]
  %v54 = vld [vmem:[%s1 + $0x38] sm:$0xf]
  %v55 = vld [vmem:[%s1 + $0x3c] sm:$0xf]
  %v56 = vld [vmem:[%s2] sm:$0x1]
  %v58 = vperm.slane %v56, 0
  %v86 = vunpack.c.l.b16 %v14
  %v87 = vunpack.c.l.b16 %v15
  %v88 = vunpack.c.l.b16 %v16
  %v89 = vunpack.c.l.b16 %v17
  %v90 = vunpack.c.l.b16 %v18
  %v91 = vunpack.c.l.b16 %v19
  %v92 = vunpack.c.l.b16 %v20
  %v93 = vunpack.c.l.b16 %v21
  %v94 = vunpack.c.l.b16 %v22
  %v95 = vunpack.c.l.b16 %v23
  %v96 = vunpack.c.l.b16 %v24
  %v97 = vunpack.c.l.b16 %v25
  %v98 = vunpack.c.l.b16 %v26
  %v99 = vunpack.c.l.b16 %v27
  %v100 = vunpack.c.l.b16 %v28
  %v101 = vunpack.c.l.b16 %v29
  %v102 = vunpack.c.l.b16 %v30
  %v103 = vunpack.c.l.b16 %v31
  %v104 = vunpack.c.l.b16 %v32
  %v105 = vunpack.c.l.b16 %v33
  %v106 = vunpack.c.l.b16 %v34
  %v107 = vunpack.c.l.b16 %v35
  %v108 = vunpack.c.l.b16 %v36
  %v109 = vunpack.c.l.b16 %v37
  %v110 = vunpack.c.l.b16 %v38
  %v111 = vunpack.c.l.b16 %v39
  %v112 = vpack.c.b16 %v87, %v86
  %v113 = vpack.c.b16 %v89, %v88
  %v114 = vpack.c.b16 %v91, %v90
  %v115 = vpack.c.b16 %v93, %v92
  %v116 = vpack.c.b16 %v95, %v94
  %v117 = vpack.c.b16 %v97, %v96
  %v118 = vpack.c.b16 %v99, %v98
  %v119 = vpack.c.b16 %v101, %v100
  %v120 = vpack.c.b16 %v103, %v102
  %v121 = vpack.c.b16 %v105, %v104
  %v122 = vpack.c.b16 %v107, %v106
  %v123 = vpack.c.b16 %v109, %v108
  %v124 = vpack.c.b16 %v111, %v110
  %v154 = vunpack.c.l.b16 %v40
  %v155 = vunpack.c.l.b16 %v41
  %v156 = vunpack.c.l.b16 %v42
  %v157 = vunpack.c.l.b16 %v43
  %v158 = vunpack.c.l.b16 %v44
  %v159 = vunpack.c.l.b16 %v45
  %v160 = vunpack.c.l.b16 %v46
  %v161 = vunpack.c.l.b16 %v47
  %v162 = vunpack.c.l.b16 %v48
  %v163 = vunpack.c.l.b16 %v49
  %v164 = vunpack.c.l.b16 %v50
  %v165 = vunpack.c.l.b16 %v51
  %v166 = vunpack.c.l.b16 %v52
  %v167 = vunpack.c.l.b16 %v53
  %v168 = vunpack.c.l.b16 %v54
  %v169 = vunpack.c.l.b16 %v55
  %v170 = vpack.c.b16 %v155, %v154
  %v171 = vpack.c.b16 %v157, %v156
  %v172 = vpack.c.b16 %v159, %v158
  %v173 = vpack.c.b16 %v161, %v160
  %v174 = vpack.c.b16 %v163, %v162
  %v175 = vpack.c.b16 %v165, %v164
  %v176 = vpack.c.b16 %v167, %v166
  %v177 = vpack.c.b16 %v169, %v168
  %186 = vmatpush.bf16.msra.mxu0 %v177
  %187 = vmatpush.bf16.msra.mxu0 %v176
  %188 = vmatpush.bf16.msra.mxu0 %v175
  %189 = vmatpush.bf16.msra.mxu0 %v174
  %190 = vmatpush.bf16.msra.mxu0 %v173
  %191 = vmatpush.bf16.msra.mxu0 %v172
  %192 = vmatpush.bf16.msra.mxu0 %v171
  %193 = vmatpush.bf16.msra.mxu0 %v170
  %194 = vmatmul.bf16.gmra.mxu0 %v112
  %v195 = vpop.f32.mrf.mxu0
  %v196 = vadd.f32 %v58, %v195
  %v197 = vpop.f32.mrf.mxu0
  %v198 = vadd.f32 %v58, %v197
  %199 = vmatmul.bf16.gmra.mxu0 %v113
  %v200 = vpop.f32.mrf.mxu0
  %v201 = vadd.f32 %v58, %v200
  %v202 = vpop.f32.mrf.mxu0
  %v203 = vadd.f32 %v58, %v202
  %204 = vmatmul.bf16.gmra.mxu0 %v114
  %v205 = vpop.f32.mrf.mxu0
  %v206 = vadd.f32 %v58, %v205
  %v207 = vpop.f32.mrf.mxu0
  %v208 = vadd.f32 %v58, %v207
  %209 = vmatmul.bf16.gmra.mxu0 %v115
  %v210 = vpop.f32.mrf.mxu0
  %v211 = vadd.f32 %v58, %v210
  %v212 = vpop.f32.mrf.mxu0
  %v213 = vadd.f32 %v58, %v212
  %214 = vmatmul.bf16.gmra.mxu0 %v116
  %v215 = vpop.f32.mrf.mxu0
  %v216 = vadd.f32 %v58, %v215
  %v217 = vpop.f32.mrf.mxu0
  %v218 = vadd.f32 %v58, %v217
  %219 = vmatmul.bf16.gmra.mxu0 %v117
  %v220 = vpop.f32.mrf.mxu0
  %v221 = vadd.f32 %v58, %v220
  %v222 = vpop.f32.mrf.mxu0
  %v223 = vadd.f32 %v58, %v222
  %224 = vmatmul.bf16.gmra.mxu0 %v118
  %v225 = vpop.f32.mrf.mxu0
  %v226 = vadd.f32 %v58, %v225
  %v227 = vpop.f32.mrf.mxu0
  %v228 = vadd.f32 %v58, %v227
  %229 = vmatmul.bf16.gmra.mxu0 %v119
  %v230 = vpop.f32.mrf.mxu0
  %v231 = vadd.f32 %v58, %v230
  %v232 = vpop.f32.mrf.mxu0
  %v233 = vadd.f32 %v58, %v232
  %234 = vmatmul.bf16.gmra.mxu0 %v120
  %v235 = vpop.f32.mrf.mxu0
  %v236 = vadd.f32 %v58, %v235
  %v237 = vpop.f32.mrf.mxu0
  %v238 = vadd.f32 %v58, %v237
  %239 = vmatmul.bf16.gmra.mxu0 %v121
  %v240 = vpop.f32.mrf.mxu0
  %v241 = vadd.f32 %v58, %v240
  %v242 = vpop.f32.mrf.mxu0
  %v243 = vadd.f32 %v58, %v242
  %244 = vmatmul.bf16.gmra.mxu0 %v122
  %v245 = vpop.f32.mrf.mxu0
  %v246 = vadd.f32 %v58, %v245
  %v247 = vpop.f32.mrf.mxu0
  %v248 = vadd.f32 %v58, %v247
  %249 = vmatmul.bf16.gmra.mxu0 %v123
  %v250 = vpop.f32.mrf.mxu0
  %v251 = vadd.f32 %v58, %v250
  %v252 = vpop.f32.mrf.mxu0
  %v253 = vadd.f32 %v58, %v252
  %254 = vmatmul.bf16.gmra.mxu0 %v124
  %v255 = vpop.f32.mrf.mxu0
  %v256 = vadd.f32 %v58, %v255
  %v257 = vpop.f32.mrf.mxu0
  %v258 = vadd.f32 %v58, %v257
  %259 = vdwg.mxu0
  %v260 = vmax.f32 %v196, 0.0
  %v261 = vmax.f32 %v198, 0.0
  %v262 = vmax.f32 %v201, 0.0
  %v263 = vmax.f32 %v203, 0.0
  %v264 = vmax.f32 %v206, 0.0
  %v265 = vmax.f32 %v208, 0.0
  %v266 = vmax.f32 %v211, 0.0
  %v267 = vmax.f32 %v213, 0.0
  %v268 = vmax.f32 %v216, 0.0
  %v269 = vmax.f32 %v218, 0.0
  %v270 = vmax.f32 %v221, 0.0
  %v271 = vmax.f32 %v223, 0.0
  %v272 = vmax.f32 %v226, 0.0
  %v273 = vmax.f32 %v228, 0.0
  %v274 = vmax.f32 %v231, 0.0
  %v275 = vmax.f32 %v233, 0.0
  %v276 = vmax.f32 %v236, 0.0
  %v277 = vmax.f32 %v238, 0.0
  %v278 = vmax.f32 %v241, 0.0
  %v279 = vmax.f32 %v243, 0.0
  %v280 = vmax.f32 %v246, 0.0
  %v281 = vmax.f32 %v248, 0.0
  %v282 = vmax.f32 %v251, 0.0
  %v283 = vmax.f32 %v253, 0.0
  %v284 = vmax.f32 %v256, 0.0
  %v285 = vmax.f32 %v258, 0.0
  %286 = vst [vmem:[%s3] sm:$0xff] %v260
  %287 = vst [vmem:[%s3 + $0x8] sm:$0xff] %v261
  %288 = vst [vmem:[%s3 + $0x10] sm:$0xff] %v262
  %289 = vst [vmem:[%s3 + $0x18] sm:$0xff] %v263
  %290 = vst [vmem:[%s3 + $0x20] sm:$0xff] %v264
  %291 = vst [vmem:[%s3 + $0x28] sm:$0xff] %v265
  %292 = vst [vmem:[%s3 + $0x30] sm:$0xff] %v266
  %293 = vst [vmem:[%s3 + $0x38] sm:$0xff] %v267
  %294 = vst [vmem:[%s3 + $0x40] sm:$0xff] %v268
  %295 = vst [vmem:[%s3 + $0x48] sm:$0xff] %v269
  %296 = vst [vmem:[%s3 + $0x50] sm:$0xff] %v270
  %297 = vst [vmem:[%s3 + $0x58] sm:$0xff] %v271
  %298 = vst [vmem:[%s3 + $0x60] sm:$0xff] %v272
  %299 = vst [vmem:[%s3 + $0x68] sm:$0xff] %v273
  %300 = vst [vmem:[%s3 + $0x70] sm:$0xff] %v274
  %301 = vst [vmem:[%s3 + $0x78] sm:$0xff] %v275
  %302 = vst [vmem:[%s3 + $0x80] sm:$0xff] %v276
  %303 = vst [vmem:[%s3 + $0x88] sm:$0xff] %v277
  %304 = vst [vmem:[%s3 + $0x90] sm:$0xff] %v278
  %305 = vst [vmem:[%s3 + $0x98] sm:$0xff] %v279
  %306 = vst [vmem:[%s3 + $0xa0] sm:$0xff] %v280
  %307 = vst [vmem:[%s3 + $0xa8] sm:$0xff] %v281
  %308 = vst [vmem:[%s3 + $0xb0] sm:$0xff] %v282
  %309 = vst [vmem:[%s3 + $0xb8] sm:$0xff] %v283
  %310 = vst [vmem:[%s3 + $0xc0] sm:$0xff] %v284
  %311 = vst [vmem:[%s3 + $0xc8] sm:$0xff] %v285
  // Predicated region
  $region14: #{autoencoder_forward.6} parent=0 // pred_check
    _
  $region15: #{autoencoder_forward.6} parent=0 // pred_check_branch
    %313 = sbr.rel (0) target = $region17
  $region16: #{autoencoder_forward.6} parent=0 // pred_region
    _
  $region17: #{autoencoder_forward.6} parent=0 // pred_fallthru
    _
  // Predicated region
  $region18: #{autoencoder_forward.6} parent=0 // pred_check
    _
  $region19: #{autoencoder_forward.6} parent=0 // pred_check_branch
    %315 = sbr.rel (0) target = $region21
  $region20: #{autoencoder_forward.6} parent=0 // pred_region
    _
  $region21: #{autoencoder_forward.6} parent=0 // pred_fallthru
    _

// kernel: autoencoder_forward.7
$region0: #{autoencoder_forward.7}
  #allocation0 [shape = 'u32[]', space=smem, size = 0x4, offset = 0x4, fixed_abs, tag = 'smem constant byte address 0x4 - core index']
  #allocation1 [shape = 'u32[72,128]{1,0:T(1,128)}', space=vmem, size = 0x9000, scoped, tag = 'internal scratch']
  %s0 = inlined_call_operand.vmem [shape: bf16[32,384], index: 0, kind: input, shape index: {}]
  %s1 = inlined_call_operand.vmem [shape: bf16[384,128], index: 1, kind: input, shape index: {}]
  %s2 = inlined_call_operand.vmem [shape: f32[1,128], index: 2, kind: input, shape index: {}]
  %s3 = inlined_call_operand.vmem [shape: f32[32,128], index: 3, kind: output, shape index: {}]
  %s4 = sld [smem:[#allocation0]]
  $region22: #{autoencoder_forward.7} parent=0
    _
  %s6 = ssub.s32 1, %s4
  %s7 = scalar_select 0, %s6, %s4
  // Predicated region
  $region2: #{autoencoder_forward.7} parent=0 // pred_check
    _
  $region3: #{autoencoder_forward.7} parent=0 // pred_check_branch
    %9 = sbr.rel (0) target = $region5
  $region4: #{autoencoder_forward.7} parent=0 // pred_region
    _
  $region5: #{autoencoder_forward.7} parent=0 // pred_fallthru
    _
  // Predicated region
  $region6: #{autoencoder_forward.7} parent=0 // pred_check
    _
  $region7: #{autoencoder_forward.7} parent=0 // pred_check_branch
    %11 = sbr.rel (0) target = $region9
  $region8: #{autoencoder_forward.7} parent=0 // pred_region
    _
  $region9: #{autoencoder_forward.7} parent=0 // pred_fallthru
    _
  // Predicated region
  $region10: #{autoencoder_forward.7} parent=0 // pred_check
    _
  $region11: #{autoencoder_forward.7} parent=0 // pred_check_branch
    %13 = sbr.rel (0) target = $region13
  $region12: #{autoencoder_forward.7} parent=0 // pred_region
    _
  $region13: #{autoencoder_forward.7} parent=0 // pred_fallthru
    _
  %v14 = vld [vmem:[%s0] sm:$0xff]
  %v15 = vld [vmem:[%s0 + $0x8] sm:$0xf]
  %v16 = vld [vmem:[%s0 + $0xc] sm:$0xff]
  %v17 = vld [vmem:[%s0 + $0x14] sm:$0xf]
  %v18 = vld [vmem:[%s0 + $0x18] sm:$0xff]
  %v19 = vld [vmem:[%s0 + $0x20] sm:$0xf]
  %v20 = vld [vmem:[%s0 + $0x24] sm:$0xff]
  %v21 = vld [vmem:[%s0 + $0x2c] sm:$0xf]
  %v22 = vld [vmem:[%s1] sm:$0xf]
  %v23 = vld [vmem:[%s1 + $0x4] sm:$0xf]
  %v24 = vld [vmem:[%s1 + $0x8] sm:$0xf]
  %v25 = vld [vmem:[%s1 + $0xc] sm:$0xf]
  %v26 = vld [vmem:[%s1 + $0x10] sm:$0xf]
  %v27 = vld [vmem:[%s1 + $0x14] sm:$0xf]
  %v28 = vld [vmem:[%s1 + $0x18] sm:$0xf]
  %v29 = vld [vmem:[%s1 + $0x1c] sm:$0xf]
  %v30 = vld [vmem:[%s1 + $0x20] sm:$0xf]
  %v31 = vld [vmem:[%s1 + $0x24] sm:$0xf]
  %v32 = vld [vmem:[%s1 + $0x28] sm:$0xf]
  %v33 = vld [vmem:[%s1 + $0x2c] sm:$0xf]
  %v34 = vld [vmem:[%s1 + $0x30] sm:$0xf]
  %v35 = vld [vmem:[%s1 + $0x34] sm:$0xf]
  %v36 = vld [vmem:[%s1 + $0x38] sm:$0xf]
  %v37 = vld [vmem:[%s1 + $0x3c] sm:$0xf]
  %v38 = vld [vmem:[%s1 + $0x40] sm:$0xf]
  %v39 = vld [vmem:[%s1 + $0x44] sm:$0xf]
  %v40 = vld [vmem:[%s1 + $0x48] sm:$0xf]
  %v41 = vld [vmem:[%s1 + $0x4c] sm:$0xf]
  %v42 = vld [vmem:[%s1 + $0x50] sm:$0xf]
  %v43 = vld [vmem:[%s1 + $0x54] sm:$0xf]
  %v44 = vld [vmem:[%s1 + $0x58] sm:$0xf]
  %v45 = vld [vmem:[%s1 + $0x5c] sm:$0xf]
  %v46 = vld [vmem:[%s1 + $0x60] sm:$0xf]
  %v47 = vld [vmem:[%s1 + $0x64] sm:$0xf]
  %v48 = vld [vmem:[%s1 + $0x68] sm:$0xf]
  %v49 = vld [vmem:[%s1 + $0x6c] sm:$0xf]
  %v50 = vld [vmem:[%s1 + $0x70] sm:$0xf]
  %v51 = vld [vmem:[%s1 + $0x74] sm:$0xf]
  %v52 = vld [vmem:[%s1 + $0x78] sm:$0xf]
  %v53 = vld [vmem:[%s1 + $0x7c] sm:$0xf]
  %v54 = vld [vmem:[%s1 + $0x80] sm:$0xf]
  %v55 = vld [vmem:[%s1 + $0x84] sm:$0xf]
  %v56 = vld [vmem:[%s1 + $0x88] sm:$0xf]
  %v57 = vld [vmem:[%s1 + $0x8c] sm:$0xf]
  %v58 = vld [vmem:[%s1 + $0x90] sm:$0xf]
  %v59 = vld [vmem:[%s1 + $0x94] sm:$0xf]
  %v60 = vld [vmem:[%s1 + $0x98] sm:$0xf]
  %v61 = vld [vmem:[%s1 + $0x9c] sm:$0xf]
  %v62 = vld [vmem:[%s1 + $0xa0] sm:$0xf]
  %v63 = vld [vmem:[%s1 + $0xa4] sm:$0xf]
  %v64 = vld [vmem:[%s1 + $0xa8] sm:$0xf]
  %v65 = vld [vmem:[%s1 + $0xac] sm:$0xf]
  %v66 = vld [vmem:[%s1 + $0xb0] sm:$0xf]
  %v67 = vld [vmem:[%s1 + $0xb4] sm:$0xf]
  %v68 = vld [vmem:[%s1 + $0xb8] sm:$0xf]
  %v69 = vld [vmem:[%s1 + $0xbc] sm:$0xf]
  %v70 = vld [vmem:[%s2] sm:$0x1]
  %v72 = vperm.slane %v70, 0
  %v82 = vunpack.c.l.b16 %v14
  %v83 = vunpack.c.h.b16 %v14
  %v84 = vunpack.c.l.b16 %v15
  %v85 = vunpack.c.l.b16 %v16
  %v86 = vunpack.c.h.b16 %v16
  %v87 = vunpack.c.l.b16 %v17
  %v88 = vunpack.c.l.b16 %v18
  %v89 = vunpack.c.h.b16 %v18
  %v90 = vunpack.c.l.b16 %v19
  %v91 = vunpack.c.l.b16 %v20
  %v92 = vunpack.c.h.b16 %v20
  %v93 = vunpack.c.l.b16 %v21
  %v94 = vpack.c.b16 %v85, %v82
  %v95 = vpack.c.b16 %v86, %v83
  %v96 = vpack.c.b16 %v87, %v84
  %v97 = vpack.c.b16 %v91, %v88
  %v98 = vpack.c.b16 %v92, %v89
  %v99 = vpack.c.b16 %v93, %v90
  %v154 = vunpack.c.l.b16 %v22
  %v155 = vunpack.c.l.b16 %v23
  %v156 = vunpack.c.l.b16 %v24
  %v157 = vunpack.c.l.b16 %v25
  %v158 = vunpack.c.l.b16 %v26
  %v159 = vunpack.c.l.b16 %v27
  %v160 = vunpack.c.l.b16 %v28
  %v161 = vunpack.c.l.b16 %v29
  %v162 = vunpack.c.l.b16 %v30
  %v163 = vunpack.c.l.b16 %v31
  %v164 = vunpack.c.l.b16 %v32
  %v165 = vunpack.c.l.b16 %v33
  %v166 = vunpack.c.l.b16 %v34
  %v167 = vunpack.c.l.b16 %v35
  %v168 = vunpack.c.l.b16 %v36
  %v169 = vunpack.c.l.b16 %v37
  %v170 = vunpack.c.l.b16 %v38
  %v171 = vunpack.c.l.b16 %v39
  %v172 = vunpack.c.l.b16 %v40
  %v173 = vunpack.c.l.b16 %v41
  %v174 = vunpack.c.l.b16 %v42
  %v175 = vunpack.c.l.b16 %v43
  %v176 = vunpack.c.l.b16 %v44
  %v177 = vunpack.c.l.b16 %v45
  %v178 = vunpack.c.l.b16 %v46
  %v179 = vunpack.c.l.b16 %v47
  %v180 = vunpack.c.l.b16 %v48
  %v181 = vunpack.c.l.b16 %v49
  %v182 = vunpack.c.l.b16 %v50
  %v183 = vunpack.c.l.b16 %v51
  %v184 = vunpack.c.l.b16 %v52
  %v185 = vunpack.c.l.b16 %v53
  %v186 = vunpack.c.l.b16 %v54
  %v187 = vunpack.c.l.b16 %v55
  %v188 = vunpack.c.l.b16 %v56
  %v189 = vunpack.c.l.b16 %v57
  %v190 = vunpack.c.l.b16 %v58
  %v191 = vunpack.c.l.b16 %v59
  %v192 = vunpack.c.l.b16 %v60
  %v193 = vunpack.c.l.b16 %v61
  %v194 = vunpack.c.l.b16 %v62
  %v195 = vunpack.c.l.b16 %v63
  %v196 = vunpack.c.l.b16 %v64
  %v197 = vunpack.c.l.b16 %v65
  %v198 = vunpack.c.l.b16 %v66
  %v199 = vunpack.c.l.b16 %v67
  %v200 = vunpack.c.l.b16 %v68
  %v201 = vunpack.c.l.b16 %v69
  %v202 = vpack.c.b16 %v155, %v154
  %v203 = vpack.c.b16 %v157, %v156
  %v204 = vpack.c.b16 %v159, %v158
  %v205 = vpack.c.b16 %v161, %v160
  %v206 = vpack.c.b16 %v163, %v162
  %v207 = vpack.c.b16 %v165, %v164
  %v208 = vpack.c.b16 %v167, %v166
  %v209 = vpack.c.b16 %v169, %v168
  %v210 = vpack.c.b16 %v171, %v170
  %v211 = vpack.c.b16 %v173, %v172
  %v212 = vpack.c.b16 %v175, %v174
  %v213 = vpack.c.b16 %v177, %v176
  %v214 = vpack.c.b16 %v179, %v178
  %v215 = vpack.c.b16 %v181, %v180
  %v216 = vpack.c.b16 %v183, %v182
  %v217 = vpack.c.b16 %v185, %v184
  %v218 = vpack.c.b16 %v187, %v186
  %v219 = vpack.c.b16 %v189, %v188
  %v220 = vpack.c.b16 %v191, %v190
  %v221 = vpack.c.b16 %v193, %v192
  %v222 = vpack.c.b16 %v195, %v194
  %v223 = vpack.c.b16 %v197, %v196
  %v224 = vpack.c.b16 %v199, %v198
  %v225 = vpack.c.b16 %v201, %v200
  %250 = vmatpush.bf16.msra.mxu0 %v209
  %251 = vmatpush.bf16.msra.mxu0 %v208
  %252 = vmatpush.bf16.msra.mxu0 %v207
  %253 = vmatpush.bf16.msra.mxu0 %v206
  %254 = vmatpush.bf16.msra.mxu0 %v205
  %255 = vmatpush.bf16.msra.mxu0 %v204
  %256 = vmatpush.bf16.msra.mxu0 %v203
  %257 = vmatpush.bf16.msra.mxu0 %v202
  %258 = vmatmul.bf16.gmra.mxu0 %v94
  %v259 = vpop.f32.mrf.mxu0
  %v260 = vadd.f32 %v72, %v259
  %v261 = vpop.f32.mrf.mxu0
  %v262 = vadd.f32 %v72, %v261
  %263 = vmatmul.bf16.gmra.mxu0 %v97
  %v264 = vpop.f32.mrf.mxu0
  %v265 = vadd.f32 %v72, %v264
  %v266 = vpop.f32.mrf.mxu0
  %v267 = vadd.f32 %v72, %v266
  %268 = vdwg.mxu0
  %269 = vmatpush.bf16.msra.mxu0 %v217
  %270 = vmatpush.bf16.msra.mxu0 %v216
  %271 = vmatpush.bf16.msra.mxu0 %v215
  %272 = vmatpush.bf16.msra.mxu0 %v214
  %273 = vmatpush.bf16.msra.mxu0 %v213
  %274 = vmatpush.bf16.msra.mxu0 %v212
  %275 = vmatpush.bf16.msra.mxu0 %v211
  %276 = vmatpush.bf16.msra.mxu0 %v210
  %277 = vmatmul.bf16.gmra.mxu0 %v95
  %v278 = vpop.f32.mrf.mxu0
  %v279 = vadd.f32 %v260, %v278
  %v280 = vpop.f32.mrf.mxu0
  %v281 = vadd.f32 %v262, %v280
  %282 = vmatmul.bf16.gmra.mxu0 %v98
  %v283 = vpop.f32.mrf.mxu0
  %v284 = vadd.f32 %v265, %v283
  %v285 = vpop.f32.mrf.mxu0
  %v286 = vadd.f32 %v267, %v285
  %287 = vdwg.mxu0
  %288 = vmatpush.bf16.msra.mxu0 %v225
  %289 = vmatpush.bf16.msra.mxu0 %v224
  %290 = vmatpush.bf16.msra.mxu0 %v223
  %291 = vmatpush.bf16.msra.mxu0 %v222
  %292 = vmatpush.bf16.msra.mxu0 %v221
  %293 = vmatpush.bf16.msra.mxu0 %v220
  %294 = vmatpush.bf16.msra.mxu0 %v219
  %295 = vmatpush.bf16.msra.mxu0 %v218
  %296 = vmatmul.bf16.gmra.mxu0 %v96
  %v297 = vpop.f32.mrf.mxu0
  %v298 = vadd.f32 %v279, %v297
  %v299 = vpop.f32.mrf.mxu0
  %v300 = vadd.f32 %v281, %v299
  %301 = vmatmul.bf16.gmra.mxu0 %v99
  %v302 = vpop.f32.mrf.mxu0
  %v303 = vadd.f32 %v284, %v302
  %v304 = vpop.f32.mrf.mxu0
  %v305 = vadd.f32 %v286, %v304
  %306 = vdwg.mxu0
  %v307 = vmax.f32 %v298, 0.0
  %v308 = vmax.f32 %v300, 0.0
  %v309 = vmax.f32 %v303, 0.0
  %v310 = vmax.f32 %v305, 0.0
  %311 = vst [vmem:[%s3] sm:$0xff] %v307
  %312 = vst [vmem:[%s3 + $0x8] sm:$0xff] %v308
  %313 = vst [vmem:[%s3 + $0x10] sm:$0xff] %v309
  %314 = vst [vmem:[%s3 + $0x18] sm:$0xff] %v310
  // Predicated region
  $region14: #{autoencoder_forward.7} parent=0 // pred_check
    _
  $region15: #{autoencoder_forward.7} parent=0 // pred_check_branch
    %316 = sbr.rel (0) target = $region17
  $region16: #{autoencoder_forward.7} parent=0 // pred_region
    _
  $region17: #{autoencoder_forward.7} parent=0 // pred_fallthru
    _
  // Predicated region
  $region18: #{autoencoder_forward.7} parent=0 // pred_check
    _
  $region19: #{autoencoder_forward.7} parent=0 // pred_check_branch
    %318 = sbr.rel (0) target = $region21
  $region20: #{autoencoder_forward.7} parent=0 // pred_region
    _
  $region21: #{autoencoder_forward.7} parent=0 // pred_fallthru
    _

// kernel: autoencoder_forward.8
$region0: #{autoencoder_forward.8}
  #allocation0 [shape = 'u32[]', space=smem, size = 0x4, offset = 0x4, fixed_abs, tag = 'smem constant byte address 0x4 - core index']
  #allocation1 [shape = 'u32[72,128]{1,0:T(1,128)}', space=vmem, size = 0x9000, scoped, tag = 'internal scratch']
  %s0 = inlined_call_operand.vmem [shape: bf16[16,128], index: 0, kind: input, shape index: {}]
  %s1 = inlined_call_operand.vmem [shape: bf16[128,128], index: 1, kind: input, shape index: {}]
  %s2 = inlined_call_operand.vmem [shape: f32[1,128], index: 2, kind: input, shape index: {}]
  %s3 = inlined_call_operand.vmem [shape: bf16[128,128], index: 3, kind: input, shape index: {}]
  %s4 = inlined_call_operand.vmem [shape: f32[1,128], index: 4, kind: input, shape index: {}]
  %s5 = inlined_call_operand.vmem [shape: f32[16,128], index: 5, kind: output, shape index: {}]
  %s6 = sld [smem:[#allocation0]]
  $region30: #{autoencoder_forward.8} parent=0
    _
  %s8 = ssub.s32 1, %s6
  %s9 = scalar_select 0, %s8, %s6
  // Predicated region
  $region2: #{autoencoder_forward.8} parent=0 // pred_check
    _
  $region3: #{autoencoder_forward.8} parent=0 // pred_check_branch
    %11 = sbr.rel (0) target = $region5
  $region4: #{autoencoder_forward.8} parent=0 // pred_region
    _
  $region5: #{autoencoder_forward.8} parent=0 // pred_fallthru
    _
  // Predicated region
  $region6: #{autoencoder_forward.8} parent=0 // pred_check
    _
  $region7: #{autoencoder_forward.8} parent=0 // pred_check_branch
    %13 = sbr.rel (0) target = $region9
  $region8: #{autoencoder_forward.8} parent=0 // pred_region
    _
  $region9: #{autoencoder_forward.8} parent=0 // pred_fallthru
    _
  // Predicated region
  $region10: #{autoencoder_forward.8} parent=0 // pred_check
    _
  $region11: #{autoencoder_forward.8} parent=0 // pred_check_branch
    %15 = sbr.rel (0) target = $region13
  $region12: #{autoencoder_forward.8} parent=0 // pred_region
    _
  $region13: #{autoencoder_forward.8} parent=0 // pred_fallthru
    _
  // Predicated region
  $region14: #{autoencoder_forward.8} parent=0 // pred_check
    _
  $region15: #{autoencoder_forward.8} parent=0 // pred_check_branch
    %17 = sbr.rel (0) target = $region17
  $region16: #{autoencoder_forward.8} parent=0 // pred_region
    _
  $region17: #{autoencoder_forward.8} parent=0 // pred_fallthru
    _
  // Predicated region
  $region18: #{autoencoder_forward.8} parent=0 // pred_check
    _
  $region19: #{autoencoder_forward.8} parent=0 // pred_check_branch
    %19 = sbr.rel (0) target = $region21
  $region20: #{autoencoder_forward.8} parent=0 // pred_region
    _
  $region21: #{autoencoder_forward.8} parent=0 // pred_fallthru
    _
  %v20 = vld [vmem:[%s0] sm:$0xf]
  %v21 = vld [vmem:[%s0 + $0x4] sm:$0xf]
  %v22 = vld [vmem:[%s1] sm:$0xf]
  %v23 = vld [vmem:[%s1 + $0x4] sm:$0xf]
  %v24 = vld [vmem:[%s1 + $0x8] sm:$0xf]
  %v25 = vld [vmem:[%s1 + $0xc] sm:$0xf]
  %v26 = vld [vmem:[%s1 + $0x10] sm:$0xf]
  %v27 = vld [vmem:[%s1 + $0x14] sm:$0xf]
  %v28 = vld [vmem:[%s1 + $0x18] sm:$0xf]
  %v29 = vld [vmem:[%s1 + $0x1c] sm:$0xf]
  %v30 = vld [vmem:[%s1 + $0x20] sm:$0xf]
  %v31 = vld [vmem:[%s1 + $0x24] sm:$0xf]
  %v32 = vld [vmem:[%s1 + $0x28] sm:$0xf]
  %v33 = vld [vmem:[%s1 + $0x2c] sm:$0xf]
  %v34 = vld [vmem:[%s1 + $0x30] sm:$0xf]
  %v35 = vld [vmem:[%s1 + $0x34] sm:$0xf]
  %v36 = vld [vmem:[%s1 + $0x38] sm:$0xf]
  %v37 = vld [vmem:[%s1 + $0x3c] sm:$0xf]
  %v38 = vld [vmem:[%s2] sm:$0x1]
  %v40 = vperm.slane %v38, 0
  %v44 = vunpack.c.l.b16 %v20
  %v45 = vunpack.c.l.b16 %v21
  %v46 = vpack.c.b16 %v45, %v44
  %v64 = vunpack.c.l.b16 %v22
  %v65 = vunpack.c.l.b16 %v23
  %v66 = vunpack.c.l.b16 %v24
  %v67 = vunpack.c.l.b16 %v25
  %v68 = vunpack.c.l.b16 %v26
  %v69 = vunpack.c.l.b16 %v27
  %v70 = vunpack.c.l.b16 %v28
  %v71 = vunpack.c.l.b16 %v29
  %v72 = vunpack.c.l.b16 %v30
  %v73 = vunpack.c.l.b16 %v31
  %v74 = vunpack.c.l.b16 %v32
  %v75 = vunpack.c.l.b16 %v33
  %v76 = vunpack.c.l.b16 %v34
  %v77 = vunpack.c.l.b16 %v35
  %v78 = vunpack.c.l.b16 %v36
  %v79 = vunpack.c.l.b16 %v37
  %v80 = vpack.c.b16 %v65, %v64
  %v81 = vpack.c.b16 %v67, %v66
  %v82 = vpack.c.b16 %v69, %v68
  %v83 = vpack.c.b16 %v71, %v70
  %v84 = vpack.c.b16 %v73, %v72
  %v85 = vpack.c.b16 %v75, %v74
  %v86 = vpack.c.b16 %v77, %v76
  %v87 = vpack.c.b16 %v79, %v78
  %96 = vmatpush.bf16.msra.mxu0 %v87
  %97 = vmatpush.bf16.msra.mxu0 %v86
  %98 = vmatpush.bf16.msra.mxu0 %v85
  %99 = vmatpush.bf16.msra.mxu0 %v84
  %100 = vmatpush.bf16.msra.mxu0 %v83
  %101 = vmatpush.bf16.msra.mxu0 %v82
  %102 = vmatpush.bf16.msra.mxu0 %v81
  %103 = vmatpush.bf16.msra.mxu0 %v80
  %104 = vmatmul.bf16.gmra.mxu0 %v46
  %v105 = vpop.f32.mrf.mxu0
  %v106 = vadd.f32 %v40, %v105
  %v107 = vpop.f32.mrf.mxu0
  %v108 = vadd.f32 %v40, %v107
  %109 = vdwg.mxu0
  %v110 = vpack.c.bf16 %v108, %v106
  %v111 = vld [vmem:[%s3] sm:$0xf]
  %v112 = vld [vmem:[%s3 + $0x4] sm:$0xf]
  %v113 = vld [vmem:[%s3 + $0x8] sm:$0xf]
  %v114 = vld [vmem:[%s3 + $0xc] sm:$0xf]
  %v115 = vld [vmem:[%s3 + $0x10] sm:$0xf]
  %v116 = vld [vmem:[%s3 + $0x14] sm:$0xf]
  %v117 = vld [vmem:[%s3 + $0x18] sm:$0xf]
  %v118 = vld [vmem:[%s3 + $0x1c] sm:$0xf]
  %v119 = vld [vmem:[%s3 + $0x20] sm:$0xf]
  %v120 = vld [vmem:[%s3 + $0x24] sm:$0xf]
  %v121 = vld [vmem:[%s3 + $0x28] sm:$0xf]
  %v122 = vld [vmem:[%s3 + $0x2c] sm:$0xf]
  %v123 = vld [vmem:[%s3 + $0x30] sm:$0xf]
  %v124 = vld [vmem:[%s3 + $0x34] sm:$0xf]
  %v125 = vld [vmem:[%s3 + $0x38] sm:$0xf]
  %v126 = vld [vmem:[%s3 + $0x3c] sm:$0xf]
  %v127 = vld [vmem:[%s4] sm:$0x1]
  %v129 = vperm.slane %v127, 0
  %v147 = vunpack.c.l.b16 %v111
  %v148 = vunpack.c.l.b16 %v112
  %v149 = vunpack.c.l.b16 %v113
  %v150 = vunpack.c.l.b16 %v114
  %v151 = vunpack.c.l.b16 %v115
  %v152 = vunpack.c.l.b16 %v116
  %v153 = vunpack.c.l.b16 %v117
  %v154 = vunpack.c.l.b16 %v118
  %v155 = vunpack.c.l.b16 %v119
  %v156 = vunpack.c.l.b16 %v120
  %v157 = vunpack.c.l.b16 %v121
  %v158 = vunpack.c.l.b16 %v122
  %v159 = vunpack.c.l.b16 %v123
  %v160 = vunpack.c.l.b16 %v124
  %v161 = vunpack.c.l.b16 %v125
  %v162 = vunpack.c.l.b16 %v126
  %v163 = vpack.c.b16 %v148, %v147
  %v164 = vpack.c.b16 %v150, %v149
  %v165 = vpack.c.b16 %v152, %v151
  %v166 = vpack.c.b16 %v154, %v153
  %v167 = vpack.c.b16 %v156, %v155
  %v168 = vpack.c.b16 %v158, %v157
  %v169 = vpack.c.b16 %v160, %v159
  %v170 = vpack.c.b16 %v162, %v161
  %179 = vmatpush.bf16.msra.mxu0 %v170
  %180 = vmatpush.bf16.msra.mxu0 %v169
  %181 = vmatpush.bf16.msra.mxu0 %v168
  %182 = vmatpush.bf16.msra.mxu0 %v167
  %183 = vmatpush.bf16.msra.mxu0 %v166
  %184 = vmatpush.bf16.msra.mxu0 %v165
  %185 = vmatpush.bf16.msra.mxu0 %v164
  %186 = vmatpush.bf16.msra.mxu0 %v163
  %187 = vmatmul.bf16.gmra.mxu0 %v110
  %v188 = vpop.f32.mrf.mxu0
  %v189 = vadd.f32 %v129, %v188
  %v190 = vpop.f32.mrf.mxu0
  %v191 = vadd.f32 %v129, %v190
  %192 = vdwg.mxu0
  %193 = vst [vmem:[%s5] sm:$0xff] %v189
  %194 = vst [vmem:[%s5 + $0x8] sm:$0xff] %v191
  // Predicated region
  $region22: #{autoencoder_forward.8} parent=0 // pred_check
    _
  $region23: #{autoencoder_forward.8} parent=0 // pred_check_branch
    %196 = sbr.rel (0) target = $region25
  $region24: #{autoencoder_forward.8} parent=0 // pred_region
    _
  $region25: #{autoencoder_forward.8} parent=0 // pred_fallthru
    _
  // Predicated region
  $region26: #{autoencoder_forward.8} parent=0 // pred_check
    _
  $region27: #{autoencoder_forward.8} parent=0 // pred_check_branch
    %198 = sbr.rel (0) target = $region29
  $region28: #{autoencoder_forward.8} parent=0 // pred_region
    _
  $region29: #{autoencoder_forward.8} parent=0 // pred_fallthru
    _

// kernel: autoencoder_forward.9
$region0: #{autoencoder_forward.9}
  #allocation0 [shape = 'u32[]', space=smem, size = 0x4, offset = 0x4, fixed_abs, tag = 'smem constant byte address 0x4 - core index']
  #allocation1 [shape = 'u32[72,128]{1,0:T(1,128)}', space=vmem, size = 0x9000, scoped, tag = 'internal scratch']
  %s0 = inlined_call_operand.vmem [shape: bf16[64,128], index: 0, kind: input, shape index: {}]
  %s1 = inlined_call_operand.vmem [shape: bf16[128,128], index: 1, kind: input, shape index: {}]
  %s2 = inlined_call_operand.vmem [shape: f32[1,128], index: 2, kind: input, shape index: {}]
  %s3 = inlined_call_operand.vmem [shape: f32[64,128], index: 3, kind: output, shape index: {}]
  %s4 = sld [smem:[#allocation0]]
  $region22: #{autoencoder_forward.9} parent=0
    _
  %s6 = ssub.s32 1, %s4
  %s7 = scalar_select 0, %s6, %s4
  // Predicated region
  $region2: #{autoencoder_forward.9} parent=0 // pred_check
    _
  $region3: #{autoencoder_forward.9} parent=0 // pred_check_branch
    %9 = sbr.rel (0) target = $region5
  $region4: #{autoencoder_forward.9} parent=0 // pred_region
    _
  $region5: #{autoencoder_forward.9} parent=0 // pred_fallthru
    _
  // Predicated region
  $region6: #{autoencoder_forward.9} parent=0 // pred_check
    _
  $region7: #{autoencoder_forward.9} parent=0 // pred_check_branch
    %11 = sbr.rel (0) target = $region9
  $region8: #{autoencoder_forward.9} parent=0 // pred_region
    _
  $region9: #{autoencoder_forward.9} parent=0 // pred_fallthru
    _
  // Predicated region
  $region10: #{autoencoder_forward.9} parent=0 // pred_check
    _
  $region11: #{autoencoder_forward.9} parent=0 // pred_check_branch
    %13 = sbr.rel (0) target = $region13
  $region12: #{autoencoder_forward.9} parent=0 // pred_region
    _
  $region13: #{autoencoder_forward.9} parent=0 // pred_fallthru
    _
  %v14 = vld [vmem:[%s0] sm:$0xf]
  %v15 = vld [vmem:[%s0 + $0x4] sm:$0xf]
  %v16 = vld [vmem:[%s0 + $0x8] sm:$0xf]
  %v17 = vld [vmem:[%s0 + $0xc] sm:$0xf]
  %v18 = vld [vmem:[%s0 + $0x10] sm:$0xf]
  %v19 = vld [vmem:[%s0 + $0x14] sm:$0xf]
  %v20 = vld [vmem:[%s0 + $0x18] sm:$0xf]
  %v21 = vld [vmem:[%s0 + $0x1c] sm:$0xf]
  %v22 = vld [vmem:[%s1] sm:$0xf]
  %v23 = vld [vmem:[%s1 + $0x4] sm:$0xf]
  %v24 = vld [vmem:[%s1 + $0x8] sm:$0xf]
  %v25 = vld [vmem:[%s1 + $0xc] sm:$0xf]
  %v26 = vld [vmem:[%s1 + $0x10] sm:$0xf]
  %v27 = vld [vmem:[%s1 + $0x14] sm:$0xf]
  %v28 = vld [vmem:[%s1 + $0x18] sm:$0xf]
  %v29 = vld [vmem:[%s1 + $0x1c] sm:$0xf]
  %v30 = vld [vmem:[%s1 + $0x20] sm:$0xf]
  %v31 = vld [vmem:[%s1 + $0x24] sm:$0xf]
  %v32 = vld [vmem:[%s1 + $0x28] sm:$0xf]
  %v33 = vld [vmem:[%s1 + $0x2c] sm:$0xf]
  %v34 = vld [vmem:[%s1 + $0x30] sm:$0xf]
  %v35 = vld [vmem:[%s1 + $0x34] sm:$0xf]
  %v36 = vld [vmem:[%s1 + $0x38] sm:$0xf]
  %v37 = vld [vmem:[%s1 + $0x3c] sm:$0xf]
  %v38 = vld [vmem:[%s2] sm:$0x1]
  %v40 = vperm.slane %v38, 0
  %v50 = vunpack.c.l.b16 %v14
  %v51 = vunpack.c.l.b16 %v15
  %v52 = vunpack.c.l.b16 %v16
  %v53 = vunpack.c.l.b16 %v17
  %v54 = vunpack.c.l.b16 %v18
  %v55 = vunpack.c.l.b16 %v19
  %v56 = vunpack.c.l.b16 %v20
  %v57 = vunpack.c.l.b16 %v21
  %v58 = vpack.c.b16 %v51, %v50
  %v59 = vpack.c.b16 %v53, %v52
  %v60 = vpack.c.b16 %v55, %v54
  %v61 = vpack.c.b16 %v57, %v56
  %v82 = vunpack.c.l.b16 %v22
  %v83 = vunpack.c.l.b16 %v23
  %v84 = vunpack.c.l.b16 %v24
  %v85 = vunpack.c.l.b16 %v25
  %v86 = vunpack.c.l.b16 %v26
  %v87 = vunpack.c.l.b16 %v27
  %v88 = vunpack.c.l.b16 %v28
  %v89 = vunpack.c.l.b16 %v29
  %v90 = vunpack.c.l.b16 %v30
  %v91 = vunpack.c.l.b16 %v31
  %v92 = vunpack.c.l.b16 %v32
  %v93 = vunpack.c.l.b16 %v33
  %v94 = vunpack.c.l.b16 %v34
  %v95 = vunpack.c.l.b16 %v35
  %v96 = vunpack.c.l.b16 %v36
  %v97 = vunpack.c.l.b16 %v37
  %v98 = vpack.c.b16 %v83, %v82
  %v99 = vpack.c.b16 %v85, %v84
  %v100 = vpack.c.b16 %v87, %v86
  %v101 = vpack.c.b16 %v89, %v88
  %v102 = vpack.c.b16 %v91, %v90
  %v103 = vpack.c.b16 %v93, %v92
  %v104 = vpack.c.b16 %v95, %v94
  %v105 = vpack.c.b16 %v97, %v96
  %114 = vmatpush.bf16.msra.mxu0 %v105
  %115 = vmatpush.bf16.msra.mxu0 %v104
  %116 = vmatpush.bf16.msra.mxu0 %v103
  %117 = vmatpush.bf16.msra.mxu0 %v102
  %118 = vmatpush.bf16.msra.mxu0 %v101
  %119 = vmatpush.bf16.msra.mxu0 %v100
  %120 = vmatpush.bf16.msra.mxu0 %v99
  %121 = vmatpush.bf16.msra.mxu0 %v98
  %122 = vmatmul.bf16.gmra.mxu0 %v58
  %v123 = vpop.f32.mrf.mxu0
  %v124 = vadd.f32 %v40, %v123
  %v125 = vpop.f32.mrf.mxu0
  %v126 = vadd.f32 %v40, %v125
  %127 = vmatmul.bf16.gmra.mxu0 %v59
  %v128 = vpop.f32.mrf.mxu0
  %v129 = vadd.f32 %v40, %v128
  %v130 = vpop.f32.mrf.mxu0
  %v131 = vadd.f32 %v40, %v130
  %132 = vmatmul.bf16.gmra.mxu0 %v60
  %v133 = vpop.f32.mrf.mxu0
  %v134 = vadd.f32 %v40, %v133
  %v135 = vpop.f32.mrf.mxu0
  %v136 = vadd.f32 %v40, %v135
  %137 = vmatmul.bf16.gmra.mxu0 %v61
  %v138 = vpop.f32.mrf.mxu0
  %v139 = vadd.f32 %v40, %v138
  %v140 = vpop.f32.mrf.mxu0
  %v141 = vadd.f32 %v40, %v140
  %142 = vdwg.mxu0
  %v143 = vmax.f32 %v124, 0.0
  %v144 = vmax.f32 %v126, 0.0
  %v145 = vmax.f32 %v129, 0.0
  %v146 = vmax.f32 %v131, 0.0
  %v147 = vmax.f32 %v134, 0.0
  %v148 = vmax.f32 %v136, 0.0
  %v149 = vmax.f32 %v139, 0.0
  %v150 = vmax.f32 %v141, 0.0
  %151 = vst [vmem:[%s3] sm:$0xff] %v143
  %152 = vst [vmem:[%s3 + $0x8] sm:$0xff] %v144
  %153 = vst [vmem:[%s3 + $0x10] sm:$0xff] %v145
  %154 = vst [vmem:[%s3 + $0x18] sm:$0xff] %v146
  %155 = vst [vmem:[%s3 + $0x20] sm:$0xff] %v147
  %156 = vst [vmem:[%s3 + $0x28] sm:$0xff] %v148
  %157 = vst [vmem:[%s3 + $0x30] sm:$0xff] %v149
  %158 = vst [vmem:[%s3 + $0x38] sm:$0xff] %v150
  // Predicated region
  $region14: #{autoencoder_forward.9} parent=0 // pred_check
    _
  $region15: #{autoencoder_forward.9} parent=0 // pred_check_branch
    %160 = sbr.rel (0) target = $region17
  $region16: #{autoencoder_forward.9} parent=0 // pred_region
    _
  $region17: #{autoencoder_forward.9} parent=0 // pred_fallthru
    _
  // Predicated region
  $region18: #{autoencoder_forward.9} parent=0 // pred_check
    _
  $region19: #{autoencoder_forward.9} parent=0 // pred_check_branch
    %162 = sbr.rel (0) target = $region21
  $region20: #{autoencoder_forward.9} parent=0 // pred_region
    _
  $region21: #{autoencoder_forward.9} parent=0 // pred_fallthru
    _

// kernel: autoencoder_forward.10
$region0: #{autoencoder_forward.10}
  #allocation0 [shape = 'u32[]', space=smem, size = 0x4, offset = 0x4, fixed_abs, tag = 'smem constant byte address 0x4 - core index']
  #allocation1 [shape = 'u32[72,128]{1,0:T(1,128)}', space=vmem, size = 0x9000, scoped, tag = 'internal scratch']
  %s0 = inlined_call_operand.vmem [shape: bf16[464,512], index: 0, kind: input, shape index: {}]
  %s1 = inlined_call_operand.vmem [shape: bf16[512,128], index: 1, kind: input, shape index: {}]
  %s2 = inlined_call_operand.vmem [shape: f32[1,128], index: 2, kind: input, shape index: {}]
  %s3 = inlined_call_operand.vmem [shape: f32[464,128], index: 3, kind: output, shape index: {}]
  %s4 = sld [smem:[#allocation0]]
  $region22: #{autoencoder_forward.10} parent=0
    _
  %s6 = ssub.s32 1, %s4
  %s7 = scalar_select 0, %s6, %s4
  // Predicated region
  $region2: #{autoencoder_forward.10} parent=0 // pred_check
    _
  $region3: #{autoencoder_forward.10} parent=0 // pred_check_branch
    %9 = sbr.rel (0) target = $region5
  $region4: #{autoencoder_forward.10} parent=0 // pred_region
    _
  $region5: #{autoencoder_forward.10} parent=0 // pred_fallthru
    _
  // Predicated region
  $region6: #{autoencoder_forward.10} parent=0 // pred_check
    _
  $region7: #{autoencoder_forward.10} parent=0 // pred_check_branch
    %11 = sbr.rel (0) target = $region9
  $region8: #{autoencoder_forward.10} parent=0 // pred_region
    _
  $region9: #{autoencoder_forward.10} parent=0 // pred_fallthru
    _
  // Predicated region
  $region10: #{autoencoder_forward.10} parent=0 // pred_check
    _
  $region11: #{autoencoder_forward.10} parent=0 // pred_check_branch
    %13 = sbr.rel (0) target = $region13
  $region12: #{autoencoder_forward.10} parent=0 // pred_region
    _
  $region13: #{autoencoder_forward.10} parent=0 // pred_fallthru
    _
  %v14 = vld [vmem:[%s0] sm:$0xff]
  %v15 = vld [vmem:[%s0 + $0x8] sm:$0xff]
  %v16 = vld [vmem:[%s0 + $0x10] sm:$0xff]
  %v17 = vld [vmem:[%s0 + $0x18] sm:$0xff]
  %v18 = vld [vmem:[%s0 + $0x20] sm:$0xff]
  %v19 = vld [vmem:[%s0 + $0x28] sm:$0xff]
  %v20 = vld [vmem:[%s0 + $0x30] sm:$0xff]
  %v21 = vld [vmem:[%s0 + $0x38] sm:$0xff]
  %v22 = vld [vmem:[%s0 + $0x40] sm:$0xff]
  %v23 = vld [vmem:[%s0 + $0x48] sm:$0xff]
  %v24 = vld [vmem:[%s0 + $0x50] sm:$0xff]
  %v25 = vld [vmem:[%s0 + $0x58] sm:$0xff]
  %v26 = vld [vmem:[%s0 + $0x60] sm:$0xff]
  %v27 = vld [vmem:[%s0 + $0x68] sm:$0xff]
  %v28 = vld [vmem:[%s0 + $0x70] sm:$0xff]
  %v29 = vld [vmem:[%s0 + $0x78] sm:$0xff]
  %v30 = vld [vmem:[%s0 + $0x80] sm:$0xff]
  %v31 = vld [vmem:[%s0 + $0x88] sm:$0xff]
  %v32 = vld [vmem:[%s0 + $0x90] sm:$0xff]
  %v33 = vld [vmem:[%s0 + $0x98] sm:$0xff]
  %v34 = vld [vmem:[%s0 + $0xa0] sm:$0xff]
  %v35 = vld [vmem:[%s0 + $0xa8] sm:$0xff]
  %v36 = vld [vmem:[%s0 + $0xb0] sm:$0xff]
  %v37 = vld [vmem:[%s0 + $0xb8] sm:$0xff]
  %v38 = vld [vmem:[%s0 + $0xc0] sm:$0xff]
  %v39 = vld [vmem:[%s0 + $0xc8] sm:$0xff]
  %v40 = vld [vmem:[%s0 + $0xd0] sm:$0xff]
  %v41 = vld [vmem:[%s0 + $0xd8] sm:$0xff]
  %v42 = vld [vmem:[%s0 + $0xe0] sm:$0xff]
  %v43 = vld [vmem:[%s0 + $0xe8] sm:$0xff]
  %v44 = vld [vmem:[%s0 + $0xf0] sm:$0xff]
  %v45 = vld [vmem:[%s0 + $0xf8] sm:$0xff]
  %v46 = vld [vmem:[%s0 + $0x100] sm:$0xff]
  %v47 = vld [vmem:[%s0 + $0x108] sm:$0xff]
  %v48 = vld [vmem:[%s0 + $0x110] sm:$0xff]
  %v49 = vld [vmem:[%s0 + $0x118] sm:$0xff]
  %v50 = vld [vmem:[%s0 + $0x120] sm:$0xff]
  %v51 = vld [vmem:[%s0 + $0x128] sm:$0xff]
  %v52 = vld [vmem:[%s0 + $0x130] sm:$0xff]
  %v53 = vld [vmem:[%s0 + $0x138] sm:$0xff]
  %v54 = vld [vmem:[%s0 + $0x140] sm:$0xff]
  %v55 = vld [vmem:[%s0 + $0x148] sm:$0xff]
  %v56 = vld [vmem:[%s0 + $0x150] sm:$0xff]
  %v57 = vld [vmem:[%s0 + $0x158] sm:$0xff]
  %v58 = vld [vmem:[%s0 + $0x160] sm:$0xff]
  %v59 = vld [vmem:[%s0 + $0x168] sm:$0xff]
  %v60 = vld [vmem:[%s0 + $0x170] sm:$0xff]
  %v61 = vld [vmem:[%s0 + $0x178] sm:$0xff]
  %v62 = vld [vmem:[%s0 + $0x180] sm:$0xff]
  %v63 = vld [vmem:[%s0 + $0x188] sm:$0xff]
  %v64 = vld [vmem:[%s0 + $0x190] sm:$0xff]
  %v65 = vld [vmem:[%s0 + $0x198] sm:$0xff]
  %v66 = vld [vmem:[%s0 + $0x1a0] sm:$0xff]
  %v67 = vld [vmem:[%s0 + $0x1a8] sm:$0xff]
  %v68 = vld [vmem:[%s0 + $0x1b0] sm:$0xff]
  %v69 = vld [vmem:[%s0 + $0x1b8] sm:$0xff]
  %v70 = vld [vmem:[%s0 + $0x1c0] sm:$0xff]
  %v71 = vld [vmem:[%s0 + $0x1c8] sm:$0xff]
  %v72 = vld [vmem:[%s0 + $0x1d0] sm:$0xff]
  %v73 = vld [vmem:[%s0 + $0x1d8] sm:$0xff]
  %v74 = vld [vmem:[%s0 + $0x1e0] sm:$0xff]
  %v75 = vld [vmem:[%s0 + $0x1e8] sm:$0xff]
  %v76 = vld [vmem:[%s0 + $0x1f0] sm:$0xff]
  %v77 = vld [vmem:[%s0 + $0x1f8] sm:$0xff]
  %v78 = vld [vmem:[%s0 + $0x200] sm:$0xff]
  %v79 = vld [vmem:[%s0 + $0x208] sm:$0xff]
  %v80 = vld [vmem:[%s0 + $0x210] sm:$0xff]
  %v81 = vld [vmem:[%s0 + $0x218] sm:$0xff]
  %v82 = vld [vmem:[%s0 + $0x220] sm:$0xff]
  %v83 = vld [vmem:[%s0 + $0x228] sm:$0xff]
  %v84 = vld [vmem:[%s0 + $0x230] sm:$0xff]
  %v85 = vld [vmem:[%s0 + $0x238] sm:$0xff]
  %v86 = vld [vmem:[%s0 + $0x240] sm:$0xff]
  %v87 = vld [vmem:[%s0 + $0x248] sm:$0xff]
  %v88 = vld [vmem:[%s0 + $0x250] sm:$0xff]
  %v89 = vld [vmem:[%s0 + $0x258] sm:$0xff]
  %v90 = vld [vmem:[%s0 + $0x260] sm:$0xff]
  %v91 = vld [vmem:[%s0 + $0x268] sm:$0xff]
  %v92 = vld [vmem:[%s0 + $0x270] sm:$0xff]
  %v93 = vld [vmem:[%s0 + $0x278] sm:$0xff]
  %v94 = vld [vmem:[%s0 + $0x280] sm:$0xff]
  %v95 = vld [vmem:[%s0 + $0x288] sm:$0xff]
  %v96 = vld [vmem:[%s0 + $0x290] sm:$0xff]
  %v97 = vld [vmem:[%s0 + $0x298] sm:$0xff]
  %v98 = vld [vmem:[%s0 + $0x2a0] sm:$0xff]
  %v99 = vld [vmem:[%s0 + $0x2a8] sm:$0xff]
  %v100 = vld [vmem:[%s0 + $0x2b0] sm:$0xff]
  %v101 = vld [vmem:[%s0 + $0x2b8] sm:$0xff]
  %v102 = vld [vmem:[%s0 + $0x2c0] sm:$0xff]
  %v103 = vld [vmem:[%s0 + $0x2c8] sm:$0xff]
  %v104 = vld [vmem:[%s0 + $0x2d0] sm:$0xff]
  %v105 = vld [vmem:[%s0 + $0x2d8] sm:$0xff]
  %v106 = vld [vmem:[%s0 + $0x2e0] sm:$0xff]
  %v107 = vld [vmem:[%s0 + $0x2e8] sm:$0xff]
  %v108 = vld [vmem:[%s0 + $0x2f0] sm:$0xff]
  %v109 = vld [vmem:[%s0 + $0x2f8] sm:$0xff]
  %v110 = vld [vmem:[%s0 + $0x300] sm:$0xff]
  %v111 = vld [vmem:[%s0 + $0x308] sm:$0xff]
  %v112 = vld [vmem:[%s0 + $0x310] sm:$0xff]
  %v113 = vld [vmem:[%s0 + $0x318] sm:$0xff]
  %v114 = vld [vmem:[%s0 + $0x320] sm:$0xff]
  %v115 = vld [vmem:[%s0 + $0x328] sm:$0xff]
  %v116 = vld [vmem:[%s0 + $0x330] sm:$0xff]
  %v117 = vld [vmem:[%s0 + $0x338] sm:$0xff]
  %v118 = vld [vmem:[%s0 + $0x340] sm:$0xff]
  %v119 = vld [vmem:[%s0 + $0x348] sm:$0xff]
  %v120 = vld [vmem:[%s0 + $0x350] sm:$0xff]
  %v121 = vld [vmem:[%s0 + $0x358] sm:$0xff]
  %v122 = vld [vmem:[%s0 + $0x360] sm:$0xff]
  %v123 = vld [vmem:[%s0 + $0x368] sm:$0xff]
  %v124 = vld [vmem:[%s0 + $0x370] sm:$0xff]
  %v125 = vld [vmem:[%s0 + $0x378] sm:$0xff]
  %v126 = vld [vmem:[%s0 + $0x380] sm:$0xff]
  %v127 = vld [vmem:[%s0 + $0x388] sm:$0xff]
  %v128 = vld [vmem:[%s0 + $0x390] sm:$0xff]
  %v129 = vld [vmem:[%s0 + $0x398] sm:$0xff]
  %v130 = vld [vmem:[%s1] sm:$0xf]
  %v131 = vld [vmem:[%s1 + $0x4] sm:$0xf]
  %v132 = vld [vmem:[%s1 + $0x8] sm:$0xf]
  %v133 = vld [vmem:[%s1 + $0xc] sm:$0xf]
  %v134 = vld [vmem:[%s1 + $0x10] sm:$0xf]
  %v135 = vld [vmem:[%s1 + $0x14] sm:$0xf]
  %v136 = vld [vmem:[%s1 + $0x18] sm:$0xf]
  %v137 = vld [vmem:[%s1 + $0x1c] sm:$0xf]
  %v138 = vld [vmem:[%s1 + $0x20] sm:$0xf]
  %v139 = vld [vmem:[%s1 + $0x24] sm:$0xf]
  %v140 = vld [vmem:[%s1 + $0x28] sm:$0xf]
  %v141 = vld [vmem:[%s1 + $0x2c] sm:$0xf]
  %v142 = vld [vmem:[%s1 + $0x30] sm:$0xf]
  %v143 = vld [vmem:[%s1 + $0x34] sm:$0xf]
  %v144 = vld [vmem:[%s1 + $0x38] sm:$0xf]
  %v145 = vld [vmem:[%s1 + $0x3c] sm:$0xf]
  %v146 = vld [vmem:[%s1 + $0x40] sm:$0xf]
  %v147 = vld [vmem:[%s1 + $0x44] sm:$0xf]
  %v148 = vld [vmem:[%s1 + $0x48] sm:$0xf]
  %v149 = vld [vmem:[%s1 + $0x4c] sm:$0xf]
  %v150 = vld [vmem:[%s1 + $0x50] sm:$0xf]
  %v151 = vld [vmem:[%s1 + $0x54] sm:$0xf]
  %v152 = vld [vmem:[%s1 + $0x58] sm:$0xf]
  %v153 = vld [vmem:[%s1 + $0x5c] sm:$0xf]
  %v154 = vld [vmem:[%s1 + $0x60] sm:$0xf]
  %v155 = vld [vmem:[%s1 + $0x64] sm:$0xf]
  %v156 = vld [vmem:[%s1 + $0x68] sm:$0xf]
  %v157 = vld [vmem:[%s1 + $0x6c] sm:$0xf]
  %v158 = vld [vmem:[%s1 + $0x70] sm:$0xf]
  %v159 = vld [vmem:[%s1 + $0x74] sm:$0xf]
  %v160 = vld [vmem:[%s1 + $0x78] sm:$0xf]
  %v161 = vld [vmem:[%s1 + $0x7c] sm:$0xf]
  %v162 = vld [vmem:[%s1 + $0x80] sm:$0xf]
  %v163 = vld [vmem:[%s1 + $0x84] sm:$0xf]
  %v164 = vld [vmem:[%s1 + $0x88] sm:$0xf]
  %v165 = vld [vmem:[%s1 + $0x8c] sm:$0xf]
  %v166 = vld [vmem:[%s1 + $0x90] sm:$0xf]
  %v167 = vld [vmem:[%s1 + $0x94] sm:$0xf]
  %v168 = vld [vmem:[%s1 + $0x98] sm:$0xf]
  %v169 = vld [vmem:[%s1 + $0x9c] sm:$0xf]
  %v170 = vld [vmem:[%s1 + $0xa0] sm:$0xf]
  %v171 = vld [vmem:[%s1 + $0xa4] sm:$0xf]
  %v172 = vld [vmem:[%s1 + $0xa8] sm:$0xf]
  %v173 = vld [vmem:[%s1 + $0xac] sm:$0xf]
  %v174 = vld [vmem:[%s1 + $0xb0] sm:$0xf]
  %v175 = vld [vmem:[%s1 + $0xb4] sm:$0xf]
  %v176 = vld [vmem:[%s1 + $0xb8] sm:$0xf]
  %v177 = vld [vmem:[%s1 + $0xbc] sm:$0xf]
  %v178 = vld [vmem:[%s1 + $0xc0] sm:$0xf]
  %v179 = vld [vmem:[%s1 + $0xc4] sm:$0xf]
  %v180 = vld [vmem:[%s1 + $0xc8] sm:$0xf]
  %v181 = vld [vmem:[%s1 + $0xcc] sm:$0xf]
  %v182 = vld [vmem:[%s1 + $0xd0] sm:$0xf]
  %v183 = vld [vmem:[%s1 + $0xd4] sm:$0xf]
  %v184 = vld [vmem:[%s1 + $0xd8] sm:$0xf]
  %v185 = vld [vmem:[%s1 + $0xdc] sm:$0xf]
  %v186 = vld [vmem:[%s1 + $0xe0] sm:$0xf]
  %v187 = vld [vmem:[%s1 + $0xe4] sm:$0xf]
  %v188 = vld [vmem:[%s1 + $0xe8] sm:$0xf]
  %v189 = vld [vmem:[%s1 + $0xec] sm:$0xf]
  %v190 = vld [vmem:[%s1 + $0xf0] sm:$0xf]
  %v191 = vld [vmem:[%s1 + $0xf4] sm:$0xf]
  %v192 = vld [vmem:[%s1 + $0xf8] sm:$0xf]
  %v193 = vld [vmem:[%s1 + $0xfc] sm:$0xf]
  %v194 = vld [vmem:[%s2] sm:$0x1]
  %v196 = vperm.slane %v194, 0
  %v314 = vunpack.c.l.b16 %v14
  %v315 = vunpack.c.h.b16 %v14
  %v316 = vunpack.c.l.b16 %v15
  %v317 = vunpack.c.h.b16 %v15
  %v318 = vunpack.c.l.b16 %v16
  %v319 = vunpack.c.h.b16 %v16
  %v320 = vunpack.c.l.b16 %v17
  %v321 = vunpack.c.h.b16 %v17
  %v322 = vunpack.c.l.b16 %v18
  %v323 = vunpack.c.h.b16 %v18
  %v324 = vunpack.c.l.b16 %v19
  %v325 = vunpack.c.h.b16 %v19
  %v326 = vunpack.c.l.b16 %v20
  %v327 = vunpack.c.h.b16 %v20
  %v328 = vunpack.c.l.b16 %v21
  %v329 = vunpack.c.h.b16 %v21
  %v330 = vunpack.c.l.b16 %v22
  %v331 = vunpack.c.h.b16 %v22
  %v332 = vunpack.c.l.b16 %v23
  %v333 = vunpack.c.h.b16 %v23
  %v334 = vunpack.c.l.b16 %v24
  %v335 = vunpack.c.h.b16 %v24
  %v336 = vunpack.c.l.b16 %v25
  %v337 = vunpack.c.h.b16 %v25
  %v338 = vunpack.c.l.b16 %v26
  %v339 = vunpack.c.h.b16 %v26
  %v340 = vunpack.c.l.b16 %v27
  %v341 = vunpack.c.h.b16 %v27
  %v342 = vunpack.c.l.b16 %v28
  %v343 = vunpack.c.h.b16 %v28
  %v344 = vunpack.c.l.b16 %v29
  %v345 = vunpack.c.h.b16 %v29
  %v346 = vunpack.c.l.b16 %v30
  %v347 = vunpack.c.h.b16 %v30
  %v348 = vunpack.c.l.b16 %v31
  %v349 = vunpack.c.h.b16 %v31
  %v350 = vunpack.c.l.b16 %v32
  %v351 = vunpack.c.h.b16 %v32
  %v352 = vunpack.c.l.b16 %v33
  %v353 = vunpack.c.h.b16 %v33
  %v354 = vunpack.c.l.b16 %v34
  %v355 = vunpack.c.h.b16 %v34
  %v356 = vunpack.c.l.b16 %v35
  %v357 = vunpack.c.h.b16 %v35
  %v358 = vunpack.c.l.b16 %v36
  %v359 = vunpack.c.h.b16 %v36
  %v360 = vunpack.c.l.b16 %v37
  %v361 = vunpack.c.h.b16 %v37
  %v362 = vunpack.c.l.b16 %v38
  %v363 = vunpack.c.h.b16 %v38
  %v364 = vunpack.c.l.b16 %v39
  %v365 = vunpack.c.h.b16 %v39
  %v366 = vunpack.c.l.b16 %v40
  %v367 = vunpack.c.h.b16 %v40
  %v368 = vunpack.c.l.b16 %v41
  %v369 = vunpack.c.h.b16 %v41
  %v370 = vunpack.c.l.b16 %v42
  %v371 = vunpack.c.h.b16 %v42
  %v372 = vunpack.c.l.b16 %v43
  %v373 = vunpack.c.h.b16 %v43
  %v374 = vunpack.c.l.b16 %v44
  %v375 = vunpack.c.h.b16 %v44
  %v376 = vunpack.c.l.b16 %v45
  %v377 = vunpack.c.h.b16 %v45
  %v378 = vunpack.c.l.b16 %v46
  %v379 = vunpack.c.h.b16 %v46
  %v380 = vunpack.c.l.b16 %v47
  %v381 = vunpack.c.h.b16 %v47
  %v382 = vunpack.c.l.b16 %v48
  %v383 = vunpack.c.h.b16 %v48
  %v384 = vunpack.c.l.b16 %v49
  %v385 = vunpack.c.h.b16 %v49
  %v386 = vunpack.c.l.b16 %v50
  %v387 = vunpack.c.h.b16 %v50
  %v388 = vunpack.c.l.b16 %v51
  %v389 = vunpack.c.h.b16 %v51
  %v390 = vunpack.c.l.b16 %v52
  %v391 = vunpack.c.h.b16 %v52
  %v392 = vunpack.c.l.b16 %v53
  %v393 = vunpack.c.h.b16 %v53
  %v394 = vunpack.c.l.b16 %v54
  %v395 = vunpack.c.h.b16 %v54
  %v396 = vunpack.c.l.b16 %v55
  %v397 = vunpack.c.h.b16 %v55
  %v398 = vunpack.c.l.b16 %v56
  %v399 = vunpack.c.h.b16 %v56
  %v400 = vunpack.c.l.b16 %v57
  %v401 = vunpack.c.h.b16 %v57
  %v402 = vunpack.c.l.b16 %v58
  %v403 = vunpack.c.h.b16 %v58
  %v404 = vunpack.c.l.b16 %v59
  %v405 = vunpack.c.h.b16 %v59
  %v406 = vunpack.c.l.b16 %v60
  %v407 = vunpack.c.h.b16 %v60
  %v408 = vunpack.c.l.b16 %v61
  %v409 = vunpack.c.h.b16 %v61
  %v410 = vunpack.c.l.b16 %v62
  %v411 = vunpack.c.h.b16 %v62
  %v412 = vunpack.c.l.b16 %v63
  %v413 = vunpack.c.h.b16 %v63
  %v414 = vunpack.c.l.b16 %v64
  %v415 = vunpack.c.h.b16 %v64
  %v416 = vunpack.c.l.b16 %v65
  %v417 = vunpack.c.h.b16 %v65
  %v418 = vunpack.c.l.b16 %v66
  %v419 = vunpack.c.h.b16 %v66
  %v420 = vunpack.c.l.b16 %v67
  %v421 = vunpack.c.h.b16 %v67
  %v422 = vunpack.c.l.b16 %v68
  %v423 = vunpack.c.h.b16 %v68
  %v424 = vunpack.c.l.b16 %v69
  %v425 = vunpack.c.h.b16 %v69
  %v426 = vunpack.c.l.b16 %v70
  %v427 = vunpack.c.h.b16 %v70
  %v428 = vunpack.c.l.b16 %v71
  %v429 = vunpack.c.h.b16 %v71
  %v430 = vunpack.c.l.b16 %v72
  %v431 = vunpack.c.h.b16 %v72
  %v432 = vunpack.c.l.b16 %v73
  %v433 = vunpack.c.h.b16 %v73
  %v434 = vunpack.c.l.b16 %v74
  %v435 = vunpack.c.h.b16 %v74
  %v436 = vunpack.c.l.b16 %v75
  %v437 = vunpack.c.h.b16 %v75
  %v438 = vunpack.c.l.b16 %v76
  %v439 = vunpack.c.h.b16 %v76
  %v440 = vunpack.c.l.b16 %v77
  %v441 = vunpack.c.h.b16 %v77
  %v442 = vunpack.c.l.b16 %v78
  %v443 = vunpack.c.h.b16 %v78
  %v444 = vunpack.c.l.b16 %v79
  %v445 = vunpack.c.h.b16 %v79
  %v446 = vunpack.c.l.b16 %v80
  %v447 = vunpack.c.h.b16 %v80
  %v448 = vunpack.c.l.b16 %v81
  %v449 = vunpack.c.h.b16 %v81
  %v450 = vunpack.c.l.b16 %v82
  %v451 = vunpack.c.h.b16 %v82
  %v452 = vunpack.c.l.b16 %v83
  %v453 = vunpack.c.h.b16 %v83
  %v454 = vunpack.c.l.b16 %v84
  %v455 = vunpack.c.h.b16 %v84
  %v456 = vunpack.c.l.b16 %v85
  %v457 = vunpack.c.h.b16 %v85
  %v458 = vunpack.c.l.b16 %v86
  %v459 = vunpack.c.h.b16 %v86
  %v460 = vunpack.c.l.b16 %v87
  %v461 = vunpack.c.h.b16 %v87
  %v462 = vunpack.c.l.b16 %v88
  %v463 = vunpack.c.h.b16 %v88
  %v464 = vunpack.c.l.b16 %v89
  %v465 = vunpack.c.h.b16 %v89
  %v466 = vunpack.c.l.b16 %v90
  %v467 = vunpack.c.h.b16 %v90
  %v468 = vunpack.c.l.b16 %v91
  %v469 = vunpack.c.h.b16 %v91
  %v470 = vunpack.c.l.b16 %v92
  %v471 = vunpack.c.h.b16 %v92
  %v472 = vunpack.c.l.b16 %v93
  %v473 = vunpack.c.h.b16 %v93
  %v474 = vunpack.c.l.b16 %v94
  %v475 = vunpack.c.h.b16 %v94
  %v476 = vunpack.c.l.b16 %v95
  %v477 = vunpack.c.h.b16 %v95
  %v478 = vunpack.c.l.b16 %v96
  %v479 = vunpack.c.h.b16 %v96
  %v480 = vunpack.c.l.b16 %v97
  %v481 = vunpack.c.h.b16 %v97
  %v482 = vunpack.c.l.b16 %v98
  %v483 = vunpack.c.h.b16 %v98
  %v484 = vunpack.c.l.b16 %v99
  %v485 = vunpack.c.h.b16 %v99
  %v486 = vunpack.c.l.b16 %v100
  %v487 = vunpack.c.h.b16 %v100
  %v488 = vunpack.c.l.b16 %v101
  %v489 = vunpack.c.h.b16 %v101
  %v490 = vunpack.c.l.b16 %v102
  %v491 = vunpack.c.h.b16 %v102
  %v492 = vunpack.c.l.b16 %v103
  %v493 = vunpack.c.h.b16 %v103
  %v494 = vunpack.c.l.b16 %v104
  %v495 = vunpack.c.h.b16 %v104
  %v496 = vunpack.c.l.b16 %v105
  %v497 = vunpack.c.h.b16 %v105
  %v498 = vunpack.c.l.b16 %v106
  %v499 = vunpack.c.h.b16 %v106
  %v500 = vunpack.c.l.b16 %v107
  %v501 = vunpack.c.h.b16 %v107
  %v502 = vunpack.c.l.b16 %v108
  %v503 = vunpack.c.h.b16 %v108
  %v504 = vunpack.c.l.b16 %v109
  %v505 = vunpack.c.h.b16 %v109
  %v506 = vunpack.c.l.b16 %v110
  %v507 = vunpack.c.h.b16 %v110
  %v508 = vunpack.c.l.b16 %v111
  %v509 = vunpack.c.h.b16 %v111
  %v510 = vunpack.c.l.b16 %v112
  %v511 = vunpack.c.h.b16 %v112
  %v512 = vunpack.c.l.b16 %v113
  %v513 = vunpack.c.h.b16 %v113
  %v514 = vunpack.c.l.b16 %v114
  %v515 = vunpack.c.h.b16 %v114
  %v516 = vunpack.c.l.b16 %v115
  %v517 = vunpack.c.h.b16 %v115
  %v518 = vunpack.c.l.b16 %v116
  %v519 = vunpack.c.h.b16 %v116
  %v520 = vunpack.c.l.b16 %v117
  %v521 = vunpack.c.h.b16 %v117
  %v522 = vunpack.c.l.b16 %v118
  %v523 = vunpack.c.h.b16 %v118
  %v524 = vunpack.c.l.b16 %v119
  %v525 = vunpack.c.h.b16 %v119
  %v526 = vunpack.c.l.b16 %v120
  %v527 = vunpack.c.h.b16 %v120
  %v528 = vunpack.c.l.b16 %v121
  %v529 = vunpack.c.h.b16 %v121
  %v530 = vunpack.c.l.b16 %v122
  %v531 = vunpack.c.h.b16 %v122
  %v532 = vunpack.c.l.b16 %v123
  %v533 = vunpack.c.h.b16 %v123
  %v534 = vunpack.c.l.b16 %v124
  %v535 = vunpack.c.h.b16 %v124
  %v536 = vunpack.c.l.b16 %v125
  %v537 = vunpack.c.h.b16 %v125
  %v538 = vunpack.c.l.b16 %v126
  %v539 = vunpack.c.h.b16 %v126
  %v540 = vunpack.c.l.b16 %v127
  %v541 = vunpack.c.h.b16 %v127
  %v542 = vunpack.c.l.b16 %v128
  %v543 = vunpack.c.h.b16 %v128
  %v544 = vunpack.c.l.b16 %v129
  %v545 = vunpack.c.h.b16 %v129
  %v546 = vpack.c.b16 %v318, %v314
  %v547 = vpack.c.b16 %v319, %v315
  %v548 = vpack.c.b16 %v320, %v316
  %v549 = vpack.c.b16 %v321, %v317
  %v550 = vpack.c.b16 %v326, %v322
  %v551 = vpack.c.b16 %v327, %v323
  %v552 = vpack.c.b16 %v328, %v324
  %v553 = vpack.c.b16 %v329, %v325
  %v554 = vpack.c.b16 %v334, %v330
  %v555 = vpack.c.b16 %v335, %v331
  %v556 = vpack.c.b16 %v336, %v332
  %v557 = vpack.c.b16 %v337, %v333
  %v558 = vpack.c.b16 %v342, %v338
  %v559 = vpack.c.b16 %v343, %v339
  %v560 = vpack.c.b16 %v344, %v340
  %v561 = vpack.c.b16 %v345, %v341
  %v562 = vpack.c.b16 %v350, %v346
  %v563 = vpack.c.b16 %v351, %v347
  %v564 = vpack.c.b16 %v352, %v348
  %v565 = vpack.c.b16 %v353, %v349
  %v566 = vpack.c.b16 %v358, %v354
  %v567 = vpack.c.b16 %v359, %v355
  %v568 = vpack.c.b16 %v360, %v356
  %v569 = vpack.c.b16 %v361, %v357
  %v570 = vpack.c.b16 %v366, %v362
  %v571 = vpack.c.b16 %v367, %v363
  %v572 = vpack.c.b16 %v368, %v364
  %v573 = vpack.c.b16 %v369, %v365
  %v574 = vpack.c.b16 %v374, %v370
  %v575 = vpack.c.b16 %v375, %v371
  %v576 = vpack.c.b16 %v376, %v372
  %v577 = vpack.c.b16 %v377, %v373
  %v578 = vpack.c.b16 %v382, %v378
  %v579 = vpack.c.b16 %v383, %v379
  %v580 = vpack.c.b16 %v384, %v380
  %v581 = vpack.c.b16 %v385, %v381
  %v582 = vpack.c.b16 %v390, %v386
  %v583 = vpack.c.b16 %v391, %v387
  %v584 = vpack.c.b16 %v392, %v388
  %v585 = vpack.c.b16 %v393, %v389
  %v586 = vpack.c.b16 %v398, %v394
  %v587 = vpack.c.b16 %v399, %v395
  %v588 = vpack.c.b16 %v400, %v396
  %v589 = vpack.c.b16 %v401, %v397
  %v590 = vpack.c.b16 %v406, %v402
  %v591 = vpack.c.b16 %v407, %v403
  %v592 = vpack.c.b16 %v408, %v404
  %v593 = vpack.c.b16 %v409, %v405
  %v594 = vpack.c.b16 %v414, %v410
  %v595 = vpack.c.b16 %v415, %v411
  %v596 = vpack.c.b16 %v416, %v412
  %v597 = vpack.c.b16 %v417, %v413
  %v598 = vpack.c.b16 %v422, %v418
  %v599 = vpack.c.b16 %v423, %v419
  %v600 = vpack.c.b16 %v424, %v420
  %v601 = vpack.c.b16 %v425, %v421
  %v602 = vpack.c.b16 %v430, %v426
  %v603 = vpack.c.b16 %v431, %v427
  %v604 = vpack.c.b16 %v432, %v428
  %v605 = vpack.c.b16 %v433, %v429
  %v606 = vpack.c.b16 %v438, %v434
  %v607 = vpack.c.b16 %v439, %v435
  %v608 = vpack.c.b16 %v440, %v436
  %v609 = vpack.c.b16 %v441, %v437
  %v610 = vpack.c.b16 %v446, %v442
  %v611 = vpack.c.b16 %v447, %v443
  %v612 = vpack.c.b16 %v448, %v444
  %v613 = vpack.c.b16 %v449, %v445
  %v614 = vpack.c.b16 %v454, %v450
  %v615 = vpack.c.b16 %v455, %v451
  %v616 = vpack.c.b16 %v456, %v452
  %v617 = vpack.c.b16 %v457, %v453
  %v618 = vpack.c.b16 %v462, %v458
  %v619 = vpack.c.b16 %v463, %v459
  %v620 = vpack.c.b16 %v464, %v460
  %v621 = vpack.c.b16 %v465, %v461
  %v622 = vpack.c.b16 %v470, %v466
  %v623 = vpack.c.b16 %v471, %v467
  %v624 = vpack.c.b16 %v472, %v468
  %v625 = vpack.c.b16 %v473, %v469
  %v626 = vpack.c.b16 %v478, %v474
  %v627 = vpack.c.b16 %v479, %v475
  %v628 = vpack.c.b16 %v480, %v476
  %v629 = vpack.c.b16 %v481, %v477
  %v630 = vpack.c.b16 %v486, %v482
  %v631 = vpack.c.b16 %v487, %v483
  %v632 = vpack.c.b16 %v488, %v484
  %v633 = vpack.c.b16 %v489, %v485
  %v634 = vpack.c.b16 %v494, %v490
  %v635 = vpack.c.b16 %v495, %v491
  %v636 = vpack.c.b16 %v496, %v492
  %v637 = vpack.c.b16 %v497, %v493
  %v638 = vpack.c.b16 %v502, %v498
  %v639 = vpack.c.b16 %v503, %v499
  %v640 = vpack.c.b16 %v504, %v500
  %v641 = vpack.c.b16 %v505, %v501
  %v642 = vpack.c.b16 %v510, %v506
  %v643 = vpack.c.b16 %v511, %v507
  %v644 = vpack.c.b16 %v512, %v508
  %v645 = vpack.c.b16 %v513, %v509
  %v646 = vpack.c.b16 %v518, %v514
  %v647 = vpack.c.b16 %v519, %v515
  %v648 = vpack.c.b16 %v520, %v516
  %v649 = vpack.c.b16 %v521, %v517
  %v650 = vpack.c.b16 %v526, %v522
  %v651 = vpack.c.b16 %v527, %v523
  %v652 = vpack.c.b16 %v528, %v524
  %v653 = vpack.c.b16 %v529, %v525
  %v654 = vpack.c.b16 %v534, %v530
  %v655 = vpack.c.b16 %v535, %v531
  %v656 = vpack.c.b16 %v536, %v532
  %v657 = vpack.c.b16 %v537, %v533
  %v658 = vpack.c.b16 %v542, %v538
  %v659 = vpack.c.b16 %v543, %v539
  %v660 = vpack.c.b16 %v544, %v540
  %v661 = vpack.c.b16 %v545, %v541
  %v842 = vunpack.c.l.b16 %v130
  %v843 = vunpack.c.l.b16 %v131
  %v844 = vunpack.c.l.b16 %v132
  %v845 = vunpack.c.l.b16 %v133
  %v846 = vunpack.c.l.b16 %v134
  %v847 = vunpack.c.l.b16 %v135
  %v848 = vunpack.c.l.b16 %v136
  %v849 = vunpack.c.l.b16 %v137
  %v850 = vunpack.c.l.b16 %v138
  %v851 = vunpack.c.l.b16 %v139
  %v852 = vunpack.c.l.b16 %v140
  %v853 = vunpack.c.l.b16 %v141
  %v854 = vunpack.c.l.b16 %v142
  %v855 = vunpack.c.l.b16 %v143
  %v856 = vunpack.c.l.b16 %v144
  %v857 = vunpack.c.l.b16 %v145
  %v858 = vunpack.c.l.b16 %v146
  %v859 = vunpack.c.l.b16 %v147
  %v860 = vunpack.c.l.b16 %v148
  %v861 = vunpack.c.l.b16 %v149
  %v862 = vunpack.c.l.b16 %v150
  %v863 = vunpack.c.l.b16 %v151
  %v864 = vunpack.c.l.b16 %v152
  %v865 = vunpack.c.l.b16 %v153
  %v866 = vunpack.c.l.b16 %v154
  %v867 = vunpack.c.l.b16 %v155
  %v868 = vunpack.c.l.b16 %v156
  %v869 = vunpack.c.l.b16 %v157
  %v870 = vunpack.c.l.b16 %v158
  %v871 = vunpack.c.l.b16 %v159
  %v872 = vunpack.c.l.b16 %v160
  %v873 = vunpack.c.l.b16 %v161
  %v874 = vunpack.c.l.b16 %v162
  %v875 = vunpack.c.l.b16 %v163
  %v876 = vunpack.c.l.b16 %v164
  %v877 = vunpack.c.l.b16 %v165
  %v878 = vunpack.c.l.b16 %v166
  %v879 = vunpack.c.l.b16 %v167
  %v880 = vunpack.c.l.b16 %v168
  %v881 = vunpack.c.l.b16 %v169
  %v882 = vunpack.c.l.b16 %v170
  %v883 = vunpack.c.l.b16 %v171
  %v884 = vunpack.c.l.b16 %v172
  %v885 = vunpack.c.l.b16 %v173
  %v886 = vunpack.c.l.b16 %v174
  %v887 = vunpack.c.l.b16 %v175
  %v888 = vunpack.c.l.b16 %v176
  %v889 = vunpack.c.l.b16 %v177
  %v890 = vunpack.c.l.b16 %v178
  %v891 = vunpack.c.l.b16 %v179
  %v892 = vunpack.c.l.b16 %v180
  %v893 = vunpack.c.l.b16 %v181
  %v894 = vunpack.c.l.b16 %v182
  %v895 = vunpack.c.l.b16 %v183
  %v896 = vunpack.c.l.b16 %v184
  %v897 = vunpack.c.l.b16 %v185
  %v898 = vunpack.c.l.b16 %v186
  %v899 = vunpack.c.l.b16 %v187
  %v900 = vunpack.c.l.b16 %v188
  %v901 = vunpack.c.l.b16 %v189
  %v902 = vunpack.c.l.b16 %v190
  %v903 = vunpack.c.l.b16 %v191
  %v904 = vunpack.c.l.b16 %v192
  %v905 = vunpack.c.l.b16 %v193
  %v906 = vpack.c.b16 %v843, %v842
  %v907 = vpack.c.b16 %v845, %v844
  %v908 = vpack.c.b16 %v847, %v846
  %v909 = vpack.c.b16 %v849, %v848
  %v910 = vpack.c.b16 %v851, %v850
  %v911 = vpack.c.b16 %v853, %v852
  %v912 = vpack.c.b16 %v855, %v854
  %v913 = vpack.c.b16 %v857, %v856
  %v914 = vpack.c.b16 %v859, %v858
  %v915 = vpack.c.b16 %v861, %v860
  %v916 = vpack.c.b16 %v863, %v862
  %v917 = vpack.c.b16 %v865, %v864
  %v918 = vpack.c.b16 %v867, %v866
  %v919 = vpack.c.b16 %v869, %v868
  %v920 = vpack.c.b16 %v871, %v870
  %v921 = vpack.c.b16 %v873, %v872
  %v922 = vpack.c.b16 %v875, %v874
  %v923 = vpack.c.b16 %v877, %v876
  %v924 = vpack.c.b16 %v879, %v878
  %v925 = vpack.c.b16 %v881, %v880
  %v926 = vpack.c.b16 %v883, %v882
  %v927 = vpack.c.b16 %v885, %v884
  %v928 = vpack.c.b16 %v887, %v886
  %v929 = vpack.c.b16 %v889, %v888
  %v930 = vpack.c.b16 %v891, %v890
  %v931 = vpack.c.b16 %v893, %v892
  %v932 = vpack.c.b16 %v895, %v894
  %v933 = vpack.c.b16 %v897, %v896
  %v934 = vpack.c.b16 %v899, %v898
  %v935 = vpack.c.b16 %v901, %v900
  %v936 = vpack.c.b16 %v903, %v902
  %v937 = vpack.c.b16 %v905, %v904
  %970 = vmatpush.bf16.msra.mxu0 %v913
  %971 = vmatpush.bf16.msra.mxu0 %v912
  %972 = vmatpush.bf16.msra.mxu0 %v911
  %973 = vmatpush.bf16.msra.mxu0 %v910
  %974 = vmatpush.bf16.msra.mxu0 %v909
  %975 = vmatpush.bf16.msra.mxu0 %v908
  %976 = vmatpush.bf16.msra.mxu0 %v907
  %977 = vmatpush.bf16.msra.mxu0 %v906
  %978 = vmatmul.bf16.gmra.mxu0 %v546
  %v979 = vpop.f32.mrf.mxu0
  %v980 = vadd.f32 %v196, %v979
  %v981 = vpop.f32.mrf.mxu0
  %v982 = vadd.f32 %v196, %v981
  %983 = vmatmul.bf16.gmra.mxu0 %v550
  %v984 = vpop.f32.mrf.mxu0
  %v985 = vadd.f32 %v196, %v984
  %v986 = vpop.f32.mrf.mxu0
  %v987 = vadd.f32 %v196, %v986
  %988 = vmatmul.bf16.gmra.mxu0 %v554
  %v989 = vpop.f32.mrf.mxu0
  %v990 = vadd.f32 %v196, %v989
  %v991 = vpop.f32.mrf.mxu0
  %v992 = vadd.f32 %v196, %v991
  %993 = vmatmul.bf16.gmra.mxu0 %v558
  %v994 = vpop.f32.mrf.mxu0
  %v995 = vadd.f32 %v196, %v994
  %v996 = vpop.f32.mrf.mxu0
  %v997 = vadd.f32 %v196, %v996
  %998 = vmatmul.bf16.gmra.mxu0 %v562
  %v999 = vpop.f32.mrf.mxu0
  %v1000 = vadd.f32 %v196, %v999
  %v1001 = vpop.f32.mrf.mxu0
  %v1002 = vadd.f32 %v196, %v1001
  %1003 = vmatmul.bf16.gmra.mxu0 %v566
  %v1004 = vpop.f32.mrf.mxu0
  %v1005 = vadd.f32 %v196, %v1004
  %v1006 = vpop.f32.mrf.mxu0
  %v1007 = vadd.f32 %v196, %v1006
  %1008 = vmatmul.bf16.gmra.mxu0 %v570
  %v1009 = vpop.f32.mrf.mxu0
  %v1010 = vadd.f32 %v196, %v1009
  %v1011 = vpop.f32.mrf.mxu0
  %v1012 = vadd.f32 %v196, %v1011
  %1013 = vmatmul.bf16.gmra.mxu0 %v574
  %v1014 = vpop.f32.mrf.mxu0
  %v1015 = vadd.f32 %v196, %v1014
  %v1016 = vpop.f32.mrf.mxu0
  %v1017 = vadd.f32 %v196, %v1016
  %1018 = vmatmul.bf16.gmra.mxu0 %v578
  %v1019 = vpop.f32.mrf.mxu0
  %v1020 = vadd.f32 %v196, %v1019
  %v1021 = vpop.f32.mrf.mxu0
  %v1022 = vadd.f32 %v196, %v1021
  %1023 = vmatmul.bf16.gmra.mxu0 %v582
  %v1024 = vpop.f32.mrf.mxu0
  %v1025 = vadd.f32 %v196, %v1024
  %v1026 = vpop.f32.mrf.mxu0
  %v1027 = vadd.f32 %v196, %v1026
  %1028 = vmatmul.bf16.gmra.mxu0 %v586
  %v1029 = vpop.f32.mrf.mxu0
  %v1030 = vadd.f32 %v196, %v1029
  %v1031 = vpop.f32.mrf.mxu0
  %v1032 = vadd.f32 %v196, %v1031
  %1033 = vmatmul.bf16.gmra.mxu0 %v590
  %v1034 = vpop.f32.mrf.mxu0
  %v1035 = vadd.f32 %v196, %v1034
  %v1036 = vpop.f32.mrf.mxu0
  %v1037 = vadd.f32 %v196, %v1036
  %1038 = vmatmul.bf16.gmra.mxu0 %v594
  %v1039 = vpop.f32.mrf.mxu0
  %v1040 = vadd.f32 %v196, %v1039
  %v1041 = vpop.f32.mrf.mxu0
  %v1042 = vadd.f32 %v196, %v1041
  %1043 = vmatmul.bf16.gmra.mxu0 %v598
  %v1044 = vpop.f32.mrf.mxu0
  %v1045 = vadd.f32 %v196, %v1044
  %v1046 = vpop.f32.mrf.mxu0
  %v1047 = vadd.f32 %v196, %v1046
  %1048 = vmatmul.bf16.gmra.mxu0 %v602
  %v1049 = vpop.f32.mrf.mxu0
  %v1050 = vadd.f32 %v196, %v1049
  %v1051 = vpop.f32.mrf.mxu0
  %v1052 = vadd.f32 %v196, %v1051
  %1053 = vmatmul.bf16.gmra.mxu0 %v606
  %v1054 = vpop.f32.mrf.mxu0
  %v1055 = vadd.f32 %v196, %v1054
  %v1056 = vpop.f32.mrf.mxu0
  %v1057 = vadd.f32 %v196, %v1056
  %1058 = vmatmul.bf16.gmra.mxu0 %v610
  %v1059 = vpop.f32.mrf.mxu0
  %v1060 = vadd.f32 %v196, %v1059
  %v1061 = vpop.f32.mrf.mxu0
  %v1062 = vadd.f32 %v196, %v1061
  %1063 = vmatmul.bf16.gmra.mxu0 %v614
  %v1064 = vpop.f32.mrf.mxu0
  %v1065 = vadd.f32 %v196, %v1064
  %v1066 = vpop.f32.mrf.mxu0
  %v1067 = vadd.f32 %v196, %v1066
  %1068 = vmatmul.bf16.gmra.mxu0 %v618
  %v1069 = vpop.f32.mrf.mxu0
  %v1070 = vadd.f32 %v196, %v1069
  %v1071 = vpop.f32.mrf.mxu0
  %v1072 = vadd.f32 %v196, %v1071
  %1073 = vmatmul.bf16.gmra.mxu0 %v622
  %v1074 = vpop.f32.mrf.mxu0
  %v1075 = vadd.f32 %v196, %v1074
  %v1076 = vpop.f32.mrf.mxu0
  %v1077 = vadd.f32 %v196, %v1076
  %1078 = vmatmul.bf16.gmra.mxu0 %v626
  %v1079 = vpop.f32.mrf.mxu0
  %v1080 = vadd.f32 %v196, %v1079
  %v1081 = vpop.f32.mrf.mxu0
  %v1082 = vadd.f32 %v196, %v1081
  %1083 = vmatmul.bf16.gmra.mxu0 %v630
  %v1084 = vpop.f32.mrf.mxu0
  %v1085 = vadd.f32 %v196, %v1084
  %v1086 = vpop.f32.mrf.mxu0
  %v1087 = vadd.f32 %v196, %v1086
  %1088 = vmatmul.bf16.gmra.mxu0 %v634
  %v1089 = vpop.f32.mrf.mxu0
  %v1090 = vadd.f32 %v196, %v1089
  %v1091 = vpop.f32.mrf.mxu0
  %v1092 = vadd.f32 %v196, %v1091
  %1093 = vmatmul.bf16.gmra.mxu0 %v638
  %v1094 = vpop.f32.mrf.mxu0
  %v1095 = vadd.f32 %v196, %v1094
  %v1096 = vpop.f32.mrf.mxu0
  %v1097 = vadd.f32 %v196, %v1096
  %1098 = vmatmul.bf16.gmra.mxu0 %v642
  %v1099 = vpop.f32.mrf.mxu0
  %v1100 = vadd.f32 %v196, %v1099
  %v1101 = vpop.f32.mrf.mxu0
  %v1102 = vadd.f32 %v196, %v1101
  %1103 = vmatmul.bf16.gmra.mxu0 %v646
  %v1104 = vpop.f32.mrf.mxu0
  %v1105 = vadd.f32 %v196, %v1104
  %v1106 = vpop.f32.mrf.mxu0
  %v1107 = vadd.f32 %v196, %v1106
  %1108 = vmatmul.bf16.gmra.mxu0 %v650
  %v1109 = vpop.f32.mrf.mxu0
  %v1110 = vadd.f32 %v196, %v1109
  %v1111 = vpop.f32.mrf.mxu0
  %v1112 = vadd.f32 %v196, %v1111
  %1113 = vmatmul.bf16.gmra.mxu0 %v654
  %v1114 = vpop.f32.mrf.mxu0
  %v1115 = vadd.f32 %v196, %v1114
  %v1116 = vpop.f32.mrf.mxu0
  %v1117 = vadd.f32 %v196, %v1116
  %1118 = vmatmul.bf16.gmra.mxu0 %v658
  %v1119 = vpop.f32.mrf.mxu0
  %v1120 = vadd.f32 %v196, %v1119
  %v1121 = vpop.f32.mrf.mxu0
  %v1122 = vadd.f32 %v196, %v1121
  %1123 = vdwg.mxu0
  %1124 = vmatpush.bf16.msra.mxu0 %v921
  %1125 = vmatpush.bf16.msra.mxu0 %v920
  %1126 = vmatpush.bf16.msra.mxu0 %v919
  %1127 = vmatpush.bf16.msra.mxu0 %v918
  %1128 = vmatpush.bf16.msra.mxu0 %v917
  %1129 = vmatpush.bf16.msra.mxu0 %v916
  %1130 = vmatpush.bf16.msra.mxu0 %v915
  %1131 = vmatpush.bf16.msra.mxu0 %v914
  %1132 = vmatmul.bf16.gmra.mxu0 %v547
  %v1133 = vpop.f32.mrf.mxu0
  %v1134 = vadd.f32 %v980, %v1133
  %v1135 = vpop.f32.mrf.mxu0
  %v1136 = vadd.f32 %v982, %v1135
  %1137 = vmatmul.bf16.gmra.mxu0 %v551
  %v1138 = vpop.f32.mrf.mxu0
  %v1139 = vadd.f32 %v985, %v1138
  %v1140 = vpop.f32.mrf.mxu0
  %v1141 = vadd.f32 %v987, %v1140
  %1142 = vmatmul.bf16.gmra.mxu0 %v555
  %v1143 = vpop.f32.mrf.mxu0
  %v1144 = vadd.f32 %v990, %v1143
  %v1145 = vpop.f32.mrf.mxu0
  %v1146 = vadd.f32 %v992, %v1145
  %1147 = vmatmul.bf16.gmra.mxu0 %v559
  %v1148 = vpop.f32.mrf.mxu0
  %v1149 = vadd.f32 %v995, %v1148
  %v1150 = vpop.f32.mrf.mxu0
  %v1151 = vadd.f32 %v997, %v1150
  %1152 = vmatmul.bf16.gmra.mxu0 %v563
  %v1153 = vpop.f32.mrf.mxu0
  %v1154 = vadd.f32 %v1000, %v1153
  %v1155 = vpop.f32.mrf.mxu0
  %v1156 = vadd.f32 %v1002, %v1155
  %1157 = vmatmul.bf16.gmra.mxu0 %v567
  %v1158 = vpop.f32.mrf.mxu0
  %v1159 = vadd.f32 %v1005, %v1158
  %v1160 = vpop.f32.mrf.mxu0
  %v1161 = vadd.f32 %v1007, %v1160
  %1162 = vmatmul.bf16.gmra.mxu0 %v571
  %v1163 = vpop.f32.mrf.mxu0
  %v1164 = vadd.f32 %v1010, %v1163
  %v1165 = vpop.f32.mrf.mxu0
  %v1166 = vadd.f32 %v1012, %v1165
  %1167 = vmatmul.bf16.gmra.mxu0 %v575
  %v1168 = vpop.f32.mrf.mxu0
  %v1169 = vadd.f32 %v1015, %v1168
  %v1170 = vpop.f32.mrf.mxu0
  %v1171 = vadd.f32 %v1017, %v1170
  %1172 = vmatmul.bf16.gmra.mxu0 %v579
  %v1173 = vpop.f32.mrf.mxu0
  %v1174 = vadd.f32 %v1020, %v1173
  %v1175 = vpop.f32.mrf.mxu0
  %v1176 = vadd.f32 %v1022, %v1175
  %1177 = vmatmul.bf16.gmra.mxu0 %v583
  %v1178 = vpop.f32.mrf.mxu0
  %v1179 = vadd.f32 %v1025, %v1178
  %v1180 = vpop.f32.mrf.mxu0
  %v1181 = vadd.f32 %v1027, %v1180
  %1182 = vmatmul.bf16.gmra.mxu0 %v587
  %v1183 = vpop.f32.mrf.mxu0
  %v1184 = vadd.f32 %v1030, %v1183
  %v1185 = vpop.f32.mrf.mxu0
  %v1186 = vadd.f32 %v1032, %v1185
  %1187 = vmatmul.bf16.gmra.mxu0 %v591
  %v1188 = vpop.f32.mrf.mxu0
  %v1189 = vadd.f32 %v1035, %v1188
  %v1190 = vpop.f32.mrf.mxu0
  %v1191 = vadd.f32 %v1037, %v1190
  %1192 = vmatmul.bf16.gmra.mxu0 %v595
  %v1193 = vpop.f32.mrf.mxu0
  %v1194 = vadd.f32 %v1040, %v1193
  %v1195 = vpop.f32.mrf.mxu0
  %v1196 = vadd.f32 %v1042, %v1195
  %1197 = vmatmul.bf16.gmra.mxu0 %v599
  %v1198 = vpop.f32.mrf.mxu0
  %v1199 = vadd.f32 %v1045, %v1198
  %v1200 = vpop.f32.mrf.mxu0
  %v1201 = vadd.f32 %v1047, %v1200
  %1202 = vmatmul.bf16.gmra.mxu0 %v603
  %v1203 = vpop.f32.mrf.mxu0
  %v1204 = vadd.f32 %v1050, %v1203
  %v1205 = vpop.f32.mrf.mxu0
  %v1206 = vadd.f32 %v1052, %v1205
  %1207 = vmatmul.bf16.gmra.mxu0 %v607
  %v1208 = vpop.f32.mrf.mxu0
  %v1209 = vadd.f32 %v1055, %v1208
  %v1210 = vpop.f32.mrf.mxu0
  %v1211 = vadd.f32 %v1057, %v1210
  %1212 = vmatmul.bf16.gmra.mxu0 %v611
  %v1213 = vpop.f32.mrf.mxu0
  %v1214 = vadd.f32 %v1060, %v1213
  %v1215 = vpop.f32.mrf.mxu0
  %v1216 = vadd.f32 %v1062, %v1215
  %1217 = vmatmul.bf16.gmra.mxu0 %v615
  %v1218 = vpop.f32.mrf.mxu0
  %v1219 = vadd.f32 %v1065, %v1218
  %v1220 = vpop.f32.mrf.mxu0
  %v1221 = vadd.f32 %v1067, %v1220
  %1222 = vmatmul.bf16.gmra.mxu0 %v619
  %v1223 = vpop.f32.mrf.mxu0
  %v1224 = vadd.f32 %v1070, %v1223
  %v1225 = vpop.f32.mrf.mxu0
  %v1226 = vadd.f32 %v1072, %v1225
  %1227 = vmatmul.bf16.gmra.mxu0 %v623
  %v1228 = vpop.f32.mrf.mxu0
  %v1229 = vadd.f32 %v1075, %v1228
  %v1230 = vpop.f32.mrf.mxu0
  %v1231 = vadd.f32 %v1077, %v1230
  %1232 = vmatmul.bf16.gmra.mxu0 %v627
  %v1233 = vpop.f32.mrf.mxu0
  %v1234 = vadd.f32 %v1080, %v1233
  %v1235 = vpop.f32.mrf.mxu0
  %v1236 = vadd.f32 %v1082, %v1235
  %1237 = vmatmul.bf16.gmra.mxu0 %v631
  %v1238 = vpop.f32.mrf.mxu0
  %v1239 = vadd.f32 %v1085, %v1238
  %v1240 = vpop.f32.mrf.mxu0
  %v1241 = vadd.f32 %v1087, %v1240
  %1242 = vmatmul.bf16.gmra.mxu0 %v635
  %v1243 = vpop.f32.mrf.mxu0
  %v1244 = vadd.f32 %v1090, %v1243
  %v1245 = vpop.f32.mrf.mxu0
  %v1246 = vadd.f32 %v1092, %v1245
  %1247 = vmatmul.bf16.gmra.mxu0 %v639
  %v1248 = vpop.f32.mrf.mxu0
  %v1249 = vadd.f32 %v1095, %v1248
  %v1250 = vpop.f32.mrf.mxu0
  %v1251 = vadd.f32 %v1097, %v1250
  %1252 = vmatmul.bf16.gmra.mxu0 %v643
  %v1253 = vpop.f32.mrf.mxu0
  %v1254 = vadd.f32 %v1100, %v1253
  %v1255 = vpop.f32.mrf.mxu0
  %v1256 = vadd.f32 %v1102, %v1255
  %1257 = vmatmul.bf16.gmra.mxu0 %v647
  %v1258 = vpop.f32.mrf.mxu0
  %v1259 = vadd.f32 %v1105, %v1258
  %v1260 = vpop.f32.mrf.mxu0
  %v1261 = vadd.f32 %v1107, %v1260
  %1262 = vmatmul.bf16.gmra.mxu0 %v651
  %v1263 = vpop.f32.mrf.mxu0
  %v1264 = vadd.f32 %v1110, %v1263
  %v1265 = vpop.f32.mrf.mxu0
  %v1266 = vadd.f32 %v1112, %v1265
  %1267 = vmatmul.bf16.gmra.mxu0 %v655
  %v1268 = vpop.f32.mrf.mxu0
  %v1269 = vadd.f32 %v1115, %v1268
  %v1270 = vpop.f32.mrf.mxu0
  %v1271 = vadd.f32 %v1117, %v1270
  %1272 = vmatmul.bf16.gmra.mxu0 %v659
  %v1273 = vpop.f32.mrf.mxu0
  %v1274 = vadd.f32 %v1120, %v1273
  %v1275 = vpop.f32.mrf.mxu0
  %v1276 = vadd.f32 %v1122, %v1275
  %1277 = vdwg.mxu0
  %1278 = vmatpush.bf16.msra.mxu0 %v929
  %1279 = vmatpush.bf16.msra.mxu0 %v928
  %1280 = vmatpush.bf16.msra.mxu0 %v927
  %1281 = vmatpush.bf16.msra.mxu0 %v926
  %1282 = vmatpush.bf16.msra.mxu0 %v925
  %1283 = vmatpush.bf16.msra.mxu0 %v924
  %1284 = vmatpush.bf16.msra.mxu0 %v923
  %1285 = vmatpush.bf16.msra.mxu0 %v922
  %1286 = vmatmul.bf16.gmra.mxu0 %v548
  %v1287 = vpop.f32.mrf.mxu0
  %v1288 = vadd.f32 %v1134, %v1287
  %v1289 = vpop.f32.mrf.mxu0
  %v1290 = vadd.f32 %v1136, %v1289
  %1291 = vmatmul.bf16.gmra.mxu0 %v552
  %v1292 = vpop.f32.mrf.mxu0
  %v1293 = vadd.f32 %v1139, %v1292
  %v1294 = vpop.f32.mrf.mxu0
  %v1295 = vadd.f32 %v1141, %v1294
  %1296 = vmatmul.bf16.gmra.mxu0 %v556
  %v1297 = vpop.f32.mrf.mxu0
  %v1298 = vadd.f32 %v1144, %v1297
  %v1299 = vpop.f32.mrf.mxu0
  %v1300 = vadd.f32 %v1146, %v1299
  %1301 = vmatmul.bf16.gmra.mxu0 %v560
  %v1302 = vpop.f32.mrf.mxu0
  %v1303 = vadd.f32 %v1149, %v1302
  %v1304 = vpop.f32.mrf.mxu0
  %v1305 = vadd.f32 %v1151, %v1304
  %1306 = vmatmul.bf16.gmra.mxu0 %v564
  %v1307 = vpop.f32.mrf.mxu0
  %v1308 = vadd.f32 %v1154, %v1307
  %v1309 = vpop.f32.mrf.mxu0
  %v1310 = vadd.f32 %v1156, %v1309
  %1311 = vmatmul.bf16.gmra.mxu0 %v568
  %v1312 = vpop.f32.mrf.mxu0
  %v1313 = vadd.f32 %v1159, %v1312
  %v1314 = vpop.f32.mrf.mxu0
  %v1315 = vadd.f32 %v1161, %v1314
  %1316 = vmatmul.bf16.gmra.mxu0 %v572
  %v1317 = vpop.f32.mrf.mxu0
  %v1318 = vadd.f32 %v1164, %v1317
  %v1319 = vpop.f32.mrf.mxu0
  %v1320 = vadd.f32 %v1166, %v1319
  %1321 = vmatmul.bf16.gmra.mxu0 %v576
  %v1322 = vpop.f32.mrf.mxu0
  %v1323 = vadd.f32 %v1169, %v1322
  %v1324 = vpop.f32.mrf.mxu0
  %v1325 = vadd.f32 %v1171, %v1324
  %1326 = vmatmul.bf16.gmra.mxu0 %v580
  %v1327 = vpop.f32.mrf.mxu0
  %v1328 = vadd.f32 %v1174, %v1327
  %v1329 = vpop.f32.mrf.mxu0
  %v1330 = vadd.f32 %v1176, %v1329
  %1331 = vmatmul.bf16.gmra.mxu0 %v584
  %v1332 = vpop.f32.mrf.mxu0
  %v1333 = vadd.f32 %v1179, %v1332
  %v1334 = vpop.f32.mrf.mxu0
  %v1335 = vadd.f32 %v1181, %v1334
  %1336 = vmatmul.bf16.gmra.mxu0 %v588
  %v1337 = vpop.f32.mrf.mxu0
  %v1338 = vadd.f32 %v1184, %v1337
  %v1339 = vpop.f32.mrf.mxu0
  %v1340 = vadd.f32 %v1186, %v1339
  %1341 = vmatmul.bf16.gmra.mxu0 %v592
  %v1342 = vpop.f32.mrf.mxu0
  %v1343 = vadd.f32 %v1189, %v1342
  %v1344 = vpop.f32.mrf.mxu0
  %v1345 = vadd.f32 %v1191, %v1344
  %1346 = vmatmul.bf16.gmra.mxu0 %v596
  %v1347 = vpop.f32.mrf.mxu0
  %v1348 = vadd.f32 %v1194, %v1347
  %v1349 = vpop.f32.mrf.mxu0
  %v1350 = vadd.f32 %v1196, %v1349
  %1351 = vmatmul.bf16.gmra.mxu0 %v600
  %v1352 = vpop.f32.mrf.mxu0
  %v1353 = vadd.f32 %v1199, %v1352
  %v1354 = vpop.f32.mrf.mxu0
  %v1355 = vadd.f32 %v1201, %v1354
  %1356 = vmatmul.bf16.gmra.mxu0 %v604
  %v1357 = vpop.f32.mrf.mxu0
  %v1358 = vadd.f32 %v1204, %v1357
  %v1359 = vpop.f32.mrf.mxu0
  %v1360 = vadd.f32 %v1206, %v1359
  %1361 = vmatmul.bf16.gmra.mxu0 %v608
  %v1362 = vpop.f32.mrf.mxu0
  %v1363 = vadd.f32 %v1209, %v1362
  %v1364 = vpop.f32.mrf.mxu0
  %v1365 = vadd.f32 %v1211, %v1364
  %1366 = vmatmul.bf16.gmra.mxu0 %v612
  %v1367 = vpop.f32.mrf.mxu0
  %v1368 = vadd.f32 %v1214, %v1367
  %v1369 = vpop.f32.mrf.mxu0
  %v1370 = vadd.f32 %v1216, %v1369
  %1371 = vmatmul.bf16.gmra.mxu0 %v616
  %v1372 = vpop.f32.mrf.mxu0
  %v1373 = vadd.f32 %v1219, %v1372
  %v1374 = vpop.f32.mrf.mxu0
  %v1375 = vadd.f32 %v1221, %v1374
  %1376 = vmatmul.bf16.gmra.mxu0 %v620
  %v1377 = vpop.f32.mrf.mxu0
  %v1378 = vadd.f32 %v1224, %v1377
  %v1379 = vpop.f32.mrf.mxu0
  %v1380 = vadd.f32 %v1226, %v1379
  %1381 = vmatmul.bf16.gmra.mxu0 %v624
  %v1382 = vpop.f32.mrf.mxu0
  %v1383 = vadd.f32 %v1229, %v1382
  %v1384 = vpop.f32.mrf.mxu0
  %v1385 = vadd.f32 %v1231, %v1384
  %1386 = vmatmul.bf16.gmra.mxu0 %v628
  %v1387 = vpop.f32.mrf.mxu0
  %v1388 = vadd.f32 %v1234, %v1387
  %v1389 = vpop.f32.mrf.mxu0
  %v1390 = vadd.f32 %v1236, %v1389
  %1391 = vmatmul.bf16.gmra.mxu0 %v632
  %v1392 = vpop.f32.mrf.mxu0
  %v1393 = vadd.f32 %v1239, %v1392
  %v1394 = vpop.f32.mrf.mxu0
  %v1395 = vadd.f32 %v1241, %v1394
  %1396 = vmatmul.bf16.gmra.mxu0 %v636
  %v1397 = vpop.f32.mrf.mxu0
  %v1398 = vadd.f32 %v1244, %v1397
  %v1399 = vpop.f32.mrf.mxu0
  %v1400 = vadd.f32 %v1246, %v1399
  %1401 = vmatmul.bf16.gmra.mxu0 %v640
  %v1402 = vpop.f32.mrf.mxu0
  %v1403 = vadd.f32 %v1249, %v1402
  %v1404 = vpop.f32.mrf.mxu0
  %v1405 = vadd.f32 %v1251, %v1404
  %1406 = vmatmul.bf16.gmra.mxu0 %v644
  %v1407 = vpop.f32.mrf.mxu0
  %v1408 = vadd.f32 %v1254, %v1407
  %v1409 = vpop.f32.mrf.mxu0
  %v1410 = vadd.f32 %v1256, %v1409
  %1411 = vmatmul.bf16.gmra.mxu0 %v648
  %v1412 = vpop.f32.mrf.mxu0
  %v1413 = vadd.f32 %v1259, %v1412
  %v1414 = vpop.f32.mrf.mxu0
  %v1415 = vadd.f32 %v1261, %v1414
  %1416 = vmatmul.bf16.gmra.mxu0 %v652
  %v1417 = vpop.f32.mrf.mxu0
  %v1418 = vadd.f32 %v1264, %v1417
  %v1419 = vpop.f32.mrf.mxu0
  %v1420 = vadd.f32 %v1266, %v1419
  %1421 = vmatmul.bf16.gmra.mxu0 %v656
  %v1422 = vpop.f32.mrf.mxu0
  %v1423 = vadd.f32 %v1269, %v1422
  %v1424 = vpop.f32.mrf.mxu0
  %v1425 = vadd.f32 %v1271, %v1424
  %1426 = vmatmul.bf16.gmra.mxu0 %v660
  %v1427 = vpop.f32.mrf.mxu0
  %v1428 = vadd.f32 %v1274, %v1427
  %v1429 = vpop.f32.mrf.mxu0
  %v1430 = vadd.f32 %v1276, %v1429
  %1431 = vdwg.mxu0
  %1432 = vmatpush.bf16.msra.mxu0 %v937
  %1433 = vmatpush.bf16.msra.mxu0 %v936
  %1434 = vmatpush.bf16.msra.mxu0 %v935
  %1435 = vmatpush.bf16.msra.mxu0 %v934
  %1436 = vmatpush.bf16.msra.mxu0 %v933
  %1437 = vmatpush.bf16.msra.mxu0 %v932
  %1438 = vmatpush.bf16.msra.mxu0 %v931
  %1439 = vmatpush.bf16.msra.mxu0 %v930
  %1440 = vmatmul.bf16.gmra.mxu0 %v549
  %v1441 = vpop.f32.mrf.mxu0
  %v1442 = vadd.f32 %v1288, %v1441
  %v1443 = vpop.f32.mrf.mxu0
  %v1444 = vadd.f32 %v1290, %v1443
  %1445 = vmatmul.bf16.gmra.mxu0 %v553
  %v1446 = vpop.f32.mrf.mxu0
  %v1447 = vadd.f32 %v1293, %v1446
  %v1448 = vpop.f32.mrf.mxu0
  %v1449 = vadd.f32 %v1295, %v1448
  %1450 = vmatmul.bf16.gmra.mxu0 %v557
  %v1451 = vpop.f32.mrf.mxu0
  %v1452 = vadd.f32 %v1298, %v1451
  %v1453 = vpop.f32.mrf.mxu0
  %v1454 = vadd.f32 %v1300, %v1453
  %1455 = vmatmul.bf16.gmra.mxu0 %v561
  %v1456 = vpop.f32.mrf.mxu0
  %v1457 = vadd.f32 %v1303, %v1456
  %v1458 = vpop.f32.mrf.mxu0
  %v1459 = vadd.f32 %v1305, %v1458
  %1460 = vmatmul.bf16.gmra.mxu0 %v565
  %v1461 = vpop.f32.mrf.mxu0
  %v1462 = vadd.f32 %v1308, %v1461
  %v1463 = vpop.f32.mrf.mxu0
  %v1464 = vadd.f32 %v1310, %v1463
  %1465 = vmatmul.bf16.gmra.mxu0 %v569
  %v1466 = vpop.f32.mrf.mxu0
  %v1467 = vadd.f32 %v1313, %v1466
  %v1468 = vpop.f32.mrf.mxu0
  %v1469 = vadd.f32 %v1315, %v1468
  %1470 = vmatmul.bf16.gmra.mxu0 %v573
  %v1471 = vpop.f32.mrf.mxu0
  %v1472 = vadd.f32 %v1318, %v1471
  %v1473 = vpop.f32.mrf.mxu0
  %v1474 = vadd.f32 %v1320, %v1473
  %1475 = vmatmul.bf16.gmra.mxu0 %v577
  %v1476 = vpop.f32.mrf.mxu0
  %v1477 = vadd.f32 %v1323, %v1476
  %v1478 = vpop.f32.mrf.mxu0
  %v1479 = vadd.f32 %v1325, %v1478
  %1480 = vmatmul.bf16.gmra.mxu0 %v581
  %v1481 = vpop.f32.mrf.mxu0
  %v1482 = vadd.f32 %v1328, %v1481
  %v1483 = vpop.f32.mrf.mxu0
  %v1484 = vadd.f32 %v1330, %v1483
  %1485 = vmatmul.bf16.gmra.mxu0 %v585
  %v1486 = vpop.f32.mrf.mxu0
  %v1487 = vadd.f32 %v1333, %v1486
  %v1488 = vpop.f32.mrf.mxu0
  %v1489 = vadd.f32 %v1335, %v1488
  %1490 = vmatmul.bf16.gmra.mxu0 %v589
  %v1491 = vpop.f32.mrf.mxu0
  %v1492 = vadd.f32 %v1338, %v1491
  %v1493 = vpop.f32.mrf.mxu0
  %v1494 = vadd.f32 %v1340, %v1493
  %1495 = vmatmul.bf16.gmra.mxu0 %v593
  %v1496 = vpop.f32.mrf.mxu0
  %v1497 = vadd.f32 %v1343, %v1496
  %v1498 = vpop.f32.mrf.mxu0
  %v1499 = vadd.f32 %v1345, %v1498
  %1500 = vmatmul.bf16.gmra.mxu0 %v597
  %v1501 = vpop.f32.mrf.mxu0
  %v1502 = vadd.f32 %v1348, %v1501
  %v1503 = vpop.f32.mrf.mxu0
  %v1504 = vadd.f32 %v1350, %v1503
  %1505 = vmatmul.bf16.gmra.mxu0 %v601
  %v1506 = vpop.f32.mrf.mxu0
  %v1507 = vadd.f32 %v1353, %v1506
  %v1508 = vpop.f32.mrf.mxu0
  %v1509 = vadd.f32 %v1355, %v1508
  %1510 = vmatmul.bf16.gmra.mxu0 %v605
  %v1511 = vpop.f32.mrf.mxu0
  %v1512 = vadd.f32 %v1358, %v1511
  %v1513 = vpop.f32.mrf.mxu0
  %v1514 = vadd.f32 %v1360, %v1513
  %1515 = vmatmul.bf16.gmra.mxu0 %v609
  %v1516 = vpop.f32.mrf.mxu0
  %v1517 = vadd.f32 %v1363, %v1516
  %v1518 = vpop.f32.mrf.mxu0
  %v1519 = vadd.f32 %v1365, %v1518
  %1520 = vmatmul.bf16.gmra.mxu0 %v613
  %v1521 = vpop.f32.mrf.mxu0
  %v1522 = vadd.f32 %v1368, %v1521
  %v1523 = vpop.f32.mrf.mxu0
  %v1524 = vadd.f32 %v1370, %v1523
  %1525 = vmatmul.bf16.gmra.mxu0 %v617
  %v1526 = vpop.f32.mrf.mxu0
  %v1527 = vadd.f32 %v1373, %v1526
  %v1528 = vpop.f32.mrf.mxu0
  %v1529 = vadd.f32 %v1375, %v1528
  %1530 = vmatmul.bf16.gmra.mxu0 %v621
  %v1531 = vpop.f32.mrf.mxu0
  %v1532 = vadd.f32 %v1378, %v1531
  %v1533 = vpop.f32.mrf.mxu0
  %v1534 = vadd.f32 %v1380, %v1533
  %1535 = vmatmul.bf16.gmra.mxu0 %v625
  %v1536 = vpop.f32.mrf.mxu0
  %v1537 = vadd.f32 %v1383, %v1536
  %v1538 = vpop.f32.mrf.mxu0
  %v1539 = vadd.f32 %v1385, %v1538
  %1540 = vmatmul.bf16.gmra.mxu0 %v629
  %v1541 = vpop.f32.mrf.mxu0
  %v1542 = vadd.f32 %v1388, %v1541
  %v1543 = vpop.f32.mrf.mxu0
  %v1544 = vadd.f32 %v1390, %v1543
  %1545 = vmatmul.bf16.gmra.mxu0 %v633
  %v1546 = vpop.f32.mrf.mxu0
  %v1547 = vadd.f32 %v1393, %v1546
  %v1548 = vpop.f32.mrf.mxu0
  %v1549 = vadd.f32 %v1395, %v1548
  %1550 = vmatmul.bf16.gmra.mxu0 %v637
  %v1551 = vpop.f32.mrf.mxu0
  %v1552 = vadd.f32 %v1398, %v1551
  %v1553 = vpop.f32.mrf.mxu0
  %v1554 = vadd.f32 %v1400, %v1553
  %1555 = vmatmul.bf16.gmra.mxu0 %v641
  %v1556 = vpop.f32.mrf.mxu0
  %v1557 = vadd.f32 %v1403, %v1556
  %v1558 = vpop.f32.mrf.mxu0
  %v1559 = vadd.f32 %v1405, %v1558
  %1560 = vmatmul.bf16.gmra.mxu0 %v645
  %v1561 = vpop.f32.mrf.mxu0
  %v1562 = vadd.f32 %v1408, %v1561
  %v1563 = vpop.f32.mrf.mxu0
  %v1564 = vadd.f32 %v1410, %v1563
  %1565 = vmatmul.bf16.gmra.mxu0 %v649
  %v1566 = vpop.f32.mrf.mxu0
  %v1567 = vadd.f32 %v1413, %v1566
  %v1568 = vpop.f32.mrf.mxu0
  %v1569 = vadd.f32 %v1415, %v1568
  %1570 = vmatmul.bf16.gmra.mxu0 %v653
  %v1571 = vpop.f32.mrf.mxu0
  %v1572 = vadd.f32 %v1418, %v1571
  %v1573 = vpop.f32.mrf.mxu0
  %v1574 = vadd.f32 %v1420, %v1573
  %1575 = vmatmul.bf16.gmra.mxu0 %v657
  %v1576 = vpop.f32.mrf.mxu0
  %v1577 = vadd.f32 %v1423, %v1576
  %v1578 = vpop.f32.mrf.mxu0
  %v1579 = vadd.f32 %v1425, %v1578
  %1580 = vmatmul.bf16.gmra.mxu0 %v661
  %v1581 = vpop.f32.mrf.mxu0
  %v1582 = vadd.f32 %v1428, %v1581
  %v1583 = vpop.f32.mrf.mxu0
  %v1584 = vadd.f32 %v1430, %v1583
  %1585 = vdwg.mxu0
  %v1586 = vmax.f32 %v1442, 0.0
  %v1587 = vmax.f32 %v1444, 0.0
  %v1588 = vmax.f32 %v1447, 0.0
  %v1589 = vmax.f32 %v1449, 0.0
  %v1590 = vmax.f32 %v1452, 0.0
  %v1591 = vmax.f32 %v1454, 0.0
  %v1592 = vmax.f32 %v1457, 0.0
  %v1593 = vmax.f32 %v1459, 0.0
  %v1594 = vmax.f32 %v1462, 0.0
  %v1595 = vmax.f32 %v1464, 0.0
  %v1596 = vmax.f32 %v1467, 0.0
  %v1597 = vmax.f32 %v1469, 0.0
  %v1598 = vmax.f32 %v1472, 0.0
  %v1599 = vmax.f32 %v1474, 0.0
  %v1600 = vmax.f32 %v1477, 0.0
  %v1601 = vmax.f32 %v1479, 0.0
  %v1602 = vmax.f32 %v1482, 0.0
  %v1603 = vmax.f32 %v1484, 0.0
  %v1604 = vmax.f32 %v1487, 0.0
  %v1605 = vmax.f32 %v1489, 0.0
  %v1606 = vmax.f32 %v1492, 0.0
  %v1607 = vmax.f32 %v1494, 0.0
  %v1608 = vmax.f32 %v1497, 0.0
  %v1609 = vmax.f32 %v1499, 0.0
  %v1610 = vmax.f32 %v1502, 0.0
  %v1611 = vmax.f32 %v1504, 0.0
  %v1612 = vmax.f32 %v1507, 0.0
  %v1613 = vmax.f32 %v1509, 0.0
  %v1614 = vmax.f32 %v1512, 0.0
  %v1615 = vmax.f32 %v1514, 0.0
  %v1616 = vmax.f32 %v1517, 0.0
  %v1617 = vmax.f32 %v1519, 0.0
  %v1618 = vmax.f32 %v1522, 0.0
  %v1619 = vmax.f32 %v1524, 0.0
  %v1620 = vmax.f32 %v1527, 0.0
  %v1621 = vmax.f32 %v1529, 0.0
  %v1622 = vmax.f32 %v1532, 0.0
  %v1623 = vmax.f32 %v1534, 0.0
  %v1624 = vmax.f32 %v1537, 0.0
  %v1625 = vmax.f32 %v1539, 0.0
  %v1626 = vmax.f32 %v1542, 0.0
  %v1627 = vmax.f32 %v1544, 0.0
  %v1628 = vmax.f32 %v1547, 0.0
  %v1629 = vmax.f32 %v1549, 0.0
  %v1630 = vmax.f32 %v1552, 0.0
  %v1631 = vmax.f32 %v1554, 0.0
  %v1632 = vmax.f32 %v1557, 0.0
  %v1633 = vmax.f32 %v1559, 0.0
  %v1634 = vmax.f32 %v1562, 0.0
  %v1635 = vmax.f32 %v1564, 0.0
  %v1636 = vmax.f32 %v1567, 0.0
  %v1637 = vmax.f32 %v1569, 0.0
  %v1638 = vmax.f32 %v1572, 0.0
  %v1639 = vmax.f32 %v1574, 0.0
  %v1640 = vmax.f32 %v1577, 0.0
  %v1641 = vmax.f32 %v1579, 0.0
  %v1642 = vmax.f32 %v1582, 0.0
  %v1643 = vmax.f32 %v1584, 0.0
  %1644 = vst [vmem:[%s3] sm:$0xff] %v1586
  %1645 = vst [vmem:[%s3 + $0x8] sm:$0xff] %v1587
  %1646 = vst [vmem:[%s3 + $0x10] sm:$0xff] %v1588
  %1647 = vst [vmem:[%s3 + $0x18] sm:$0xff] %v1589
  %1648 = vst [vmem:[%s3 + $0x20] sm:$0xff] %v1590
  %1649 = vst [vmem:[%s3 + $0x28] sm:$0xff] %v1591
  %1650 = vst [vmem:[%s3 + $0x30] sm:$0xff] %v1592
  %1651 = vst [vmem:[%s3 + $0x38] sm:$0xff] %v1593
  %1652 = vst [vmem:[%s3 + $0x40] sm:$0xff] %v1594
  %1653 = vst [vmem:[%s3 + $0x48] sm:$0xff] %v1595
  %1654 = vst [vmem:[%s3 + $0x50] sm:$0xff] %v1596
  %1655 = vst [vmem:[%s3 + $0x58] sm:$0xff] %v1597
  %1656 = vst [vmem:[%s3 + $0x60] sm:$0xff] %v1598
  %1657 = vst [vmem:[%s3 + $0x68] sm:$0xff] %v1599
  %1658 = vst [vmem:[%s3 + $0x70] sm:$0xff] %v1600
  %1659 = vst [vmem:[%s3 + $0x78] sm:$0xff] %v1601
  %1660 = vst [vmem:[%s3 + $0x80] sm:$0xff] %v1602
  %1661 = vst [vmem:[%s3 + $0x88] sm:$0xff] %v1603
  %1662 = vst [vmem:[%s3 + $0x90] sm:$0xff] %v1604
  %1663 = vst [vmem:[%s3 + $0x98] sm:$0xff] %v1605
  %1664 = vst [vmem:[%s3 + $0xa0] sm:$0xff] %v1606
  %1665 = vst [vmem:[%s3 + $0xa8] sm:$0xff] %v1607
  %1666 = vst [vmem:[%s3 + $0xb0] sm:$0xff] %v1608
  %1667 = vst [vmem:[%s3 + $0xb8] sm:$0xff] %v1609
  %1668 = vst [vmem:[%s3 + $0xc0] sm:$0xff] %v1610
  %1669 = vst [vmem:[%s3 + $0xc8] sm:$0xff] %v1611
  %1670 = vst [vmem:[%s3 + $0xd0] sm:$0xff] %v1612
  %1671 = vst [vmem:[%s3 + $0xd8] sm:$0xff] %v1613
  %1672 = vst [vmem:[%s3 + $0xe0] sm:$0xff] %v1614
  %1673 = vst [vmem:[%s3 + $0xe8] sm:$0xff] %v1615
  %1674 = vst [vmem:[%s3 + $0xf0] sm:$0xff] %v1616
  %1675 = vst [vmem:[%s3 + $0xf8] sm:$0xff] %v1617
  %1676 = vst [vmem:[%s3 + $0x100] sm:$0xff] %v1618
  %1677 = vst [vmem:[%s3 + $0x108] sm:$0xff] %v1619
  %1678 = vst [vmem:[%s3 + $0x110] sm:$0xff] %v1620
  %1679 = vst [vmem:[%s3 + $0x118] sm:$0xff] %v1621
  %1680 = vst [vmem:[%s3 + $0x120] sm:$0xff] %v1622
  %1681 = vst [vmem:[%s3 + $0x128] sm:$0xff] %v1623
  %1682 = vst [vmem:[%s3 + $0x130] sm:$0xff] %v1624
  %1683 = vst [vmem:[%s3 + $0x138] sm:$0xff] %v1625
  %1684 = vst [vmem:[%s3 + $0x140] sm:$0xff] %v1626
  %1685 = vst [vmem:[%s3 + $0x148] sm:$0xff] %v1627
  %1686 = vst [vmem:[%s3 + $0x150] sm:$0xff] %v1628
  %1687 = vst [vmem:[%s3 + $0x158] sm:$0xff] %v1629
  %1688 = vst [vmem:[%s3 + $0x160] sm:$0xff] %v1630
  %1689 = vst [vmem:[%s3 + $0x168] sm:$0xff] %v1631
  %1690 = vst [vmem:[%s3 + $0x170] sm:$0xff] %v1632
  %1691 = vst [vmem:[%s3 + $0x178] sm:$0xff] %v1633
  %1692 = vst [vmem:[%s3 + $0x180] sm:$0xff] %v1634
  %1693 = vst [vmem:[%s3 + $0x188] sm:$0xff] %v1635
  %1694 = vst [vmem:[%s3 + $0x190] sm:$0xff] %v1636
  %1695 = vst [vmem:[%s3 + $0x198] sm:$0xff] %v1637
  %1696 = vst [vmem:[%s3 + $0x1a0] sm:$0xff] %v1638
  %1697 = vst [vmem:[%s3 + $0x1a8] sm:$0xff] %v1639
  %1698 = vst [vmem:[%s3 + $0x1b0] sm:$0xff] %v1640
  %1699 = vst [vmem:[%s3 + $0x1b8] sm:$0xff] %v1641
  %1700 = vst [vmem:[%s3 + $0x1c0] sm:$0xff] %v1642
  %1701 = vst [vmem:[%s3 + $0x1c8] sm:$0xff] %v1643
  // Predicated region
  $region14: #{autoencoder_forward.10} parent=0 // pred_check
    _
  $region15: #{autoencoder_forward.10} parent=0 // pred_check_branch
    %1703 = sbr.rel (0) target = $region17
  $region16: #{autoencoder_forward.10} parent=0 // pred_region
    _
  $region17: #{autoencoder_forward.10} parent=0 // pred_fallthru
    _
  // Predicated region
  $region18: #{autoencoder_forward.10} parent=0 // pred_check
    _
  $region19: #{autoencoder_forward.10} parent=0 // pred_check_branch
    %1705 = sbr.rel (0) target = $region21
  $region20: #{autoencoder_forward.10} parent=0 // pred_region
    _
  $region21: #{autoencoder_forward.10} parent=0 // pred_fallthru
    _

// kernel: autoencoder_forward.11
$region0: #{autoencoder_forward.11}
  #allocation0 [shape = 'u32[]', space=smem, size = 0x4, offset = 0x4, fixed_abs, tag = 'smem constant byte address 0x4 - core index']
  #allocation1 [shape = 'u32[72,128]{1,0:T(1,128)}', space=vmem, size = 0x9000, scoped, tag = 'internal scratch']
  %s0 = inlined_call_operand.vmem [shape: bf16[1568,128], index: 0, kind: input, shape index: {}]
  %s1 = inlined_call_operand.vmem [shape: bf16[128,128], index: 1, kind: input, shape index: {}]
  %s2 = inlined_call_operand.vmem [shape: f32[1,128], index: 2, kind: input, shape index: {}]
  %s3 = inlined_call_operand.vmem [shape: f32[1568,128], index: 3, kind: output, shape index: {}]
  %s4 = sld [smem:[#allocation0]]
  $region22: #{autoencoder_forward.11} parent=0
    _
  %s6 = ssub.s32 1, %s4
  %s7 = scalar_select 0, %s6, %s4
  // Predicated region
  $region2: #{autoencoder_forward.11} parent=0 // pred_check
    _
  $region3: #{autoencoder_forward.11} parent=0 // pred_check_branch
    %9 = sbr.rel (0) target = $region5
  $region4: #{autoencoder_forward.11} parent=0 // pred_region
    _
  $region5: #{autoencoder_forward.11} parent=0 // pred_fallthru
    _
  // Predicated region
  $region6: #{autoencoder_forward.11} parent=0 // pred_check
    _
  $region7: #{autoencoder_forward.11} parent=0 // pred_check_branch
    %11 = sbr.rel (0) target = $region9
  $region8: #{autoencoder_forward.11} parent=0 // pred_region
    _
  $region9: #{autoencoder_forward.11} parent=0 // pred_fallthru
    _
  // Predicated region
  $region10: #{autoencoder_forward.11} parent=0 // pred_check
    _
  $region11: #{autoencoder_forward.11} parent=0 // pred_check_branch
    %13 = sbr.rel (0) target = $region13
  $region12: #{autoencoder_forward.11} parent=0 // pred_region
    _
  $region13: #{autoencoder_forward.11} parent=0 // pred_fallthru
    _
  %v14 = vld [vmem:[%s0] sm:$0xf]
  %v15 = vld [vmem:[%s0 + $0x4] sm:$0xf]
  %v16 = vld [vmem:[%s0 + $0x8] sm:$0xf]
  %v17 = vld [vmem:[%s0 + $0xc] sm:$0xf]
  %v18 = vld [vmem:[%s0 + $0x10] sm:$0xf]
  %v19 = vld [vmem:[%s0 + $0x14] sm:$0xf]
  %v20 = vld [vmem:[%s0 + $0x18] sm:$0xf]
  %v21 = vld [vmem:[%s0 + $0x1c] sm:$0xf]
  %v22 = vld [vmem:[%s0 + $0x20] sm:$0xf]
  %v23 = vld [vmem:[%s0 + $0x24] sm:$0xf]
  %v24 = vld [vmem:[%s0 + $0x28] sm:$0xf]
  %v25 = vld [vmem:[%s0 + $0x2c] sm:$0xf]
  %v26 = vld [vmem:[%s0 + $0x30] sm:$0xf]
  %v27 = vld [vmem:[%s0 + $0x34] sm:$0xf]
  %v28 = vld [vmem:[%s0 + $0x38] sm:$0xf]
  %v29 = vld [vmem:[%s0 + $0x3c] sm:$0xf]
  %v30 = vld [vmem:[%s0 + $0x40] sm:$0xf]
  %v31 = vld [vmem:[%s0 + $0x44] sm:$0xf]
  %v32 = vld [vmem:[%s0 + $0x48] sm:$0xf]
  %v33 = vld [vmem:[%s0 + $0x4c] sm:$0xf]
  %v34 = vld [vmem:[%s0 + $0x50] sm:$0xf]
  %v35 = vld [vmem:[%s0 + $0x54] sm:$0xf]
  %v36 = vld [vmem:[%s0 + $0x58] sm:$0xf]
  %v37 = vld [vmem:[%s0 + $0x5c] sm:$0xf]
  %v38 = vld [vmem:[%s0 + $0x60] sm:$0xf]
  %v39 = vld [vmem:[%s0 + $0x64] sm:$0xf]
  %v40 = vld [vmem:[%s0 + $0x68] sm:$0xf]
  %v41 = vld [vmem:[%s0 + $0x6c] sm:$0xf]
  %v42 = vld [vmem:[%s0 + $0x70] sm:$0xf]
  %v43 = vld [vmem:[%s0 + $0x74] sm:$0xf]
  %v44 = vld [vmem:[%s0 + $0x78] sm:$0xf]
  %v45 = vld [vmem:[%s0 + $0x7c] sm:$0xf]
  %v46 = vld [vmem:[%s0 + $0x80] sm:$0xf]
  %v47 = vld [vmem:[%s0 + $0x84] sm:$0xf]
  %v48 = vld [vmem:[%s0 + $0x88] sm:$0xf]
  %v49 = vld [vmem:[%s0 + $0x8c] sm:$0xf]
  %v50 = vld [vmem:[%s0 + $0x90] sm:$0xf]
  %v51 = vld [vmem:[%s0 + $0x94] sm:$0xf]
  %v52 = vld [vmem:[%s0 + $0x98] sm:$0xf]
  %v53 = vld [vmem:[%s0 + $0x9c] sm:$0xf]
  %v54 = vld [vmem:[%s0 + $0xa0] sm:$0xf]
  %v55 = vld [vmem:[%s0 + $0xa4] sm:$0xf]
  %v56 = vld [vmem:[%s0 + $0xa8] sm:$0xf]
  %v57 = vld [vmem:[%s0 + $0xac] sm:$0xf]
  %v58 = vld [vmem:[%s0 + $0xb0] sm:$0xf]
  %v59 = vld [vmem:[%s0 + $0xb4] sm:$0xf]
  %v60 = vld [vmem:[%s0 + $0xb8] sm:$0xf]
  %v61 = vld [vmem:[%s0 + $0xbc] sm:$0xf]
  %v62 = vld [vmem:[%s0 + $0xc0] sm:$0xf]
  %v63 = vld [vmem:[%s0 + $0xc4] sm:$0xf]
  %v64 = vld [vmem:[%s0 + $0xc8] sm:$0xf]
  %v65 = vld [vmem:[%s0 + $0xcc] sm:$0xf]
  %v66 = vld [vmem:[%s0 + $0xd0] sm:$0xf]
  %v67 = vld [vmem:[%s0 + $0xd4] sm:$0xf]
  %v68 = vld [vmem:[%s0 + $0xd8] sm:$0xf]
  %v69 = vld [vmem:[%s0 + $0xdc] sm:$0xf]
  %v70 = vld [vmem:[%s0 + $0xe0] sm:$0xf]
  %v71 = vld [vmem:[%s0 + $0xe4] sm:$0xf]
  %v72 = vld [vmem:[%s0 + $0xe8] sm:$0xf]
  %v73 = vld [vmem:[%s0 + $0xec] sm:$0xf]
  %v74 = vld [vmem:[%s0 + $0xf0] sm:$0xf]
  %v75 = vld [vmem:[%s0 + $0xf4] sm:$0xf]
  %v76 = vld [vmem:[%s0 + $0xf8] sm:$0xf]
  %v77 = vld [vmem:[%s0 + $0xfc] sm:$0xf]
  %v78 = vld [vmem:[%s0 + $0x100] sm:$0xf]
  %v79 = vld [vmem:[%s0 + $0x104] sm:$0xf]
  %v80 = vld [vmem:[%s0 + $0x108] sm:$0xf]
  %v81 = vld [vmem:[%s0 + $0x10c] sm:$0xf]
  %v82 = vld [vmem:[%s0 + $0x110] sm:$0xf]
  %v83 = vld [vmem:[%s0 + $0x114] sm:$0xf]
  %v84 = vld [vmem:[%s0 + $0x118] sm:$0xf]
  %v85 = vld [vmem:[%s0 + $0x11c] sm:$0xf]
  %v86 = vld [vmem:[%s0 + $0x120] sm:$0xf]
  %v87 = vld [vmem:[%s0 + $0x124] sm:$0xf]
  %v88 = vld [vmem:[%s0 + $0x128] sm:$0xf]
  %v89 = vld [vmem:[%s0 + $0x12c] sm:$0xf]
  %v90 = vld [vmem:[%s0 + $0x130] sm:$0xf]
  %v91 = vld [vmem:[%s0 + $0x134] sm:$0xf]
  %v92 = vld [vmem:[%s0 + $0x138] sm:$0xf]
  %v93 = vld [vmem:[%s0 + $0x13c] sm:$0xf]
  %v94 = vld [vmem:[%s0 + $0x140] sm:$0xf]
  %v95 = vld [vmem:[%s0 + $0x144] sm:$0xf]
  %v96 = vld [vmem:[%s0 + $0x148] sm:$0xf]
  %v97 = vld [vmem:[%s0 + $0x14c] sm:$0xf]
  %v98 = vld [vmem:[%s0 + $0x150] sm:$0xf]
  %v99 = vld [vmem:[%s0 + $0x154] sm:$0xf]
  %v100 = vld [vmem:[%s0 + $0x158] sm:$0xf]
  %v101 = vld [vmem:[%s0 + $0x15c] sm:$0xf]
  %v102 = vld [vmem:[%s0 + $0x160] sm:$0xf]
  %v103 = vld [vmem:[%s0 + $0x164] sm:$0xf]
  %v104 = vld [vmem:[%s0 + $0x168] sm:$0xf]
  %v105 = vld [vmem:[%s0 + $0x16c] sm:$0xf]
  %v106 = vld [vmem:[%s0 + $0x170] sm:$0xf]
  %v107 = vld [vmem:[%s0 + $0x174] sm:$0xf]
  %v108 = vld [vmem:[%s0 + $0x178] sm:$0xf]
  %v109 = vld [vmem:[%s0 + $0x17c] sm:$0xf]
  %v110 = vld [vmem:[%s0 + $0x180] sm:$0xf]
  %v111 = vld [vmem:[%s0 + $0x184] sm:$0xf]
  %v112 = vld [vmem:[%s0 + $0x188] sm:$0xf]
  %v113 = vld [vmem:[%s0 + $0x18c] sm:$0xf]
  %v114 = vld [vmem:[%s0 + $0x190] sm:$0xf]
  %v115 = vld [vmem:[%s0 + $0x194] sm:$0xf]
  %v116 = vld [vmem:[%s0 + $0x198] sm:$0xf]
  %v117 = vld [vmem:[%s0 + $0x19c] sm:$0xf]
  %v118 = vld [vmem:[%s0 + $0x1a0] sm:$0xf]
  %v119 = vld [vmem:[%s0 + $0x1a4] sm:$0xf]
  %v120 = vld [vmem:[%s0 + $0x1a8] sm:$0xf]
  %v121 = vld [vmem:[%s0 + $0x1ac] sm:$0xf]
  %v122 = vld [vmem:[%s0 + $0x1b0] sm:$0xf]
  %v123 = vld [vmem:[%s0 + $0x1b4] sm:$0xf]
  %v124 = vld [vmem:[%s0 + $0x1b8] sm:$0xf]
  %v125 = vld [vmem:[%s0 + $0x1bc] sm:$0xf]
  %v126 = vld [vmem:[%s0 + $0x1c0] sm:$0xf]
  %v127 = vld [vmem:[%s0 + $0x1c4] sm:$0xf]
  %v128 = vld [vmem:[%s0 + $0x1c8] sm:$0xf]
  %v129 = vld [vmem:[%s0 + $0x1cc] sm:$0xf]
  %v130 = vld [vmem:[%s0 + $0x1d0] sm:$0xf]
  %v131 = vld [vmem:[%s0 + $0x1d4] sm:$0xf]
  %v132 = vld [vmem:[%s0 + $0x1d8] sm:$0xf]
  %v133 = vld [vmem:[%s0 + $0x1dc] sm:$0xf]
  %v134 = vld [vmem:[%s0 + $0x1e0] sm:$0xf]
  %v135 = vld [vmem:[%s0 + $0x1e4] sm:$0xf]
  %v136 = vld [vmem:[%s0 + $0x1e8] sm:$0xf]
  %v137 = vld [vmem:[%s0 + $0x1ec] sm:$0xf]
  %v138 = vld [vmem:[%s0 + $0x1f0] sm:$0xf]
  %v139 = vld [vmem:[%s0 + $0x1f4] sm:$0xf]
  %v140 = vld [vmem:[%s0 + $0x1f8] sm:$0xf]
  %v141 = vld [vmem:[%s0 + $0x1fc] sm:$0xf]
  %v142 = vld [vmem:[%s0 + $0x200] sm:$0xf]
  %v143 = vld [vmem:[%s0 + $0x204] sm:$0xf]
  %v144 = vld [vmem:[%s0 + $0x208] sm:$0xf]
  %v145 = vld [vmem:[%s0 + $0x20c] sm:$0xf]
  %v146 = vld [vmem:[%s0 + $0x210] sm:$0xf]
  %v147 = vld [vmem:[%s0 + $0x214] sm:$0xf]
  %v148 = vld [vmem:[%s0 + $0x218] sm:$0xf]
  %v149 = vld [vmem:[%s0 + $0x21c] sm:$0xf]
  %v150 = vld [vmem:[%s0 + $0x220] sm:$0xf]
  %v151 = vld [vmem:[%s0 + $0x224] sm:$0xf]
  %v152 = vld [vmem:[%s0 + $0x228] sm:$0xf]
  %v153 = vld [vmem:[%s0 + $0x22c] sm:$0xf]
  %v154 = vld [vmem:[%s0 + $0x230] sm:$0xf]
  %v155 = vld [vmem:[%s0 + $0x234] sm:$0xf]
  %v156 = vld [vmem:[%s0 + $0x238] sm:$0xf]
  %v157 = vld [vmem:[%s0 + $0x23c] sm:$0xf]
  %v158 = vld [vmem:[%s0 + $0x240] sm:$0xf]
  %v159 = vld [vmem:[%s0 + $0x244] sm:$0xf]
  %v160 = vld [vmem:[%s0 + $0x248] sm:$0xf]
  %v161 = vld [vmem:[%s0 + $0x24c] sm:$0xf]
  %v162 = vld [vmem:[%s0 + $0x250] sm:$0xf]
  %v163 = vld [vmem:[%s0 + $0x254] sm:$0xf]
  %v164 = vld [vmem:[%s0 + $0x258] sm:$0xf]
  %v165 = vld [vmem:[%s0 + $0x25c] sm:$0xf]
  %v166 = vld [vmem:[%s0 + $0x260] sm:$0xf]
  %v167 = vld [vmem:[%s0 + $0x264] sm:$0xf]
  %v168 = vld [vmem:[%s0 + $0x268] sm:$0xf]
  %v169 = vld [vmem:[%s0 + $0x26c] sm:$0xf]
  %v170 = vld [vmem:[%s0 + $0x270] sm:$0xf]
  %v171 = vld [vmem:[%s0 + $0x274] sm:$0xf]
  %v172 = vld [vmem:[%s0 + $0x278] sm:$0xf]
  %v173 = vld [vmem:[%s0 + $0x27c] sm:$0xf]
  %v174 = vld [vmem:[%s0 + $0x280] sm:$0xf]
  %v175 = vld [vmem:[%s0 + $0x284] sm:$0xf]
  %v176 = vld [vmem:[%s0 + $0x288] sm:$0xf]
  %v177 = vld [vmem:[%s0 + $0x28c] sm:$0xf]
  %v178 = vld [vmem:[%s0 + $0x290] sm:$0xf]
  %v179 = vld [vmem:[%s0 + $0x294] sm:$0xf]
  %v180 = vld [vmem:[%s0 + $0x298] sm:$0xf]
  %v181 = vld [vmem:[%s0 + $0x29c] sm:$0xf]
  %v182 = vld [vmem:[%s0 + $0x2a0] sm:$0xf]
  %v183 = vld [vmem:[%s0 + $0x2a4] sm:$0xf]
  %v184 = vld [vmem:[%s0 + $0x2a8] sm:$0xf]
  %v185 = vld [vmem:[%s0 + $0x2ac] sm:$0xf]
  %v186 = vld [vmem:[%s0 + $0x2b0] sm:$0xf]
  %v187 = vld [vmem:[%s0 + $0x2b4] sm:$0xf]
  %v188 = vld [vmem:[%s0 + $0x2b8] sm:$0xf]
  %v189 = vld [vmem:[%s0 + $0x2bc] sm:$0xf]
  %v190 = vld [vmem:[%s0 + $0x2c0] sm:$0xf]
  %v191 = vld [vmem:[%s0 + $0x2c4] sm:$0xf]
  %v192 = vld [vmem:[%s0 + $0x2c8] sm:$0xf]
  %v193 = vld [vmem:[%s0 + $0x2cc] sm:$0xf]
  %v194 = vld [vmem:[%s0 + $0x2d0] sm:$0xf]
  %v195 = vld [vmem:[%s0 + $0x2d4] sm:$0xf]
  %v196 = vld [vmem:[%s0 + $0x2d8] sm:$0xf]
  %v197 = vld [vmem:[%s0 + $0x2dc] sm:$0xf]
  %v198 = vld [vmem:[%s0 + $0x2e0] sm:$0xf]
  %v199 = vld [vmem:[%s0 + $0x2e4] sm:$0xf]
  %v200 = vld [vmem:[%s0 + $0x2e8] sm:$0xf]
  %v201 = vld [vmem:[%s0 + $0x2ec] sm:$0xf]
  %v202 = vld [vmem:[%s0 + $0x2f0] sm:$0xf]
  %v203 = vld [vmem:[%s0 + $0x2f4] sm:$0xf]
  %v204 = vld [vmem:[%s0 + $0x2f8] sm:$0xf]
  %v205 = vld [vmem:[%s0 + $0x2fc] sm:$0xf]
  %v206 = vld [vmem:[%s0 + $0x300] sm:$0xf]
  %v207 = vld [vmem:[%s0 + $0x304] sm:$0xf]
  %v208 = vld [vmem:[%s0 + $0x308] sm:$0xf]
  %v209 = vld [vmem:[%s0 + $0x30c] sm:$0xf]
  %v210 = vld [vmem:[%s1] sm:$0xf]
  %v211 = vld [vmem:[%s1 + $0x4] sm:$0xf]
  %v212 = vld [vmem:[%s1 + $0x8] sm:$0xf]
  %v213 = vld [vmem:[%s1 + $0xc] sm:$0xf]
  %v214 = vld [vmem:[%s1 + $0x10] sm:$0xf]
  %v215 = vld [vmem:[%s1 + $0x14] sm:$0xf]
  %v216 = vld [vmem:[%s1 + $0x18] sm:$0xf]
  %v217 = vld [vmem:[%s1 + $0x1c] sm:$0xf]
  %v218 = vld [vmem:[%s1 + $0x20] sm:$0xf]
  %v219 = vld [vmem:[%s1 + $0x24] sm:$0xf]
  %v220 = vld [vmem:[%s1 + $0x28] sm:$0xf]
  %v221 = vld [vmem:[%s1 + $0x2c] sm:$0xf]
  %v222 = vld [vmem:[%s1 + $0x30] sm:$0xf]
  %v223 = vld [vmem:[%s1 + $0x34] sm:$0xf]
  %v224 = vld [vmem:[%s1 + $0x38] sm:$0xf]
  %v225 = vld [vmem:[%s1 + $0x3c] sm:$0xf]
  %v226 = vld [vmem:[%s2] sm:$0x1]
  %v228 = vperm.slane %v226, 0
  %v426 = vunpack.c.l.b16 %v14
  %v427 = vunpack.c.l.b16 %v15
  %v428 = vunpack.c.l.b16 %v16
  %v429 = vunpack.c.l.b16 %v17
  %v430 = vunpack.c.l.b16 %v18
  %v431 = vunpack.c.l.b16 %v19
  %v432 = vunpack.c.l.b16 %v20
  %v433 = vunpack.c.l.b16 %v21
  %v434 = vunpack.c.l.b16 %v22
  %v435 = vunpack.c.l.b16 %v23
  %v436 = vunpack.c.l.b16 %v24
  %v437 = vunpack.c.l.b16 %v25
  %v438 = vunpack.c.l.b16 %v26
  %v439 = vunpack.c.l.b16 %v27
  %v440 = vunpack.c.l.b16 %v28
  %v441 = vunpack.c.l.b16 %v29
  %v442 = vunpack.c.l.b16 %v30
  %v443 = vunpack.c.l.b16 %v31
  %v444 = vunpack.c.l.b16 %v32
  %v445 = vunpack.c.l.b16 %v33
  %v446 = vunpack.c.l.b16 %v34
  %v447 = vunpack.c.l.b16 %v35
  %v448 = vunpack.c.l.b16 %v36
  %v449 = vunpack.c.l.b16 %v37
  %v450 = vunpack.c.l.b16 %v38
  %v451 = vunpack.c.l.b16 %v39
  %v452 = vunpack.c.l.b16 %v40
  %v453 = vunpack.c.l.b16 %v41
  %v454 = vunpack.c.l.b16 %v42
  %v455 = vunpack.c.l.b16 %v43
  %v456 = vunpack.c.l.b16 %v44
  %v457 = vunpack.c.l.b16 %v45
  %v458 = vunpack.c.l.b16 %v46
  %v459 = vunpack.c.l.b16 %v47
  %v460 = vunpack.c.l.b16 %v48
  %v461 = vunpack.c.l.b16 %v49
  %v462 = vunpack.c.l.b16 %v50
  %v463 = vunpack.c.l.b16 %v51
  %v464 = vunpack.c.l.b16 %v52
  %v465 = vunpack.c.l.b16 %v53
  %v466 = vunpack.c.l.b16 %v54
  %v467 = vunpack.c.l.b16 %v55
  %v468 = vunpack.c.l.b16 %v56
  %v469 = vunpack.c.l.b16 %v57
  %v470 = vunpack.c.l.b16 %v58
  %v471 = vunpack.c.l.b16 %v59
  %v472 = vunpack.c.l.b16 %v60
  %v473 = vunpack.c.l.b16 %v61
  %v474 = vunpack.c.l.b16 %v62
  %v475 = vunpack.c.l.b16 %v63
  %v476 = vunpack.c.l.b16 %v64
  %v477 = vunpack.c.l.b16 %v65
  %v478 = vunpack.c.l.b16 %v66
  %v479 = vunpack.c.l.b16 %v67
  %v480 = vunpack.c.l.b16 %v68
  %v481 = vunpack.c.l.b16 %v69
  %v482 = vunpack.c.l.b16 %v70
  %v483 = vunpack.c.l.b16 %v71
  %v484 = vunpack.c.l.b16 %v72
  %v485 = vunpack.c.l.b16 %v73
  %v486 = vunpack.c.l.b16 %v74
  %v487 = vunpack.c.l.b16 %v75
  %v488 = vunpack.c.l.b16 %v76
  %v489 = vunpack.c.l.b16 %v77
  %v490 = vunpack.c.l.b16 %v78
  %v491 = vunpack.c.l.b16 %v79
  %v492 = vunpack.c.l.b16 %v80
  %v493 = vunpack.c.l.b16 %v81
  %v494 = vunpack.c.l.b16 %v82
  %v495 = vunpack.c.l.b16 %v83
  %v496 = vunpack.c.l.b16 %v84
  %v497 = vunpack.c.l.b16 %v85
  %v498 = vunpack.c.l.b16 %v86
  %v499 = vunpack.c.l.b16 %v87
  %v500 = vunpack.c.l.b16 %v88
  %v501 = vunpack.c.l.b16 %v89
  %v502 = vunpack.c.l.b16 %v90
  %v503 = vunpack.c.l.b16 %v91
  %v504 = vunpack.c.l.b16 %v92
  %v505 = vunpack.c.l.b16 %v93
  %v506 = vunpack.c.l.b16 %v94
  %v507 = vunpack.c.l.b16 %v95
  %v508 = vunpack.c.l.b16 %v96
  %v509 = vunpack.c.l.b16 %v97
  %v510 = vunpack.c.l.b16 %v98
  %v511 = vunpack.c.l.b16 %v99
  %v512 = vunpack.c.l.b16 %v100
  %v513 = vunpack.c.l.b16 %v101
  %v514 = vunpack.c.l.b16 %v102
  %v515 = vunpack.c.l.b16 %v103
  %v516 = vunpack.c.l.b16 %v104
  %v517 = vunpack.c.l.b16 %v105
  %v518 = vunpack.c.l.b16 %v106
  %v519 = vunpack.c.l.b16 %v107
  %v520 = vunpack.c.l.b16 %v108
  %v521 = vunpack.c.l.b16 %v109
  %v522 = vunpack.c.l.b16 %v110
  %v523 = vunpack.c.l.b16 %v111
  %v524 = vunpack.c.l.b16 %v112
  %v525 = vunpack.c.l.b16 %v113
  %v526 = vunpack.c.l.b16 %v114
  %v527 = vunpack.c.l.b16 %v115
  %v528 = vunpack.c.l.b16 %v116
  %v529 = vunpack.c.l.b16 %v117
  %v530 = vunpack.c.l.b16 %v118
  %v531 = vunpack.c.l.b16 %v119
  %v532 = vunpack.c.l.b16 %v120
  %v533 = vunpack.c.l.b16 %v121
  %v534 = vunpack.c.l.b16 %v122
  %v535 = vunpack.c.l.b16 %v123
  %v536 = vunpack.c.l.b16 %v124
  %v537 = vunpack.c.l.b16 %v125
  %v538 = vunpack.c.l.b16 %v126
  %v539 = vunpack.c.l.b16 %v127
  %v540 = vunpack.c.l.b16 %v128
  %v541 = vunpack.c.l.b16 %v129
  %v542 = vunpack.c.l.b16 %v130
  %v543 = vunpack.c.l.b16 %v131
  %v544 = vunpack.c.l.b16 %v132
  %v545 = vunpack.c.l.b16 %v133
  %v546 = vunpack.c.l.b16 %v134
  %v547 = vunpack.c.l.b16 %v135
  %v548 = vunpack.c.l.b16 %v136
  %v549 = vunpack.c.l.b16 %v137
  %v550 = vunpack.c.l.b16 %v138
  %v551 = vunpack.c.l.b16 %v139
  %v552 = vunpack.c.l.b16 %v140
  %v553 = vunpack.c.l.b16 %v141
  %v554 = vunpack.c.l.b16 %v142
  %v555 = vunpack.c.l.b16 %v143
  %v556 = vunpack.c.l.b16 %v144
  %v557 = vunpack.c.l.b16 %v145
  %v558 = vunpack.c.l.b16 %v146
  %v559 = vunpack.c.l.b16 %v147
  %v560 = vunpack.c.l.b16 %v148
  %v561 = vunpack.c.l.b16 %v149
  %v562 = vunpack.c.l.b16 %v150
  %v563 = vunpack.c.l.b16 %v151
  %v564 = vunpack.c.l.b16 %v152
  %v565 = vunpack.c.l.b16 %v153
  %v566 = vunpack.c.l.b16 %v154
  %v567 = vunpack.c.l.b16 %v155
  %v568 = vunpack.c.l.b16 %v156
  %v569 = vunpack.c.l.b16 %v157
  %v570 = vunpack.c.l.b16 %v158
  %v571 = vunpack.c.l.b16 %v159
  %v572 = vunpack.c.l.b16 %v160
  %v573 = vunpack.c.l.b16 %v161
  %v574 = vunpack.c.l.b16 %v162
  %v575 = vunpack.c.l.b16 %v163
  %v576 = vunpack.c.l.b16 %v164
  %v577 = vunpack.c.l.b16 %v165
  %v578 = vunpack.c.l.b16 %v166
  %v579 = vunpack.c.l.b16 %v167
  %v580 = vunpack.c.l.b16 %v168
  %v581 = vunpack.c.l.b16 %v169
  %v582 = vunpack.c.l.b16 %v170
  %v583 = vunpack.c.l.b16 %v171
  %v584 = vunpack.c.l.b16 %v172
  %v585 = vunpack.c.l.b16 %v173
  %v586 = vunpack.c.l.b16 %v174
  %v587 = vunpack.c.l.b16 %v175
  %v588 = vunpack.c.l.b16 %v176
  %v589 = vunpack.c.l.b16 %v177
  %v590 = vunpack.c.l.b16 %v178
  %v591 = vunpack.c.l.b16 %v179
  %v592 = vunpack.c.l.b16 %v180
  %v593 = vunpack.c.l.b16 %v181
  %v594 = vunpack.c.l.b16 %v182
  %v595 = vunpack.c.l.b16 %v183
  %v596 = vunpack.c.l.b16 %v184
  %v597 = vunpack.c.l.b16 %v185
  %v598 = vunpack.c.l.b16 %v186
  %v599 = vunpack.c.l.b16 %v187
  %v600 = vunpack.c.l.b16 %v188
  %v601 = vunpack.c.l.b16 %v189
  %v602 = vunpack.c.l.b16 %v190
  %v603 = vunpack.c.l.b16 %v191
  %v604 = vunpack.c.l.b16 %v192
  %v605 = vunpack.c.l.b16 %v193
  %v606 = vunpack.c.l.b16 %v194
  %v607 = vunpack.c.l.b16 %v195
  %v608 = vunpack.c.l.b16 %v196
  %v609 = vunpack.c.l.b16 %v197
  %v610 = vunpack.c.l.b16 %v198
  %v611 = vunpack.c.l.b16 %v199
  %v612 = vunpack.c.l.b16 %v200
  %v613 = vunpack.c.l.b16 %v201
  %v614 = vunpack.c.l.b16 %v202
  %v615 = vunpack.c.l.b16 %v203
  %v616 = vunpack.c.l.b16 %v204
  %v617 = vunpack.c.l.b16 %v205
  %v618 = vunpack.c.l.b16 %v206
  %v619 = vunpack.c.l.b16 %v207
  %v620 = vunpack.c.l.b16 %v208
  %v621 = vunpack.c.l.b16 %v209
  %v622 = vpack.c.b16 %v427, %v426
  %v623 = vpack.c.b16 %v429, %v428
  %v624 = vpack.c.b16 %v431, %v430
  %v625 = vpack.c.b16 %v433, %v432
  %v626 = vpack.c.b16 %v435, %v434
  %v627 = vpack.c.b16 %v437, %v436
  %v628 = vpack.c.b16 %v439, %v438
  %v629 = vpack.c.b16 %v441, %v440
  %v630 = vpack.c.b16 %v443, %v442
  %v631 = vpack.c.b16 %v445, %v444
  %v632 = vpack.c.b16 %v447, %v446
  %v633 = vpack.c.b16 %v449, %v448
  %v634 = vpack.c.b16 %v451, %v450
  %v635 = vpack.c.b16 %v453, %v452
  %v636 = vpack.c.b16 %v455, %v454
  %v637 = vpack.c.b16 %v457, %v456
  %v638 = vpack.c.b16 %v459, %v458
  %v639 = vpack.c.b16 %v461, %v460
  %v640 = vpack.c.b16 %v463, %v462
  %v641 = vpack.c.b16 %v465, %v464
  %v642 = vpack.c.b16 %v467, %v466
  %v643 = vpack.c.b16 %v469, %v468
  %v644 = vpack.c.b16 %v471, %v470
  %v645 = vpack.c.b16 %v473, %v472
  %v646 = vpack.c.b16 %v475, %v474
  %v647 = vpack.c.b16 %v477, %v476
  %v648 = vpack.c.b16 %v479, %v478
  %v649 = vpack.c.b16 %v481, %v480
  %v650 = vpack.c.b16 %v483, %v482
  %v651 = vpack.c.b16 %v485, %v484
  %v652 = vpack.c.b16 %v487, %v486
  %v653 = vpack.c.b16 %v489, %v488
  %v654 = vpack.c.b16 %v491, %v490
  %v655 = vpack.c.b16 %v493, %v492
  %v656 = vpack.c.b16 %v495, %v494
  %v657 = vpack.c.b16 %v497, %v496
  %v658 = vpack.c.b16 %v499, %v498
  %v659 = vpack.c.b16 %v501, %v500
  %v660 = vpack.c.b16 %v503, %v502
  %v661 = vpack.c.b16 %v505, %v504
  %v662 = vpack.c.b16 %v507, %v506
  %v663 = vpack.c.b16 %v509, %v508
  %v664 = vpack.c.b16 %v511, %v510
  %v665 = vpack.c.b16 %v513, %v512
  %v666 = vpack.c.b16 %v515, %v514
  %v667 = vpack.c.b16 %v517, %v516
  %v668 = vpack.c.b16 %v519, %v518
  %v669 = vpack.c.b16 %v521, %v520
  %v670 = vpack.c.b16 %v523, %v522
  %v671 = vpack.c.b16 %v525, %v524
  %v672 = vpack.c.b16 %v527, %v526
  %v673 = vpack.c.b16 %v529, %v528
  %v674 = vpack.c.b16 %v531, %v530
  %v675 = vpack.c.b16 %v533, %v532
  %v676 = vpack.c.b16 %v535, %v534
  %v677 = vpack.c.b16 %v537, %v536
  %v678 = vpack.c.b16 %v539, %v538
  %v679 = vpack.c.b16 %v541, %v540
  %v680 = vpack.c.b16 %v543, %v542
  %v681 = vpack.c.b16 %v545, %v544
  %v682 = vpack.c.b16 %v547, %v546
  %v683 = vpack.c.b16 %v549, %v548
  %v684 = vpack.c.b16 %v551, %v550
  %v685 = vpack.c.b16 %v553, %v552
  %v686 = vpack.c.b16 %v555, %v554
  %v687 = vpack.c.b16 %v557, %v556
  %v688 = vpack.c.b16 %v559, %v558
  %v689 = vpack.c.b16 %v561, %v560
  %v690 = vpack.c.b16 %v563, %v562
  %v691 = vpack.c.b16 %v565, %v564
  %v692 = vpack.c.b16 %v567, %v566
  %v693 = vpack.c.b16 %v569, %v568
  %v694 = vpack.c.b16 %v571, %v570
  %v695 = vpack.c.b16 %v573, %v572
  %v696 = vpack.c.b16 %v575, %v574
  %v697 = vpack.c.b16 %v577, %v576
  %v698 = vpack.c.b16 %v579, %v578
  %v699 = vpack.c.b16 %v581, %v580
  %v700 = vpack.c.b16 %v583, %v582
  %v701 = vpack.c.b16 %v585, %v584
  %v702 = vpack.c.b16 %v587, %v586
  %v703 = vpack.c.b16 %v589, %v588
  %v704 = vpack.c.b16 %v591, %v590
  %v705 = vpack.c.b16 %v593, %v592
  %v706 = vpack.c.b16 %v595, %v594
  %v707 = vpack.c.b16 %v597, %v596
  %v708 = vpack.c.b16 %v599, %v598
  %v709 = vpack.c.b16 %v601, %v600
  %v710 = vpack.c.b16 %v603, %v602
  %v711 = vpack.c.b16 %v605, %v604
  %v712 = vpack.c.b16 %v607, %v606
  %v713 = vpack.c.b16 %v609, %v608
  %v714 = vpack.c.b16 %v611, %v610
  %v715 = vpack.c.b16 %v613, %v612
  %v716 = vpack.c.b16 %v615, %v614
  %v717 = vpack.c.b16 %v617, %v616
  %v718 = vpack.c.b16 %v619, %v618
  %v719 = vpack.c.b16 %v621, %v620
  %v834 = vunpack.c.l.b16 %v210
  %v835 = vunpack.c.l.b16 %v211
  %v836 = vunpack.c.l.b16 %v212
  %v837 = vunpack.c.l.b16 %v213
  %v838 = vunpack.c.l.b16 %v214
  %v839 = vunpack.c.l.b16 %v215
  %v840 = vunpack.c.l.b16 %v216
  %v841 = vunpack.c.l.b16 %v217
  %v842 = vunpack.c.l.b16 %v218
  %v843 = vunpack.c.l.b16 %v219
  %v844 = vunpack.c.l.b16 %v220
  %v845 = vunpack.c.l.b16 %v221
  %v846 = vunpack.c.l.b16 %v222
  %v847 = vunpack.c.l.b16 %v223
  %v848 = vunpack.c.l.b16 %v224
  %v849 = vunpack.c.l.b16 %v225
  %v850 = vpack.c.b16 %v835, %v834
  %v851 = vpack.c.b16 %v837, %v836
  %v852 = vpack.c.b16 %v839, %v838
  %v853 = vpack.c.b16 %v841, %v840
  %v854 = vpack.c.b16 %v843, %v842
  %v855 = vpack.c.b16 %v845, %v844
  %v856 = vpack.c.b16 %v847, %v846
  %v857 = vpack.c.b16 %v849, %v848
  %866 = vmatpush.bf16.msra.mxu0 %v857
  %867 = vmatpush.bf16.msra.mxu0 %v856
  %868 = vmatpush.bf16.msra.mxu0 %v855
  %869 = vmatpush.bf16.msra.mxu0 %v854
  %870 = vmatpush.bf16.msra.mxu0 %v853
  %871 = vmatpush.bf16.msra.mxu0 %v852
  %872 = vmatpush.bf16.msra.mxu0 %v851
  %873 = vmatpush.bf16.msra.mxu0 %v850
  %874 = vmatmul.bf16.gmra.mxu0 %v622
  %v875 = vpop.f32.mrf.mxu0
  %v876 = vadd.f32 %v228, %v875
  %v877 = vpop.f32.mrf.mxu0
  %v878 = vadd.f32 %v228, %v877
  %879 = vmatmul.bf16.gmra.mxu0 %v623
  %v880 = vpop.f32.mrf.mxu0
  %v881 = vadd.f32 %v228, %v880
  %v882 = vpop.f32.mrf.mxu0
  %v883 = vadd.f32 %v228, %v882
  %884 = vmatmul.bf16.gmra.mxu0 %v624
  %v885 = vpop.f32.mrf.mxu0
  %v886 = vadd.f32 %v228, %v885
  %v887 = vpop.f32.mrf.mxu0
  %v888 = vadd.f32 %v228, %v887
  %889 = vmatmul.bf16.gmra.mxu0 %v625
  %v890 = vpop.f32.mrf.mxu0
  %v891 = vadd.f32 %v228, %v890
  %v892 = vpop.f32.mrf.mxu0
  %v893 = vadd.f32 %v228, %v892
  %894 = vmatmul.bf16.gmra.mxu0 %v626
  %v895 = vpop.f32.mrf.mxu0
  %v896 = vadd.f32 %v228, %v895
  %v897 = vpop.f32.mrf.mxu0
  %v898 = vadd.f32 %v228, %v897
  %899 = vmatmul.bf16.gmra.mxu0 %v627
  %v900 = vpop.f32.mrf.mxu0
  %v901 = vadd.f32 %v228, %v900
  %v902 = vpop.f32.mrf.mxu0
  %v903 = vadd.f32 %v228, %v902
  %904 = vmatmul.bf16.gmra.mxu0 %v628
  %v905 = vpop.f32.mrf.mxu0
  %v906 = vadd.f32 %v228, %v905
  %v907 = vpop.f32.mrf.mxu0
  %v908 = vadd.f32 %v228, %v907
  %909 = vmatmul.bf16.gmra.mxu0 %v629
  %v910 = vpop.f32.mrf.mxu0
  %v911 = vadd.f32 %v228, %v910
  %v912 = vpop.f32.mrf.mxu0
  %v913 = vadd.f32 %v228, %v912
  %914 = vmatmul.bf16.gmra.mxu0 %v630
  %v915 = vpop.f32.mrf.mxu0
  %v916 = vadd.f32 %v228, %v915
  %v917 = vpop.f32.mrf.mxu0
  %v918 = vadd.f32 %v228, %v917
  %919 = vmatmul.bf16.gmra.mxu0 %v631
  %v920 = vpop.f32.mrf.mxu0
  %v921 = vadd.f32 %v228, %v920
  %v922 = vpop.f32.mrf.mxu0
  %v923 = vadd.f32 %v228, %v922
  %924 = vmatmul.bf16.gmra.mxu0 %v632
  %v925 = vpop.f32.mrf.mxu0
  %v926 = vadd.f32 %v228, %v925
  %v927 = vpop.f32.mrf.mxu0
  %v928 = vadd.f32 %v228, %v927
  %929 = vmatmul.bf16.gmra.mxu0 %v633
  %v930 = vpop.f32.mrf.mxu0
  %v931 = vadd.f32 %v228, %v930
  %v932 = vpop.f32.mrf.mxu0
  %v933 = vadd.f32 %v228, %v932
  %934 = vmatmul.bf16.gmra.mxu0 %v634
  %v935 = vpop.f32.mrf.mxu0
  %v936 = vadd.f32 %v228, %v935
  %v937 = vpop.f32.mrf.mxu0
  %v938 = vadd.f32 %v228, %v937
  %939 = vmatmul.bf16.gmra.mxu0 %v635
  %v940 = vpop.f32.mrf.mxu0
  %v941 = vadd.f32 %v228, %v940
  %v942 = vpop.f32.mrf.mxu0
  %v943 = vadd.f32 %v228, %v942
  %944 = vmatmul.bf16.gmra.mxu0 %v636
  %v945 = vpop.f32.mrf.mxu0
  %v946 = vadd.f32 %v228, %v945
  %v947 = vpop.f32.mrf.mxu0
  %v948 = vadd.f32 %v228, %v947
  %949 = vmatmul.bf16.gmra.mxu0 %v637
  %v950 = vpop.f32.mrf.mxu0
  %v951 = vadd.f32 %v228, %v950
  %v952 = vpop.f32.mrf.mxu0
  %v953 = vadd.f32 %v228, %v952
  %954 = vmatmul.bf16.gmra.mxu0 %v638
  %v955 = vpop.f32.mrf.mxu0
  %v956 = vadd.f32 %v228, %v955
  %v957 = vpop.f32.mrf.mxu0
  %v958 = vadd.f32 %v228, %v957
  %959 = vmatmul.bf16.gmra.mxu0 %v639
  %v960 = vpop.f32.mrf.mxu0
  %v961 = vadd.f32 %v228, %v960
  %v962 = vpop.f32.mrf.mxu0
  %v963 = vadd.f32 %v228, %v962
  %964 = vmatmul.bf16.gmra.mxu0 %v640
  %v965 = vpop.f32.mrf.mxu0
  %v966 = vadd.f32 %v228, %v965
  %v967 = vpop.f32.mrf.mxu0
  %v968 = vadd.f32 %v228, %v967
  %969 = vmatmul.bf16.gmra.mxu0 %v641
  %v970 = vpop.f32.mrf.mxu0
  %v971 = vadd.f32 %v228, %v970
  %v972 = vpop.f32.mrf.mxu0
  %v973 = vadd.f32 %v228, %v972
  %974 = vmatmul.bf16.gmra.mxu0 %v642
  %v975 = vpop.f32.mrf.mxu0
  %v976 = vadd.f32 %v228, %v975
  %v977 = vpop.f32.mrf.mxu0
  %v978 = vadd.f32 %v228, %v977
  %979 = vmatmul.bf16.gmra.mxu0 %v643
  %v980 = vpop.f32.mrf.mxu0
  %v981 = vadd.f32 %v228, %v980
  %v982 = vpop.f32.mrf.mxu0
  %v983 = vadd.f32 %v228, %v982
  %984 = vmatmul.bf16.gmra.mxu0 %v644
  %v985 = vpop.f32.mrf.mxu0
  %v986 = vadd.f32 %v228, %v985
  %v987 = vpop.f32.mrf.mxu0
  %v988 = vadd.f32 %v228, %v987
  %989 = vmatmul.bf16.gmra.mxu0 %v645
  %v990 = vpop.f32.mrf.mxu0
  %v991 = vadd.f32 %v228, %v990
  %v992 = vpop.f32.mrf.mxu0
  %v993 = vadd.f32 %v228, %v992
  %994 = vmatmul.bf16.gmra.mxu0 %v646
  %v995 = vpop.f32.mrf.mxu0
  %v996 = vadd.f32 %v228, %v995
  %v997 = vpop.f32.mrf.mxu0
  %v998 = vadd.f32 %v228, %v997
  %999 = vmatmul.bf16.gmra.mxu0 %v647
  %v1000 = vpop.f32.mrf.mxu0
  %v1001 = vadd.f32 %v228, %v1000
  %v1002 = vpop.f32.mrf.mxu0
  %v1003 = vadd.f32 %v228, %v1002
  %1004 = vmatmul.bf16.gmra.mxu0 %v648
  %v1005 = vpop.f32.mrf.mxu0
  %v1006 = vadd.f32 %v228, %v1005
  %v1007 = vpop.f32.mrf.mxu0
  %v1008 = vadd.f32 %v228, %v1007
  %1009 = vmatmul.bf16.gmra.mxu0 %v649
  %v1010 = vpop.f32.mrf.mxu0
  %v1011 = vadd.f32 %v228, %v1010
  %v1012 = vpop.f32.mrf.mxu0
  %v1013 = vadd.f32 %v228, %v1012
  %1014 = vmatmul.bf16.gmra.mxu0 %v650
  %v1015 = vpop.f32.mrf.mxu0
  %v1016 = vadd.f32 %v228, %v1015
  %v1017 = vpop.f32.mrf.mxu0
  %v1018 = vadd.f32 %v228, %v1017
  %1019 = vmatmul.bf16.gmra.mxu0 %v651
  %v1020 = vpop.f32.mrf.mxu0
  %v1021 = vadd.f32 %v228, %v1020
  %v1022 = vpop.f32.mrf.mxu0
  %v1023 = vadd.f32 %v228, %v1022
  %1024 = vmatmul.bf16.gmra.mxu0 %v652
  %v1025 = vpop.f32.mrf.mxu0
  %v1026 = vadd.f32 %v228, %v1025
  %v1027 = vpop.f32.mrf.mxu0
  %v1028 = vadd.f32 %v228, %v1027
  %1029 = vmatmul.bf16.gmra.mxu0 %v653
  %v1030 = vpop.f32.mrf.mxu0
  %v1031 = vadd.f32 %v228, %v1030
  %v1032 = vpop.f32.mrf.mxu0
  %v1033 = vadd.f32 %v228, %v1032
  %1034 = vmatmul.bf16.gmra.mxu0 %v654
  %v1035 = vpop.f32.mrf.mxu0
  %v1036 = vadd.f32 %v228, %v1035
  %v1037 = vpop.f32.mrf.mxu0
  %v1038 = vadd.f32 %v228, %v1037
  %1039 = vmatmul.bf16.gmra.mxu0 %v655
  %v1040 = vpop.f32.mrf.mxu0
  %v1041 = vadd.f32 %v228, %v1040
  %v1042 = vpop.f32.mrf.mxu0
  %v1043 = vadd.f32 %v228, %v1042
  %1044 = vmatmul.bf16.gmra.mxu0 %v656
  %v1045 = vpop.f32.mrf.mxu0
  %v1046 = vadd.f32 %v228, %v1045
  %v1047 = vpop.f32.mrf.mxu0
  %v1048 = vadd.f32 %v228, %v1047
  %1049 = vmatmul.bf16.gmra.mxu0 %v657
  %v1050 = vpop.f32.mrf.mxu0
  %v1051 = vadd.f32 %v228, %v1050
  %v1052 = vpop.f32.mrf.mxu0
  %v1053 = vadd.f32 %v228, %v1052
  %1054 = vmatmul.bf16.gmra.mxu0 %v658
  %v1055 = vpop.f32.mrf.mxu0
  %v1056 = vadd.f32 %v228, %v1055
  %v1057 = vpop.f32.mrf.mxu0
  %v1058 = vadd.f32 %v228, %v1057
  %1059 = vmatmul.bf16.gmra.mxu0 %v659
  %v1060 = vpop.f32.mrf.mxu0
  %v1061 = vadd.f32 %v228, %v1060
  %v1062 = vpop.f32.mrf.mxu0
  %v1063 = vadd.f32 %v228, %v1062
  %1064 = vmatmul.bf16.gmra.mxu0 %v660
  %v1065 = vpop.f32.mrf.mxu0
  %v1066 = vadd.f32 %v228, %v1065
  %v1067 = vpop.f32.mrf.mxu0
  %v1068 = vadd.f32 %v228, %v1067
  %1069 = vmatmul.bf16.gmra.mxu0 %v661
  %v1070 = vpop.f32.mrf.mxu0
  %v1071 = vadd.f32 %v228, %v1070
  %v1072 = vpop.f32.mrf.mxu0
  %v1073 = vadd.f32 %v228, %v1072
  %1074 = vmatmul.bf16.gmra.mxu0 %v662
  %v1075 = vpop.f32.mrf.mxu0
  %v1076 = vadd.f32 %v228, %v1075
  %v1077 = vpop.f32.mrf.mxu0
  %v1078 = vadd.f32 %v228, %v1077
  %1079 = vmatmul.bf16.gmra.mxu0 %v663
  %v1080 = vpop.f32.mrf.mxu0
  %v1081 = vadd.f32 %v228, %v1080
  %v1082 = vpop.f32.mrf.mxu0
  %v1083 = vadd.f32 %v228, %v1082
  %1084 = vmatmul.bf16.gmra.mxu0 %v664
  %v1085 = vpop.f32.mrf.mxu0
  %v1086 = vadd.f32 %v228, %v1085
  %v1087 = vpop.f32.mrf.mxu0
  %v1088 = vadd.f32 %v228, %v1087
  %1089 = vmatmul.bf16.gmra.mxu0 %v665
  %v1090 = vpop.f32.mrf.mxu0
  %v1091 = vadd.f32 %v228, %v1090
  %v1092 = vpop.f32.mrf.mxu0
  %v1093 = vadd.f32 %v228, %v1092
  %1094 = vmatmul.bf16.gmra.mxu0 %v666
  %v1095 = vpop.f32.mrf.mxu0
  %v1096 = vadd.f32 %v228, %v1095
  %v1097 = vpop.f32.mrf.mxu0
  %v1098 = vadd.f32 %v228, %v1097
  %1099 = vmatmul.bf16.gmra.mxu0 %v667
  %v1100 = vpop.f32.mrf.mxu0
  %v1101 = vadd.f32 %v228, %v1100
  %v1102 = vpop.f32.mrf.mxu0
  %v1103 = vadd.f32 %v228, %v1102
  %1104 = vmatmul.bf16.gmra.mxu0 %v668
  %v1105 = vpop.f32.mrf.mxu0
  %v1106 = vadd.f32 %v228, %v1105
  %v1107 = vpop.f32.mrf.mxu0
  %v1108 = vadd.f32 %v228, %v1107
  %1109 = vmatmul.bf16.gmra.mxu0 %v669
  %v1110 = vpop.f32.mrf.mxu0
  %v1111 = vadd.f32 %v228, %v1110
  %v1112 = vpop.f32.mrf.mxu0
  %v1113 = vadd.f32 %v228, %v1112
  %1114 = vmatmul.bf16.gmra.mxu0 %v670
  %v1115 = vpop.f32.mrf.mxu0
  %v1116 = vadd.f32 %v228, %v1115
  %v1117 = vpop.f32.mrf.mxu0
  %v1118 = vadd.f32 %v228, %v1117
  %1119 = vmatmul.bf16.gmra.mxu0 %v671
  %v1120 = vpop.f32.mrf.mxu0
  %v1121 = vadd.f32 %v228, %v1120
  %v1122 = vpop.f32.mrf.mxu0
  %v1123 = vadd.f32 %v228, %v1122
  %1124 = vmatmul.bf16.gmra.mxu0 %v672
  %v1125 = vpop.f32.mrf.mxu0
  %v1126 = vadd.f32 %v228, %v1125
  %v1127 = vpop.f32.mrf.mxu0
  %v1128 = vadd.f32 %v228, %v1127
  %1129 = vmatmul.bf16.gmra.mxu0 %v673
  %v1130 = vpop.f32.mrf.mxu0
  %v1131 = vadd.f32 %v228, %v1130
  %v1132 = vpop.f32.mrf.mxu0
  %v1133 = vadd.f32 %v228, %v1132
  %1134 = vmatmul.bf16.gmra.mxu0 %v674
  %v1135 = vpop.f32.mrf.mxu0
  %v1136 = vadd.f32 %v228, %v1135
  %v1137 = vpop.f32.mrf.mxu0
  %v1138 = vadd.f32 %v228, %v1137
  %1139 = vmatmul.bf16.gmra.mxu0 %v675
  %v1140 = vpop.f32.mrf.mxu0
  %v1141 = vadd.f32 %v228, %v1140
  %v1142 = vpop.f32.mrf.mxu0
  %v1143 = vadd.f32 %v228, %v1142
  %1144 = vmatmul.bf16.gmra.mxu0 %v676
  %v1145 = vpop.f32.mrf.mxu0
  %v1146 = vadd.f32 %v228, %v1145
  %v1147 = vpop.f32.mrf.mxu0
  %v1148 = vadd.f32 %v228, %v1147
  %1149 = vmatmul.bf16.gmra.mxu0 %v677
  %v1150 = vpop.f32.mrf.mxu0
  %v1151 = vadd.f32 %v228, %v1150
  %v1152 = vpop.f32.mrf.mxu0
  %v1153 = vadd.f32 %v228, %v1152
  %1154 = vmatmul.bf16.gmra.mxu0 %v678
  %v1155 = vpop.f32.mrf.mxu0
  %v1156 = vadd.f32 %v228, %v1155
  %v1157 = vpop.f32.mrf.mxu0
  %v1158 = vadd.f32 %v228, %v1157
  %1159 = vmatmul.bf16.gmra.mxu0 %v679
  %v1160 = vpop.f32.mrf.mxu0
  %v1161 = vadd.f32 %v228, %v1160
  %v1162 = vpop.f32.mrf.mxu0
  %v1163 = vadd.f32 %v228, %v1162
  %1164 = vmatmul.bf16.gmra.mxu0 %v680
  %v1165 = vpop.f32.mrf.mxu0
  %v1166 = vadd.f32 %v228, %v1165
  %v1167 = vpop.f32.mrf.mxu0
  %v1168 = vadd.f32 %v228, %v1167
  %1169 = vmatmul.bf16.gmra.mxu0 %v681
  %v1170 = vpop.f32.mrf.mxu0
  %v1171 = vadd.f32 %v228, %v1170
  %v1172 = vpop.f32.mrf.mxu0
  %v1173 = vadd.f32 %v228, %v1172
  %1174 = vmatmul.bf16.gmra.mxu0 %v682
  %v1175 = vpop.f32.mrf.mxu0
  %v1176 = vadd.f32 %v228, %v1175
  %v1177 = vpop.f32.mrf.mxu0
  %v1178 = vadd.f32 %v228, %v1177
  %1179 = vmatmul.bf16.gmra.mxu0 %v683
  %v1180 = vpop.f32.mrf.mxu0
  %v1181 = vadd.f32 %v228, %v1180
  %v1182 = vpop.f32.mrf.mxu0
  %v1183 = vadd.f32 %v228, %v1182
  %1184 = vmatmul.bf16.gmra.mxu0 %v684
  %v1185 = vpop.f32.mrf.mxu0
  %v1186 = vadd.f32 %v228, %v1185
  %v1187 = vpop.f32.mrf.mxu0
  %v1188 = vadd.f32 %v228, %v1187
  %1189 = vmatmul.bf16.gmra.mxu0 %v685
  %v1190 = vpop.f32.mrf.mxu0
  %v1191 = vadd.f32 %v228, %v1190
  %v1192 = vpop.f32.mrf.mxu0
  %v1193 = vadd.f32 %v228, %v1192
  %1194 = vmatmul.bf16.gmra.mxu0 %v686
  %v1195 = vpop.f32.mrf.mxu0
  %v1196 = vadd.f32 %v228, %v1195
  %v1197 = vpop.f32.mrf.mxu0
  %v1198 = vadd.f32 %v228, %v1197
  %1199 = vmatmul.bf16.gmra.mxu0 %v687
  %v1200 = vpop.f32.mrf.mxu0
  %v1201 = vadd.f32 %v228, %v1200
  %v1202 = vpop.f32.mrf.mxu0
  %v1203 = vadd.f32 %v228, %v1202
  %1204 = vmatmul.bf16.gmra.mxu0 %v688
  %v1205 = vpop.f32.mrf.mxu0
  %v1206 = vadd.f32 %v228, %v1205
  %v1207 = vpop.f32.mrf.mxu0
  %v1208 = vadd.f32 %v228, %v1207
  %1209 = vmatmul.bf16.gmra.mxu0 %v689
  %v1210 = vpop.f32.mrf.mxu0
  %v1211 = vadd.f32 %v228, %v1210
  %v1212 = vpop.f32.mrf.mxu0
  %v1213 = vadd.f32 %v228, %v1212
  %1214 = vmatmul.bf16.gmra.mxu0 %v690
  %v1215 = vpop.f32.mrf.mxu0
  %v1216 = vadd.f32 %v228, %v1215
  %v1217 = vpop.f32.mrf.mxu0
  %v1218 = vadd.f32 %v228, %v1217
  %1219 = vmatmul.bf16.gmra.mxu0 %v691
  %v1220 = vpop.f32.mrf.mxu0
  %v1221 = vadd.f32 %v228, %v1220
  %v1222 = vpop.f32.mrf.mxu0
  %v1223 = vadd.f32 %v228, %v1222
  %1224 = vmatmul.bf16.gmra.mxu0 %v692
  %v1225 = vpop.f32.mrf.mxu0
  %v1226 = vadd.f32 %v228, %v1225
  %v1227 = vpop.f32.mrf.mxu0
  %v1228 = vadd.f32 %v228, %v1227
  %1229 = vmatmul.bf16.gmra.mxu0 %v693
  %v1230 = vpop.f32.mrf.mxu0
  %v1231 = vadd.f32 %v228, %v1230
  %v1232 = vpop.f32.mrf.mxu0
  %v1233 = vadd.f32 %v228, %v1232
  %1234 = vmatmul.bf16.gmra.mxu0 %v694
  %v1235 = vpop.f32.mrf.mxu0
  %v1236 = vadd.f32 %v228, %v1235
  %v1237 = vpop.f32.mrf.mxu0
  %v1238 = vadd.f32 %v228, %v1237
  %1239 = vmatmul.bf16.gmra.mxu0 %v695
  %v1240 = vpop.f32.mrf.mxu0
  %v1241 = vadd.f32 %v228, %v1240
  %v1242 = vpop.f32.mrf.mxu0
  %v1243 = vadd.f32 %v228, %v1242
  %1244 = vmatmul.bf16.gmra.mxu0 %v696
  %v1245 = vpop.f32.mrf.mxu0
  %v1246 = vadd.f32 %v228, %v1245
  %v1247 = vpop.f32.mrf.mxu0
  %v1248 = vadd.f32 %v228, %v1247
  %1249 = vmatmul.bf16.gmra.mxu0 %v697
  %v1250 = vpop.f32.mrf.mxu0
  %v1251 = vadd.f32 %v228, %v1250
  %v1252 = vpop.f32.mrf.mxu0
  %v1253 = vadd.f32 %v228, %v1252
  %1254 = vmatmul.bf16.gmra.mxu0 %v698
  %v1255 = vpop.f32.mrf.mxu0
  %v1256 = vadd.f32 %v228, %v1255
  %v1257 = vpop.f32.mrf.mxu0
  %v1258 = vadd.f32 %v228, %v1257
  %1259 = vmatmul.bf16.gmra.mxu0 %v699
  %v1260 = vpop.f32.mrf.mxu0
  %v1261 = vadd.f32 %v228, %v1260
  %v1262 = vpop.f32.mrf.mxu0
  %v1263 = vadd.f32 %v228, %v1262
  %1264 = vmatmul.bf16.gmra.mxu0 %v700
  %v1265 = vpop.f32.mrf.mxu0
  %v1266 = vadd.f32 %v228, %v1265
  %v1267 = vpop.f32.mrf.mxu0
  %v1268 = vadd.f32 %v228, %v1267
  %1269 = vmatmul.bf16.gmra.mxu0 %v701
  %v1270 = vpop.f32.mrf.mxu0
  %v1271 = vadd.f32 %v228, %v1270
  %v1272 = vpop.f32.mrf.mxu0
  %v1273 = vadd.f32 %v228, %v1272
  %1274 = vmatmul.bf16.gmra.mxu0 %v702
  %v1275 = vpop.f32.mrf.mxu0
  %v1276 = vadd.f32 %v228, %v1275
  %v1277 = vpop.f32.mrf.mxu0
  %v1278 = vadd.f32 %v228, %v1277
  %1279 = vmatmul.bf16.gmra.mxu0 %v703
  %v1280 = vpop.f32.mrf.mxu0
  %v1281 = vadd.f32 %v228, %v1280
  %v1282 = vpop.f32.mrf.mxu0
  %v1283 = vadd.f32 %v228, %v1282
  %1284 = vmatmul.bf16.gmra.mxu0 %v704
  %v1285 = vpop.f32.mrf.mxu0
  %v1286 = vadd.f32 %v228, %v1285
  %v1287 = vpop.f32.mrf.mxu0
  %v1288 = vadd.f32 %v228, %v1287
  %1289 = vmatmul.bf16.gmra.mxu0 %v705
  %v1290 = vpop.f32.mrf.mxu0
  %v1291 = vadd.f32 %v228, %v1290
  %v1292 = vpop.f32.mrf.mxu0
  %v1293 = vadd.f32 %v228, %v1292
  %1294 = vmatmul.bf16.gmra.mxu0 %v706
  %v1295 = vpop.f32.mrf.mxu0
  %v1296 = vadd.f32 %v228, %v1295
  %v1297 = vpop.f32.mrf.mxu0
  %v1298 = vadd.f32 %v228, %v1297
  %1299 = vmatmul.bf16.gmra.mxu0 %v707
  %v1300 = vpop.f32.mrf.mxu0
  %v1301 = vadd.f32 %v228, %v1300
  %v1302 = vpop.f32.mrf.mxu0
  %v1303 = vadd.f32 %v228, %v1302
  %1304 = vmatmul.bf16.gmra.mxu0 %v708
  %v1305 = vpop.f32.mrf.mxu0
  %v1306 = vadd.f32 %v228, %v1305
  %v1307 = vpop.f32.mrf.mxu0
  %v1308 = vadd.f32 %v228, %v1307
  %1309 = vmatmul.bf16.gmra.mxu0 %v709
  %v1310 = vpop.f32.mrf.mxu0
  %v1311 = vadd.f32 %v228, %v1310
  %v1312 = vpop.f32.mrf.mxu0
  %v1313 = vadd.f32 %v228, %v1312
  %1314 = vmatmul.bf16.gmra.mxu0 %v710
  %v1315 = vpop.f32.mrf.mxu0
  %v1316 = vadd.f32 %v228, %v1315
  %v1317 = vpop.f32.mrf.mxu0
  %v1318 = vadd.f32 %v228, %v1317
  %1319 = vmatmul.bf16.gmra.mxu0 %v711
  %v1320 = vpop.f32.mrf.mxu0
  %v1321 = vadd.f32 %v228, %v1320
  %v1322 = vpop.f32.mrf.mxu0
  %v1323 = vadd.f32 %v228, %v1322
  %1324 = vmatmul.bf16.gmra.mxu0 %v712
  %v1325 = vpop.f32.mrf.mxu0
  %v1326 = vadd.f32 %v228, %v1325
  %v1327 = vpop.f32.mrf.mxu0
  %v1328 = vadd.f32 %v228, %v1327
  %1329 = vmatmul.bf16.gmra.mxu0 %v713
  %v1330 = vpop.f32.mrf.mxu0
  %v1331 = vadd.f32 %v228, %v1330
  %v1332 = vpop.f32.mrf.mxu0
  %v1333 = vadd.f32 %v228, %v1332
  %1334 = vmatmul.bf16.gmra.mxu0 %v714
  %v1335 = vpop.f32.mrf.mxu0
  %v1336 = vadd.f32 %v228, %v1335
  %v1337 = vpop.f32.mrf.mxu0
  %v1338 = vadd.f32 %v228, %v1337
  %1339 = vmatmul.bf16.gmra.mxu0 %v715
  %v1340 = vpop.f32.mrf.mxu0
  %v1341 = vadd.f32 %v228, %v1340
  %v1342 = vpop.f32.mrf.mxu0
  %v1343 = vadd.f32 %v228, %v1342
  %1344 = vmatmul.bf16.gmra.mxu0 %v716
  %v1345 = vpop.f32.mrf.mxu0
  %v1346 = vadd.f32 %v228, %v1345
  %v1347 = vpop.f32.mrf.mxu0
  %v1348 = vadd.f32 %v228, %v1347
  %1349 = vmatmul.bf16.gmra.mxu0 %v717
  %v1350 = vpop.f32.mrf.mxu0
  %v1351 = vadd.f32 %v228, %v1350
  %v1352 = vpop.f32.mrf.mxu0
  %v1353 = vadd.f32 %v228, %v1352
  %1354 = vmatmul.bf16.gmra.mxu0 %v718
  %v1355 = vpop.f32.mrf.mxu0
  %v1356 = vadd.f32 %v228, %v1355
  %v1357 = vpop.f32.mrf.mxu0
  %v1358 = vadd.f32 %v228, %v1357
  %1359 = vmatmul.bf16.gmra.mxu0 %v719
  %v1360 = vpop.f32.mrf.mxu0
  %v1361 = vadd.f32 %v228, %v1360
  %v1362 = vpop.f32.mrf.mxu0
  %v1363 = vadd.f32 %v228, %v1362
  %1364 = vdwg.mxu0
  %v1365 = vtanh.pop %v876
  %v1366 = vtanh.pop %v878
  %v1367 = vtanh.pop %v881
  %v1368 = vtanh.pop %v883
  %v1369 = vtanh.pop %v886
  %v1370 = vtanh.pop %v888
  %v1371 = vtanh.pop %v891
  %v1372 = vtanh.pop %v893
  %v1373 = vtanh.pop %v896
  %v1374 = vtanh.pop %v898
  %v1375 = vtanh.pop %v901
  %v1376 = vtanh.pop %v903
  %v1377 = vtanh.pop %v906
  %v1378 = vtanh.pop %v908
  %v1379 = vtanh.pop %v911
  %v1380 = vtanh.pop %v913
  %v1381 = vtanh.pop %v916
  %v1382 = vtanh.pop %v918
  %v1383 = vtanh.pop %v921
  %v1384 = vtanh.pop %v923
  %v1385 = vtanh.pop %v926
  %v1386 = vtanh.pop %v928
  %v1387 = vtanh.pop %v931
  %v1388 = vtanh.pop %v933
  %v1389 = vtanh.pop %v936
  %v1390 = vtanh.pop %v938
  %v1391 = vtanh.pop %v941
  %v1392 = vtanh.pop %v943
  %v1393 = vtanh.pop %v946
  %v1394 = vtanh.pop %v948
  %v1395 = vtanh.pop %v951
  %v1396 = vtanh.pop %v953
  %v1397 = vtanh.pop %v956
  %v1398 = vtanh.pop %v958
  %v1399 = vtanh.pop %v961
  %v1400 = vtanh.pop %v963
  %v1401 = vtanh.pop %v966
  %v1402 = vtanh.pop %v968
  %v1403 = vtanh.pop %v971
  %v1404 = vtanh.pop %v973
  %v1405 = vtanh.pop %v976
  %v1406 = vtanh.pop %v978
  %v1407 = vtanh.pop %v981
  %v1408 = vtanh.pop %v983
  %v1409 = vtanh.pop %v986
  %v1410 = vtanh.pop %v988
  %v1411 = vtanh.pop %v991
  %v1412 = vtanh.pop %v993
  %v1413 = vtanh.pop %v996
  %v1414 = vtanh.pop %v998
  %v1415 = vtanh.pop %v1001
  %v1416 = vtanh.pop %v1003
  %v1417 = vtanh.pop %v1006
  %v1418 = vtanh.pop %v1008
  %v1419 = vtanh.pop %v1011
  %v1420 = vtanh.pop %v1013
  %v1421 = vtanh.pop %v1016
  %v1422 = vtanh.pop %v1018
  %v1423 = vtanh.pop %v1021
  %v1424 = vtanh.pop %v1023
  %v1425 = vtanh.pop %v1026
  %v1426 = vtanh.pop %v1028
  %v1427 = vtanh.pop %v1031
  %v1428 = vtanh.pop %v1033
  %v1429 = vtanh.pop %v1036
  %v1430 = vtanh.pop %v1038
  %v1431 = vtanh.pop %v1041
  %v1432 = vtanh.pop %v1043
  %v1433 = vtanh.pop %v1046
  %v1434 = vtanh.pop %v1048
  %v1435 = vtanh.pop %v1051
  %v1436 = vtanh.pop %v1053
  %v1437 = vtanh.pop %v1056
  %v1438 = vtanh.pop %v1058
  %v1439 = vtanh.pop %v1061
  %v1440 = vtanh.pop %v1063
  %v1441 = vtanh.pop %v1066
  %v1442 = vtanh.pop %v1068
  %v1443 = vtanh.pop %v1071
  %v1444 = vtanh.pop %v1073
  %v1445 = vtanh.pop %v1076
  %v1446 = vtanh.pop %v1078
  %v1447 = vtanh.pop %v1081
  %v1448 = vtanh.pop %v1083
  %v1449 = vtanh.pop %v1086
  %v1450 = vtanh.pop %v1088
  %v1451 = vtanh.pop %v1091
  %v1452 = vtanh.pop %v1093
  %v1453 = vtanh.pop %v1096
  %v1454 = vtanh.pop %v1098
  %v1455 = vtanh.pop %v1101
  %v1456 = vtanh.pop %v1103
  %v1457 = vtanh.pop %v1106
  %v1458 = vtanh.pop %v1108
  %v1459 = vtanh.pop %v1111
  %v1460 = vtanh.pop %v1113
  %v1461 = vtanh.pop %v1116
  %v1462 = vtanh.pop %v1118
  %v1463 = vtanh.pop %v1121
  %v1464 = vtanh.pop %v1123
  %v1465 = vtanh.pop %v1126
  %v1466 = vtanh.pop %v1128
  %v1467 = vtanh.pop %v1131
  %v1468 = vtanh.pop %v1133
  %v1469 = vtanh.pop %v1136
  %v1470 = vtanh.pop %v1138
  %v1471 = vtanh.pop %v1141
  %v1472 = vtanh.pop %v1143
  %v1473 = vtanh.pop %v1146
  %v1474 = vtanh.pop %v1148
  %v1475 = vtanh.pop %v1151
  %v1476 = vtanh.pop %v1153
  %v1477 = vtanh.pop %v1156
  %v1478 = vtanh.pop %v1158
  %v1479 = vtanh.pop %v1161
  %v1480 = vtanh.pop %v1163
  %v1481 = vtanh.pop %v1166
  %v1482 = vtanh.pop %v1168
  %v1483 = vtanh.pop %v1171
  %v1484 = vtanh.pop %v1173
  %v1485 = vtanh.pop %v1176
  %v1486 = vtanh.pop %v1178
  %v1487 = vtanh.pop %v1181
  %v1488 = vtanh.pop %v1183
  %v1489 = vtanh.pop %v1186
  %v1490 = vtanh.pop %v1188
  %v1491 = vtanh.pop %v1191
  %v1492 = vtanh.pop %v1193
  %v1493 = vtanh.pop %v1196
  %v1494 = vtanh.pop %v1198
  %v1495 = vtanh.pop %v1201
  %v1496 = vtanh.pop %v1203
  %v1497 = vtanh.pop %v1206
  %v1498 = vtanh.pop %v1208
  %v1499 = vtanh.pop %v1211
  %v1500 = vtanh.pop %v1213
  %v1501 = vtanh.pop %v1216
  %v1502 = vtanh.pop %v1218
  %v1503 = vtanh.pop %v1221
  %v1504 = vtanh.pop %v1223
  %v1505 = vtanh.pop %v1226
  %v1506 = vtanh.pop %v1228
  %v1507 = vtanh.pop %v1231
  %v1508 = vtanh.pop %v1233
  %v1509 = vtanh.pop %v1236
  %v1510 = vtanh.pop %v1238
  %v1511 = vtanh.pop %v1241
  %v1512 = vtanh.pop %v1243
  %v1513 = vtanh.pop %v1246
  %v1514 = vtanh.pop %v1248
  %v1515 = vtanh.pop %v1251
  %v1516 = vtanh.pop %v1253
  %v1517 = vtanh.pop %v1256
  %v1518 = vtanh.pop %v1258
  %v1519 = vtanh.pop %v1261
  %v1520 = vtanh.pop %v1263
  %v1521 = vtanh.pop %v1266
  %v1522 = vtanh.pop %v1268
  %v1523 = vtanh.pop %v1271
  %v1524 = vtanh.pop %v1273
  %v1525 = vtanh.pop %v1276
  %v1526 = vtanh.pop %v1278
  %v1527 = vtanh.pop %v1281
  %v1528 = vtanh.pop %v1283
  %v1529 = vtanh.pop %v1286
  %v1530 = vtanh.pop %v1288
  %v1531 = vtanh.pop %v1291
  %v1532 = vtanh.pop %v1293
  %v1533 = vtanh.pop %v1296
  %v1534 = vtanh.pop %v1298
  %v1535 = vtanh.pop %v1301
  %v1536 = vtanh.pop %v1303
  %v1537 = vtanh.pop %v1306
  %v1538 = vtanh.pop %v1308
  %v1539 = vtanh.pop %v1311
  %v1540 = vtanh.pop %v1313
  %v1541 = vtanh.pop %v1316
  %v1542 = vtanh.pop %v1318
  %v1543 = vtanh.pop %v1321
  %v1544 = vtanh.pop %v1323
  %v1545 = vtanh.pop %v1326
  %v1546 = vtanh.pop %v1328
  %v1547 = vtanh.pop %v1331
  %v1548 = vtanh.pop %v1333
  %v1549 = vtanh.pop %v1336
  %v1550 = vtanh.pop %v1338
  %v1551 = vtanh.pop %v1341
  %v1552 = vtanh.pop %v1343
  %v1553 = vtanh.pop %v1346
  %v1554 = vtanh.pop %v1348
  %v1555 = vtanh.pop %v1351
  %v1556 = vtanh.pop %v1353
  %v1557 = vtanh.pop %v1356
  %v1558 = vtanh.pop %v1358
  %v1559 = vtanh.pop %v1361
  %v1560 = vtanh.pop %v1363
  %1561 = vst [vmem:[%s3] sm:$0xff] %v1365
  %1562 = vst [vmem:[%s3 + $0x8] sm:$0xff] %v1366
  %1563 = vst [vmem:[%s3 + $0x10] sm:$0xff] %v1367
  %1564 = vst [vmem:[%s3 + $0x18] sm:$0xff] %v1368
  %1565 = vst [vmem:[%s3 + $0x20] sm:$0xff] %v1369
  %1566 = vst [vmem:[%s3 + $0x28] sm:$0xff] %v1370
  %1567 = vst [vmem:[%s3 + $0x30] sm:$0xff] %v1371
  %1568 = vst [vmem:[%s3 + $0x38] sm:$0xff] %v1372
  %1569 = vst [vmem:[%s3 + $0x40] sm:$0xff] %v1373
  %1570 = vst [vmem:[%s3 + $0x48] sm:$0xff] %v1374
  %1571 = vst [vmem:[%s3 + $0x50] sm:$0xff] %v1375
  %1572 = vst [vmem:[%s3 + $0x58] sm:$0xff] %v1376
  %1573 = vst [vmem:[%s3 + $0x60] sm:$0xff] %v1377
  %1574 = vst [vmem:[%s3 + $0x68] sm:$0xff] %v1378
  %1575 = vst [vmem:[%s3 + $0x70] sm:$0xff] %v1379
  %1576 = vst [vmem:[%s3 + $0x78] sm:$0xff] %v1380
  %1577 = vst [vmem:[%s3 + $0x80] sm:$0xff] %v1381
  %1578 = vst [vmem:[%s3 + $0x88] sm:$0xff] %v1382
  %1579 = vst [vmem:[%s3 + $0x90] sm:$0xff] %v1383
  %1580 = vst [vmem:[%s3 + $0x98] sm:$0xff] %v1384
  %1581 = vst [vmem:[%s3 + $0xa0] sm:$0xff] %v1385
  %1582 = vst [vmem:[%s3 + $0xa8] sm:$0xff] %v1386
  %1583 = vst [vmem:[%s3 + $0xb0] sm:$0xff] %v1387
  %1584 = vst [vmem:[%s3 + $0xb8] sm:$0xff] %v1388
  %1585 = vst [vmem:[%s3 + $0xc0] sm:$0xff] %v1389
  %1586 = vst [vmem:[%s3 + $0xc8] sm:$0xff] %v1390
  %1587 = vst [vmem:[%s3 + $0xd0] sm:$0xff] %v1391
  %1588 = vst [vmem:[%s3 + $0xd8] sm:$0xff] %v1392
  %1589 = vst [vmem:[%s3 + $0xe0] sm:$0xff] %v1393
  %1590 = vst [vmem:[%s3 + $0xe8] sm:$0xff] %v1394
  %1591 = vst [vmem:[%s3 + $0xf0] sm:$0xff] %v1395
  %1592 = vst [vmem:[%s3 + $0xf8] sm:$0xff] %v1396
  %1593 = vst [vmem:[%s3 + $0x100] sm:$0xff] %v1397
  %1594 = vst [vmem:[%s3 + $0x108] sm:$0xff] %v1398
  %1595 = vst [vmem:[%s3 + $0x110] sm:$0xff] %v1399
  %1596 = vst [vmem:[%s3 + $0x118] sm:$0xff] %v1400
  %1597 = vst [vmem:[%s3 + $0x120] sm:$0xff] %v1401
  %1598 = vst [vmem:[%s3 + $0x128] sm:$0xff] %v1402
  %1599 = vst [vmem:[%s3 + $0x130] sm:$0xff] %v1403
  %1600 = vst [vmem:[%s3 + $0x138] sm:$0xff] %v1404
  %1601 = vst [vmem:[%s3 + $0x140] sm:$0xff] %v1405
  %1602 = vst [vmem:[%s3 + $0x148] sm:$0xff] %v1406
  %1603 = vst [vmem:[%s3 + $0x150] sm:$0xff] %v1407
  %1604 = vst [vmem:[%s3 + $0x158] sm:$0xff] %v1408
  %1605 = vst [vmem:[%s3 + $0x160] sm:$0xff] %v1409
  %1606 = vst [vmem:[%s3 + $0x168] sm:$0xff] %v1410
  %1607 = vst [vmem:[%s3 + $0x170] sm:$0xff] %v1411
  %1608 = vst [vmem:[%s3 + $0x178] sm:$0xff] %v1412
  %1609 = vst [vmem:[%s3 + $0x180] sm:$0xff] %v1413
  %1610 = vst [vmem:[%s3 + $0x188] sm:$0xff] %v1414
  %1611 = vst [vmem:[%s3 + $0x190] sm:$0xff] %v1415
  %1612 = vst [vmem:[%s3 + $0x198] sm:$0xff] %v1416
  %1613 = vst [vmem:[%s3 + $0x1a0] sm:$0xff] %v1417
  %1614 = vst [vmem:[%s3 + $0x1a8] sm:$0xff] %v1418
  %1615 = vst [vmem:[%s3 + $0x1b0] sm:$0xff] %v1419
  %1616 = vst [vmem:[%s3 + $0x1b8] sm:$0xff] %v1420
  %1617 = vst [vmem:[%s3 + $0x1c0] sm:$0xff] %v1421
  %1618 = vst [vmem:[%s3 + $0x1c8] sm:$0xff] %v1422
  %1619 = vst [vmem:[%s3 + $0x1d0] sm:$0xff] %v1423
  %1620 = vst [vmem:[%s3 + $0x1d8] sm:$0xff] %v1424
  %1621 = vst [vmem:[%s3 + $0x1e0] sm:$0xff] %v1425
  %1622 = vst [vmem:[%s3 + $0x1e8] sm:$0xff] %v1426
  %1623 = vst [vmem:[%s3 + $0x1f0] sm:$0xff] %v1427
  %1624 = vst [vmem:[%s3 + $0x1f8] sm:$0xff] %v1428
  %1625 = vst [vmem:[%s3 + $0x200] sm:$0xff] %v1429
  %1626 = vst [vmem:[%s3 + $0x208] sm:$0xff] %v1430
  %1627 = vst [vmem:[%s3 + $0x210] sm:$0xff] %v1431
  %1628 = vst [vmem:[%s3 + $0x218] sm:$0xff] %v1432
  %1629 = vst [vmem:[%s3 + $0x220] sm:$0xff] %v1433
  %1630 = vst [vmem:[%s3 + $0x228] sm:$0xff] %v1434
  %1631 = vst [vmem:[%s3 + $0x230] sm:$0xff] %v1435
  %1632 = vst [vmem:[%s3 + $0x238] sm:$0xff] %v1436
  %1633 = vst [vmem:[%s3 + $0x240] sm:$0xff] %v1437
  %1634 = vst [vmem:[%s3 + $0x248] sm:$0xff] %v1438
  %1635 = vst [vmem:[%s3 + $0x250] sm:$0xff] %v1439
  %1636 = vst [vmem:[%s3 + $0x258] sm:$0xff] %v1440
  %1637 = vst [vmem:[%s3 + $0x260] sm:$0xff] %v1441
  %1638 = vst [vmem:[%s3 + $0x268] sm:$0xff] %v1442
  %1639 = vst [vmem:[%s3 + $0x270] sm:$0xff] %v1443
  %1640 = vst [vmem:[%s3 + $0x278] sm:$0xff] %v1444
  %1641 = vst [vmem:[%s3 + $0x280] sm:$0xff] %v1445
  %1642 = vst [vmem:[%s3 + $0x288] sm:$0xff] %v1446
  %1643 = vst [vmem:[%s3 + $0x290] sm:$0xff] %v1447
  %1644 = vst [vmem:[%s3 + $0x298] sm:$0xff] %v1448
  %1645 = vst [vmem:[%s3 + $0x2a0] sm:$0xff] %v1449
  %1646 = vst [vmem:[%s3 + $0x2a8] sm:$0xff] %v1450
  %1647 = vst [vmem:[%s3 + $0x2b0] sm:$0xff] %v1451
  %1648 = vst [vmem:[%s3 + $0x2b8] sm:$0xff] %v1452
  %1649 = vst [vmem:[%s3 + $0x2c0] sm:$0xff] %v1453
  %1650 = vst [vmem:[%s3 + $0x2c8] sm:$0xff] %v1454
  %1651 = vst [vmem:[%s3 + $0x2d0] sm:$0xff] %v1455
  %1652 = vst [vmem:[%s3 + $0x2d8] sm:$0xff] %v1456
  %1653 = vst [vmem:[%s3 + $0x2e0] sm:$0xff] %v1457
  %1654 = vst [vmem:[%s3 + $0x2e8] sm:$0xff] %v1458
  %1655 = vst [vmem:[%s3 + $0x2f0] sm:$0xff] %v1459
  %1656 = vst [vmem:[%s3 + $0x2f8] sm:$0xff] %v1460
  %1657 = vst [vmem:[%s3 + $0x300] sm:$0xff] %v1461
  %1658 = vst [vmem:[%s3 + $0x308] sm:$0xff] %v1462
  %1659 = vst [vmem:[%s3 + $0x310] sm:$0xff] %v1463
  %1660 = vst [vmem:[%s3 + $0x318] sm:$0xff] %v1464
  %1661 = vst [vmem:[%s3 + $0x320] sm:$0xff] %v1465
  %1662 = vst [vmem:[%s3 + $0x328] sm:$0xff] %v1466
  %1663 = vst [vmem:[%s3 + $0x330] sm:$0xff] %v1467
  %1664 = vst [vmem:[%s3 + $0x338] sm:$0xff] %v1468
  %1665 = vst [vmem:[%s3 + $0x340] sm:$0xff] %v1469
  %1666 = vst [vmem:[%s3 + $0x348] sm:$0xff] %v1470
  %1667 = vst [vmem:[%s3 + $0x350] sm:$0xff] %v1471
  %1668 = vst [vmem:[%s3 + $0x358] sm:$0xff] %v1472
  %1669 = vst [vmem:[%s3 + $0x360] sm:$0xff] %v1473
  %1670 = vst [vmem:[%s3 + $0x368] sm:$0xff] %v1474
  %1671 = vst [vmem:[%s3 + $0x370] sm:$0xff] %v1475
  %1672 = vst [vmem:[%s3 + $0x378] sm:$0xff] %v1476
  %1673 = vst [vmem:[%s3 + $0x380] sm:$0xff] %v1477
  %1674 = vst [vmem:[%s3 + $0x388] sm:$0xff] %v1478
  %1675 = vst [vmem:[%s3 + $0x390] sm:$0xff] %v1479
  %1676 = vst [vmem:[%s3 + $0x398] sm:$0xff] %v1480
  %1677 = vst [vmem:[%s3 + $0x3a0] sm:$0xff] %v1481
  %1678 = vst [vmem:[%s3 + $0x3a8] sm:$0xff] %v1482
  %1679 = vst [vmem:[%s3 + $0x3b0] sm:$0xff] %v1483
  %1680 = vst [vmem:[%s3 + $0x3b8] sm:$0xff] %v1484
  %1681 = vst [vmem:[%s3 + $0x3c0] sm:$0xff] %v1485
  %1682 = vst [vmem:[%s3 + $0x3c8] sm:$0xff] %v1486
  %1683 = vst [vmem:[%s3 + $0x3d0] sm:$0xff] %v1487
  %1684 = vst [vmem:[%s3 + $0x3d8] sm:$0xff] %v1488
  %1685 = vst [vmem:[%s3 + $0x3e0] sm:$0xff] %v1489
  %1686 = vst [vmem:[%s3 + $0x3e8] sm:$0xff] %v1490
  %1687 = vst [vmem:[%s3 + $0x3f0] sm:$0xff] %v1491
  %1688 = vst [vmem:[%s3 + $0x3f8] sm:$0xff] %v1492
  %1689 = vst [vmem:[%s3 + $0x400] sm:$0xff] %v1493
  %1690 = vst [vmem:[%s3 + $0x408] sm:$0xff] %v1494
  %1691 = vst [vmem:[%s3 + $0x410] sm:$0xff] %v1495
  %1692 = vst [vmem:[%s3 + $0x418] sm:$0xff] %v1496
  %1693 = vst [vmem:[%s3 + $0x420] sm:$0xff] %v1497
  %1694 = vst [vmem:[%s3 + $0x428] sm:$0xff] %v1498
  %1695 = vst [vmem:[%s3 + $0x430] sm:$0xff] %v1499
  %1696 = vst [vmem:[%s3 + $0x438] sm:$0xff] %v1500
  %1697 = vst [vmem:[%s3 + $0x440] sm:$0xff] %v1501
  %1698 = vst [vmem:[%s3 + $0x448] sm:$0xff] %v1502
  %1699 = vst [vmem:[%s3 + $0x450] sm:$0xff] %v1503
  %1700 = vst [vmem:[%s3 + $0x458] sm:$0xff] %v1504
  %1701 = vst [vmem:[%s3 + $0x460] sm:$0xff] %v1505
  %1702 = vst [vmem:[%s3 + $0x468] sm:$0xff] %v1506
  %1703 = vst [vmem:[%s3 + $0x470] sm:$0xff] %v1507
  %1704 = vst [vmem:[%s3 + $0x478] sm:$0xff] %v1508
  %1705 = vst [vmem:[%s3 + $0x480] sm:$0xff] %v1509
  %1706 = vst [vmem:[%s3 + $0x488] sm:$0xff] %v1510
  %1707 = vst [vmem:[%s3 + $0x490] sm:$0xff] %v1511
  %1708 = vst [vmem:[%s3 + $0x498] sm:$0xff] %v1512
  %1709 = vst [vmem:[%s3 + $0x4a0] sm:$0xff] %v1513
  %1710 = vst [vmem:[%s3 + $0x4a8] sm:$0xff] %v1514
  %1711 = vst [vmem:[%s3 + $0x4b0] sm:$0xff] %v1515
  %1712 = vst [vmem:[%s3 + $0x4b8] sm:$0xff] %v1516
  %1713 = vst [vmem:[%s3 + $0x4c0] sm:$0xff] %v1517
  %1714 = vst [vmem:[%s3 + $0x4c8] sm:$0xff] %v1518
  %1715 = vst [vmem:[%s3 + $0x4d0] sm:$0xff] %v1519
  %1716 = vst [vmem:[%s3 + $0x4d8] sm:$0xff] %v1520
  %1717 = vst [vmem:[%s3 + $0x4e0] sm:$0xff] %v1521
  %1718 = vst [vmem:[%s3 + $0x4e8] sm:$0xff] %v1522
  %1719 = vst [vmem:[%s3 + $0x4f0] sm:$0xff] %v1523
  %1720 = vst [vmem:[%s3 + $0x4f8] sm:$0xff] %v1524
  %1721 = vst [vmem:[%s3 + $0x500] sm:$0xff] %v1525
  %1722 = vst [vmem:[%s3 + $0x508] sm:$0xff] %v1526
  %1723 = vst [vmem:[%s3 + $0x510] sm:$0xff] %v1527
  %1724 = vst [vmem:[%s3 + $0x518] sm:$0xff] %v1528
  %1725 = vst [vmem:[%s3 + $0x520] sm:$0xff] %v1529
  %1726 = vst [vmem:[%s3 + $0x528] sm:$0xff] %v1530
  %1727 = vst [vmem:[%s3 + $0x530] sm:$0xff] %v1531
  %1728 = vst [vmem:[%s3 + $0x538] sm:$0xff] %v1532
  %1729 = vst [vmem:[%s3 + $0x540] sm:$0xff] %v1533
  %1730 = vst [vmem:[%s3 + $0x548] sm:$0xff] %v1534
  %1731 = vst [vmem:[%s3 + $0x550] sm:$0xff] %v1535
  %1732 = vst [vmem:[%s3 + $0x558] sm:$0xff] %v1536
  %1733 = vst [vmem:[%s3 + $0x560] sm:$0xff] %v1537
  %1734 = vst [vmem:[%s3 + $0x568] sm:$0xff] %v1538
  %1735 = vst [vmem:[%s3 + $0x570] sm:$0xff] %v1539
  %1736 = vst [vmem:[%s3 + $0x578] sm:$0xff] %v1540
  %1737 = vst [vmem:[%s3 + $0x580] sm:$0xff] %v1541
  %1738 = vst [vmem:[%s3 + $0x588] sm:$0xff] %v1542
  %1739 = vst [vmem:[%s3 + $0x590] sm:$0xff] %v1543
  %1740 = vst [vmem:[%s3 + $0x598] sm:$0xff] %v1544
  %1741 = vst [vmem:[%s3 + $0x5a0] sm:$0xff] %v1545
  %1742 = vst [vmem:[%s3 + $0x5a8] sm:$0xff] %v1546
  %1743 = vst [vmem:[%s3 + $0x5b0] sm:$0xff] %v1547
  %1744 = vst [vmem:[%s3 + $0x5b8] sm:$0xff] %v1548
  %1745 = vst [vmem:[%s3 + $0x5c0] sm:$0xff] %v1549
  %1746 = vst [vmem:[%s3 + $0x5c8] sm:$0xff] %v1550
  %1747 = vst [vmem:[%s3 + $0x5d0] sm:$0xff] %v1551
  %1748 = vst [vmem:[%s3 + $0x5d8] sm:$0xff] %v1552
  %1749 = vst [vmem:[%s3 + $0x5e0] sm:$0xff] %v1553
  %1750 = vst [vmem:[%s3 + $0x5e8] sm:$0xff] %v1554
  %1751 = vst [vmem:[%s3 + $0x5f0] sm:$0xff] %v1555
  %1752 = vst [vmem:[%s3 + $0x5f8] sm:$0xff] %v1556
  %1753 = vst [vmem:[%s3 + $0x600] sm:$0xff] %v1557
  %1754 = vst [vmem:[%s3 + $0x608] sm:$0xff] %v1558
  %1755 = vst [vmem:[%s3 + $0x610] sm:$0xff] %v1559
  %1756 = vst [vmem:[%s3 + $0x618] sm:$0xff] %v1560
  // Predicated region
  $region14: #{autoencoder_forward.11} parent=0 // pred_check
    _
  $region15: #{autoencoder_forward.11} parent=0 // pred_check_branch
    %1758 = sbr.rel (0) target = $region17
  $region16: #{autoencoder_forward.11} parent=0 // pred_region
    _
  $region17: #{autoencoder_forward.11} parent=0 // pred_fallthru
    _
  // Predicated region
  $region18: #{autoencoder_forward.11} parent=0 // pred_check
    _
  $region19: #{autoencoder_forward.11} parent=0 // pred_check_branch
    %1760 = sbr.rel (0) target = $region21
  $region20: #{autoencoder_forward.11} parent=0 // pred_region
    _
  $region21: #{autoencoder_forward.11} parent=0 // pred_fallthru
    _

</llo_original>
